<compile_context>
chip_gen: v7x
topology: tpu7x:2x2x1
jax: 0.10.0
libtpu: 0.0.40
codegen_flags: <defaults>
</compile_context>

<pallas_src>
import jax
import jax.numpy as jnp
from jax.experimental import pallas as pl
from jax.experimental.pallas import tpu as pltpu


def _im2col_3x3_reflect(x_hwc, H, W, C):
    """Reflect-pad(1) + extract 3x3 patches -> (H*W, 9*C) matrix."""
    xp = jnp.concatenate([x_hwc[1:2], x_hwc, x_hwc[H - 2:H - 1]], axis=0)   # (H+2, W, C)
    xp = jnp.concatenate([xp[:, 1:2], xp, xp[:, W - 2:W - 1]], axis=1)      # (H+2, W+2, C)
    taps = [xp[di:di + H, dj:dj + W, :] for di in range(3) for dj in range(3)]
    patches = jnp.concatenate(taps, axis=-1)        # (H, W, 9C); pieces are lane-aligned
    return patches.reshape(H * W, 9 * C)


def _instance_norm(y, eps=1e-5):
    """Per-channel normalization over H*W; single-pass (sum, sum-of-squares) stats."""
    inv_n = 1.0 / y.shape[0]
    s1 = jnp.sum(y, axis=0, keepdims=True)
    s2 = jnp.sum(y * y, axis=0, keepdims=True)
    mean = s1 * inv_n
    var = jnp.maximum(s2 * inv_n - mean * mean, 0.0)
    return (y - mean) * jax.lax.rsqrt(var + eps)


def resnet_block_kernel(x_ref, w1_ref, b1_ref, w2_ref, b2_ref,
                        sw1_ref, sw2_ref, o_ref):
    # one grid step == one batch element
    _, H, W, C = x_ref.shape

    # conv1: reflect-pad + 3x3 conv as a single im2col matmul (K = 9*C),
    # bf16 operands, f32 accumulation on the MXU.
    p = _im2col_3x3_reflect(x_ref[0], H, W, C)                  # (H*W, 9C) f32
    y = jnp.dot(p.astype(jnp.bfloat16), w1_ref[...],
                preferred_element_type=jnp.float32) + b1_ref[...]
    y = _instance_norm(y)
    y = jnp.maximum(y, 0.0)

    # conv2 -> InstanceNorm
    p = _im2col_3x3_reflect(y.reshape(H, W, C), H, W, C)
    y = jnp.dot(p.astype(jnp.bfloat16), w2_ref[...],
                preferred_element_type=jnp.float32) + b2_ref[...]
    y = _instance_norm(y)                                       # (H*W, C)

    # SE block: GAP -> Linear -> ReLU -> Linear -> Sigmoid -> scale.
    # M=1 matmuls are a poor MXU fit, so run the bottleneck on the VPU/XLU.
    pooled = jnp.mean(y, axis=0, keepdims=True)                 # (1, C)
    h = jnp.maximum(
        jnp.sum(sw1_ref[...] * pooled, axis=1, keepdims=True), 0.0)   # (hidden, 1)
    s = jax.nn.sigmoid(
        jnp.sum(sw2_ref[...] * h, axis=0, keepdims=True))             # (1, C)
    y = y * s                                                   # broadcast over H*W

    # residual add: re-read x late from its already-resident VMEM block
    o_ref[0] = (x_ref[0] + y.reshape(H, W, C)).astype(o_ref.dtype)


def resnet_block_forward(x_nchw, params):
    """x_nchw: (N, C, H, W) float32. Returns (N, C, H, W)."""
    w1, b1, w2, b2, sw1, sw2 = params
    N, C, H, W = x_nchw.shape
    hidden = sw1.shape[1]

    # NOTE: these two wrapper transposes would be dropped in an NHWC-end-to-end
    # pipeline (they are extra HBM passes around the kernel).
    x_nhwc = jnp.transpose(x_nchw, (0, 2, 3, 1))                # -> NHWC

    # Flatten conv weights to (9*C, C) matching the im2col tap ordering; bf16
    # halves weight DMA/VMEM and hits the bf16 MXU rate.
    w1f = w1.reshape(9 * C, C).astype(jnp.bfloat16)
    w2f = w2.reshape(9 * C, C).astype(jnp.bfloat16)
    b1r = b1.reshape(1, C)
    b2r = b2.reshape(1, C)
    sw1_t = jnp.transpose(sw1)                                  # (hidden, C)
    # sw2 is already (hidden, C)

    flops = int(4 * N * H * W * 9 * C * C)                      # two convs (MACs*2)
    bytes_accessed = int(2 * N * H * W * C * 4                  # x in + out (f32)
                         + (w1f.size + w2f.size) * 2            # bf16 weights
                         + (b1.size + b2.size + sw1.size + sw2.size) * 4)
    transcendentals = int(N * 4 * C)                            # rsqrt x2 + sigmoid (rough)

    out_nhwc = pl.pallas_call(
        resnet_block_kernel,
        out_shape=jax.ShapeDtypeStruct((N, H, W, C), jnp.float32),
        grid_spec=pltpu.PrefetchScalarGridSpec(
            num_scalar_prefetch=0,
            grid=(N,),
            in_specs=[
                pl.BlockSpec((1, H, W, C), lambda n: (n, 0, 0, 0)),   # x
                pl.BlockSpec((9 * C, C), lambda n: (0, 0)),           # conv1 w (im2col)
                pl.BlockSpec((1, C), lambda n: (0, 0)),               # conv1 b
                pl.BlockSpec((9 * C, C), lambda n: (0, 0)),           # conv2 w (im2col)
                pl.BlockSpec((1, C), lambda n: (0, 0)),               # conv2 b
                pl.BlockSpec((hidden, C), lambda n: (0, 0)),          # se fc1 (transposed)
                pl.BlockSpec((hidden, C), lambda n: (0, 0)),          # se fc2
            ],
            out_specs=pl.BlockSpec((1, H, W, C), lambda n: (n, 0, 0, 0)),
        ),
        compiler_params=pltpu.CompilerParams(
            dimension_semantics=("parallel",),
            vmem_limit_bytes=32 * 1024 * 1024,
        ),
        cost_estimate=pl.CostEstimate(
            flops=flops,
            transcendentals=transcendentals,
            bytes_accessed=bytes_accessed,
        ),
    )(x_nhwc, w1f, b1r, w2f, b2r, sw1_t, sw2)

    return jnp.transpose(out_nhwc, (0, 3, 1, 2))                # -> NCHW


def init_params(key, dim, reduction=16):
    """Deterministic parameter init (shapes follow ResnetBlock(dim))."""
    k1, k2, k3, k4, k5, k6 = jax.random.split(key, 6)
    fan_conv = dim * 3 * 3
    w1 = jax.random.normal(k1, (3, 3, dim, dim), jnp.float32) / jnp.sqrt(fan_conv)
    b1 = jax.random.normal(k2, (dim,), jnp.float32) * 0.01
    w2 = jax.random.normal(k3, (3, 3, dim, dim), jnp.float32) / jnp.sqrt(fan_conv)
    b2 = jax.random.normal(k4, (dim,), jnp.float32) * 0.01
    hidden = dim // reduction
    sw1 = jax.random.normal(k5, (dim, hidden), jnp.float32) / jnp.sqrt(dim)
    sw2 = jax.random.normal(k6, (hidden, dim), jnp.float32) / jnp.sqrt(hidden)
    return (w1, b1, w2, b2, sw1, sw2)


if __name__ == "__main__":
    key = jax.random.PRNGKey(0)
    kx, kp = jax.random.split(key)

    # dim=128 is a typical ResnetBlock width and keeps the channel axis exactly
    # one vreg lane-width (lane-dense elementwise/norm/store path); spatial is
    # kept small so the whole per-sample block fits VMEM on every TPU generation.
    N, C, H, W = 2, 128, 16, 16
    x = jax.random.normal(kx, (N, C, H, W), jnp.float32)
    params = init_params(kp, C)

    out = resnet_block_forward(x, params)
    out = jax.block_until_ready(out)

    assert out.shape == (N, C, H, W)
    assert bool(jnp.all(jnp.isfinite(out)))
    print("KERNEL_OK")
</pallas_src>

<mosaic_0001>
module attributes {stable_mosaic.version = 11 : i64} {
  func.func @resnet_block_kernel(%arg0: i32, %arg1: memref<1x16x16x128xf32, #tpu.memory_space<vmem>>, %arg2: memref<1152x128xbf16, #tpu.memory_space<vmem>>, %arg3: memref<1x128xf32, #tpu.memory_space<vmem>>, %arg4: memref<1152x128xbf16, #tpu.memory_space<vmem>>, %arg5: memref<1x128xf32, #tpu.memory_space<vmem>>, %arg6: memref<8x128xf32, #tpu.memory_space<vmem>>, %arg7: memref<8x128xf32, #tpu.memory_space<vmem>>, %arg8: memref<1x16x16x128xf32, #tpu.memory_space<vmem>>) attributes {dimension_semantics = [#tpu.dimension_semantics<parallel>], iteration_bounds = array<i64: 2>, scalar_prefetch = 0 : i64, scratch_operands = 0 : i64, tpu.core_type = #tpu.core_type<tc>, window_params = [{transform_indices = @transform_0, window_bounds = array<i64: 1, 16, 16, 128>}, {pipeline_mode = #tpu.pipeline_mode<synchronous>, transform_indices = @transform_1, window_bounds = array<i64: 1152, 128>}, {pipeline_mode = #tpu.pipeline_mode<synchronous>, transform_indices = @transform_2, window_bounds = array<i64: 1, 128>}, {pipeline_mode = #tpu.pipeline_mode<synchronous>, transform_indices = @transform_3, window_bounds = array<i64: 1152, 128>}, {pipeline_mode = #tpu.pipeline_mode<synchronous>, transform_indices = @transform_4, window_bounds = array<i64: 1, 128>}, {pipeline_mode = #tpu.pipeline_mode<synchronous>, transform_indices = @transform_5, window_bounds = array<i64: 8, 128>}, {pipeline_mode = #tpu.pipeline_mode<synchronous>, transform_indices = @transform_6, window_bounds = array<i64: 8, 128>}, {transform_indices = @transform_7, window_bounds = array<i64: 1, 16, 16, 128>}]} {
    %c0 = arith.constant 0 : index
    %c0_0 = arith.constant 0 : index
    %c0_1 = arith.constant 0 : index
    %c0_2 = arith.constant 0 : index
    %0 = vector.load %arg1[%c0, %c0_0, %c0_1, %c0_2] : memref<1x16x16x128xf32, #tpu.memory_space<vmem>>, vector<1x16x16x128xf32>
    %1 = vector.shape_cast %0 : vector<1x16x16x128xf32> to vector<16x16x128xf32>
    %2 = vector.extract_strided_slice %1 {offsets = [1, 0, 0], sizes = [1, 16, 128], strides = [1, 1, 1]} : vector<16x16x128xf32> to vector<1x16x128xf32>
    %3 = vector.extract_strided_slice %1 {offsets = [14, 0, 0], sizes = [1, 16, 128], strides = [1, 1, 1]} : vector<16x16x128xf32> to vector<1x16x128xf32>
    %4 = tpu.concatenate %2, %1, %3 in 0 : vector<1x16x128xf32>, vector<16x16x128xf32>, vector<1x16x128xf32> -> vector<18x16x128xf32>
    %5 = vector.extract_strided_slice %4 {offsets = [0, 1, 0], sizes = [18, 1, 128], strides = [1, 1, 1]} : vector<18x16x128xf32> to vector<18x1x128xf32>
    %6 = vector.extract_strided_slice %4 {offsets = [0, 14, 0], sizes = [18, 1, 128], strides = [1, 1, 1]} : vector<18x16x128xf32> to vector<18x1x128xf32>
    %7 = tpu.concatenate %5, %4, %6 in 1 : vector<18x1x128xf32>, vector<18x16x128xf32>, vector<18x1x128xf32> -> vector<18x18x128xf32>
    %8 = vector.extract_strided_slice %7 {offsets = [0, 0, 0], sizes = [16, 16, 128], strides = [1, 1, 1]} : vector<18x18x128xf32> to vector<16x16x128xf32>
    %9 = vector.extract_strided_slice %7 {offsets = [0, 1, 0], sizes = [16, 16, 128], strides = [1, 1, 1]} : vector<18x18x128xf32> to vector<16x16x128xf32>
    %10 = vector.extract_strided_slice %7 {offsets = [0, 2, 0], sizes = [16, 16, 128], strides = [1, 1, 1]} : vector<18x18x128xf32> to vector<16x16x128xf32>
    %11 = vector.extract_strided_slice %7 {offsets = [1, 0, 0], sizes = [16, 16, 128], strides = [1, 1, 1]} : vector<18x18x128xf32> to vector<16x16x128xf32>
    %12 = vector.extract_strided_slice %7 {offsets = [1, 1, 0], sizes = [16, 16, 128], strides = [1, 1, 1]} : vector<18x18x128xf32> to vector<16x16x128xf32>
    %13 = vector.extract_strided_slice %7 {offsets = [1, 2, 0], sizes = [16, 16, 128], strides = [1, 1, 1]} : vector<18x18x128xf32> to vector<16x16x128xf32>
    %14 = vector.extract_strided_slice %7 {offsets = [2, 0, 0], sizes = [16, 16, 128], strides = [1, 1, 1]} : vector<18x18x128xf32> to vector<16x16x128xf32>
    %15 = vector.extract_strided_slice %7 {offsets = [2, 1, 0], sizes = [16, 16, 128], strides = [1, 1, 1]} : vector<18x18x128xf32> to vector<16x16x128xf32>
    %16 = vector.extract_strided_slice %7 {offsets = [2, 2, 0], sizes = [16, 16, 128], strides = [1, 1, 1]} : vector<18x18x128xf32> to vector<16x16x128xf32>
    %17 = tpu.concatenate %8, %9, %10, %11, %12, %13, %14, %15, %16 in 2 : vector<16x16x128xf32>, vector<16x16x128xf32>, vector<16x16x128xf32>, vector<16x16x128xf32>, vector<16x16x128xf32>, vector<16x16x128xf32>, vector<16x16x128xf32>, vector<16x16x128xf32>, vector<16x16x128xf32> -> vector<16x16x1152xf32>
    %18 = vector.shape_cast %17 : vector<16x16x1152xf32> to vector<256x1152xf32>
    %19 = arith.truncf %18 : vector<256x1152xf32> to vector<256x1152xbf16>
    %c0_3 = arith.constant 0 : index
    %c0_4 = arith.constant 0 : index
    %20 = vector.load %arg2[%c0_3, %c0_4] : memref<1152x128xbf16, #tpu.memory_space<vmem>>, vector<1152x128xbf16>
    %cst = arith.constant dense<0.000000e+00> : vector<256x128xf32>
    %21 = tpu.matmul %19, %20, %cst {dimension_numbers = #tpu.dot_dimension_numbers<[1], [0], [0], [1], [0, 0, 1, 1], [], []>} : vector<256x1152xbf16>, vector<1152x128xbf16>, vector<256x128xf32> -> vector<256x128xf32>
    %c0_5 = arith.constant 0 : index
    %c0_6 = arith.constant 0 : index
    %22 = vector.load %arg3[%c0_5, %c0_6] : memref<1x128xf32, #tpu.memory_space<vmem>>, vector<1x128xf32>
    %23 = vector.broadcast %22 : vector<1x128xf32> to vector<256x128xf32>
    %24 = arith.addf %21, %23 : vector<256x128xf32>
    %cst_7 = arith.constant dense<0.000000e+00> : vector<128xf32>
    %25 = vector.multi_reduction <add>, %24, %cst_7 [0] : vector<256x128xf32> to vector<128xf32>
    %26 = vector.shape_cast %25 : vector<128xf32> to vector<1x128xf32>
    %27 = arith.mulf %24, %24 : vector<256x128xf32>
    %cst_8 = arith.constant dense<0.000000e+00> : vector<128xf32>
    %28 = vector.multi_reduction <add>, %27, %cst_8 [0] : vector<256x128xf32> to vector<128xf32>
    %29 = vector.shape_cast %28 : vector<128xf32> to vector<1x128xf32>
    %cst_9 = arith.constant 3.906250e-03 : f32
    %30 = vector.broadcast %cst_9 : f32 to vector<1x128xf32>
    %31 = arith.mulf %26, %30 : vector<1x128xf32>
    %cst_10 = arith.constant 3.906250e-03 : f32
    %32 = vector.broadcast %cst_10 : f32 to vector<1x128xf32>
    %33 = arith.mulf %29, %32 : vector<1x128xf32>
    %34 = arith.mulf %31, %31 : vector<1x128xf32>
    %35 = arith.subf %33, %34 : vector<1x128xf32>
    %cst_11 = arith.constant 0.000000e+00 : f32
    %36 = vector.broadcast %cst_11 : f32 to vector<1x128xf32>
    %37 = arith.maximumf %35, %36 : vector<1x128xf32>
    %38 = vector.broadcast %31 : vector<1x128xf32> to vector<256x128xf32>
    %39 = arith.subf %24, %38 : vector<256x128xf32>
    %cst_12 = arith.constant 9.99999974E-6 : f32
    %40 = vector.broadcast %cst_12 : f32 to vector<1x128xf32>
    %41 = arith.addf %37, %40 : vector<1x128xf32>
    %42 = math.rsqrt %41 : vector<1x128xf32>
    %43 = vector.broadcast %42 : vector<1x128xf32> to vector<256x128xf32>
    %44 = arith.mulf %39, %43 : vector<256x128xf32>
    %cst_13 = arith.constant 0.000000e+00 : f32
    %45 = vector.broadcast %cst_13 : f32 to vector<256x128xf32>
    %46 = arith.maximumf %44, %45 : vector<256x128xf32>
    %47 = vector.shape_cast %46 : vector<256x128xf32> to vector<16x16x128xf32>
    %48 = vector.extract_strided_slice %47 {offsets = [1, 0, 0], sizes = [1, 16, 128], strides = [1, 1, 1]} : vector<16x16x128xf32> to vector<1x16x128xf32>
    %49 = vector.extract_strided_slice %47 {offsets = [14, 0, 0], sizes = [1, 16, 128], strides = [1, 1, 1]} : vector<16x16x128xf32> to vector<1x16x128xf32>
    %50 = tpu.concatenate %48, %47, %49 in 0 : vector<1x16x128xf32>, vector<16x16x128xf32>, vector<1x16x128xf32> -> vector<18x16x128xf32>
    %51 = vector.extract_strided_slice %50 {offsets = [0, 1, 0], sizes = [18, 1, 128], strides = [1, 1, 1]} : vector<18x16x128xf32> to vector<18x1x128xf32>
    %52 = vector.extract_strided_slice %50 {offsets = [0, 14, 0], sizes = [18, 1, 128], strides = [1, 1, 1]} : vector<18x16x128xf32> to vector<18x1x128xf32>
    %53 = tpu.concatenate %51, %50, %52 in 1 : vector<18x1x128xf32>, vector<18x16x128xf32>, vector<18x1x128xf32> -> vector<18x18x128xf32>
    %54 = vector.extract_strided_slice %53 {offsets = [0, 0, 0], sizes = [16, 16, 128], strides = [1, 1, 1]} : vector<18x18x128xf32> to vector<16x16x128xf32>
    %55 = vector.extract_strided_slice %53 {offsets = [0, 1, 0], sizes = [16, 16, 128], strides = [1, 1, 1]} : vector<18x18x128xf32> to vector<16x16x128xf32>
    %56 = vector.extract_strided_slice %53 {offsets = [0, 2, 0], sizes = [16, 16, 128], strides = [1, 1, 1]} : vector<18x18x128xf32> to vector<16x16x128xf32>
    %57 = vector.extract_strided_slice %53 {offsets = [1, 0, 0], sizes = [16, 16, 128], strides = [1, 1, 1]} : vector<18x18x128xf32> to vector<16x16x128xf32>
    %58 = vector.extract_strided_slice %53 {offsets = [1, 1, 0], sizes = [16, 16, 128], strides = [1, 1, 1]} : vector<18x18x128xf32> to vector<16x16x128xf32>
    %59 = vector.extract_strided_slice %53 {offsets = [1, 2, 0], sizes = [16, 16, 128], strides = [1, 1, 1]} : vector<18x18x128xf32> to vector<16x16x128xf32>
    %60 = vector.extract_strided_slice %53 {offsets = [2, 0, 0], sizes = [16, 16, 128], strides = [1, 1, 1]} : vector<18x18x128xf32> to vector<16x16x128xf32>
    %61 = vector.extract_strided_slice %53 {offsets = [2, 1, 0], sizes = [16, 16, 128], strides = [1, 1, 1]} : vector<18x18x128xf32> to vector<16x16x128xf32>
    %62 = vector.extract_strided_slice %53 {offsets = [2, 2, 0], sizes = [16, 16, 128], strides = [1, 1, 1]} : vector<18x18x128xf32> to vector<16x16x128xf32>
    %63 = tpu.concatenate %54, %55, %56, %57, %58, %59, %60, %61, %62 in 2 : vector<16x16x128xf32>, vector<16x16x128xf32>, vector<16x16x128xf32>, vector<16x16x128xf32>, vector<16x16x128xf32>, vector<16x16x128xf32>, vector<16x16x128xf32>, vector<16x16x128xf32>, vector<16x16x128xf32> -> vector<16x16x1152xf32>
    %64 = vector.shape_cast %63 : vector<16x16x1152xf32> to vector<256x1152xf32>
    %65 = arith.truncf %64 : vector<256x1152xf32> to vector<256x1152xbf16>
    %c0_14 = arith.constant 0 : index
    %c0_15 = arith.constant 0 : index
    %66 = vector.load %arg4[%c0_14, %c0_15] : memref<1152x128xbf16, #tpu.memory_space<vmem>>, vector<1152x128xbf16>
    %cst_16 = arith.constant dense<0.000000e+00> : vector<256x128xf32>
    %67 = tpu.matmul %65, %66, %cst_16 {dimension_numbers = #tpu.dot_dimension_numbers<[1], [0], [0], [1], [0, 0, 1, 1], [], []>} : vector<256x1152xbf16>, vector<1152x128xbf16>, vector<256x128xf32> -> vector<256x128xf32>
    %c0_17 = arith.constant 0 : index
    %c0_18 = arith.constant 0 : index
    %68 = vector.load %arg5[%c0_17, %c0_18] : memref<1x128xf32, #tpu.memory_space<vmem>>, vector<1x128xf32>
    %69 = vector.broadcast %68 : vector<1x128xf32> to vector<256x128xf32>
    %70 = arith.addf %67, %69 : vector<256x128xf32>
    %cst_19 = arith.constant dense<0.000000e+00> : vector<128xf32>
    %71 = vector.multi_reduction <add>, %70, %cst_19 [0] : vector<256x128xf32> to vector<128xf32>
    %72 = vector.shape_cast %71 : vector<128xf32> to vector<1x128xf32>
    %73 = arith.mulf %70, %70 : vector<256x128xf32>
    %cst_20 = arith.constant dense<0.000000e+00> : vector<128xf32>
    %74 = vector.multi_reduction <add>, %73, %cst_20 [0] : vector<256x128xf32> to vector<128xf32>
    %75 = vector.shape_cast %74 : vector<128xf32> to vector<1x128xf32>
    %cst_21 = arith.constant 3.906250e-03 : f32
    %76 = vector.broadcast %cst_21 : f32 to vector<1x128xf32>
    %77 = arith.mulf %72, %76 : vector<1x128xf32>
    %cst_22 = arith.constant 3.906250e-03 : f32
    %78 = vector.broadcast %cst_22 : f32 to vector<1x128xf32>
    %79 = arith.mulf %75, %78 : vector<1x128xf32>
    %80 = arith.mulf %77, %77 : vector<1x128xf32>
    %81 = arith.subf %79, %80 : vector<1x128xf32>
    %cst_23 = arith.constant 0.000000e+00 : f32
    %82 = vector.broadcast %cst_23 : f32 to vector<1x128xf32>
    %83 = arith.maximumf %81, %82 : vector<1x128xf32>
    %84 = vector.broadcast %77 : vector<1x128xf32> to vector<256x128xf32>
    %85 = arith.subf %70, %84 : vector<256x128xf32>
    %cst_24 = arith.constant 9.99999974E-6 : f32
    %86 = vector.broadcast %cst_24 : f32 to vector<1x128xf32>
    %87 = arith.addf %83, %86 : vector<1x128xf32>
    %88 = math.rsqrt %87 : vector<1x128xf32>
    %89 = vector.broadcast %88 : vector<1x128xf32> to vector<256x128xf32>
    %90 = arith.mulf %85, %89 : vector<256x128xf32>
    %cst_25 = arith.constant dense<0.000000e+00> : vector<128xf32>
    %91 = vector.multi_reduction <add>, %90, %cst_25 [0] : vector<256x128xf32> to vector<128xf32>
    %92 = vector.shape_cast %91 : vector<128xf32> to vector<1x128xf32>
    %cst_26 = arith.constant 2.560000e+02 : f32
    %93 = vector.broadcast %cst_26 : f32 to vector<1x128xf32>
    %94 = arith.divf %92, %93 : vector<1x128xf32>
    %c0_27 = arith.constant 0 : index
    %c0_28 = arith.constant 0 : index
    %95 = vector.load %arg6[%c0_27, %c0_28] : memref<8x128xf32, #tpu.memory_space<vmem>>, vector<8x128xf32>
    %96 = vector.broadcast %94 : vector<1x128xf32> to vector<8x128xf32>
    %97 = arith.mulf %95, %96 : vector<8x128xf32>
    %cst_29 = arith.constant dense<0.000000e+00> : vector<8xf32>
    %98 = vector.multi_reduction <add>, %97, %cst_29 [1] : vector<8x128xf32> to vector<8xf32>
    %99 = vector.shape_cast %98 : vector<8xf32> to vector<8x1xf32>
    %cst_30 = arith.constant 0.000000e+00 : f32
    %100 = vector.broadcast %cst_30 : f32 to vector<8x1xf32>
    %101 = arith.maximumf %99, %100 : vector<8x1xf32>
    %c0_31 = arith.constant 0 : index
    %c0_32 = arith.constant 0 : index
    %102 = vector.load %arg7[%c0_31, %c0_32] : memref<8x128xf32, #tpu.memory_space<vmem>>, vector<8x128xf32>
    %103 = vector.broadcast %101 : vector<8x1xf32> to vector<8x128xf32>
    %104 = arith.mulf %102, %103 : vector<8x128xf32>
    %cst_33 = arith.constant dense<0.000000e+00> : vector<128xf32>
    %105 = vector.multi_reduction <add>, %104, %cst_33 [0] : vector<8x128xf32> to vector<128xf32>
    %106 = vector.shape_cast %105 : vector<128xf32> to vector<1x128xf32>
    %107 = arith.negf %106 : vector<1x128xf32>
    %108 = math.exp %107 : vector<1x128xf32>
    %cst_34 = arith.constant 1.000000e+00 : f32
    %109 = vector.broadcast %cst_34 : f32 to vector<1x128xf32>
    %110 = arith.addf %109, %108 : vector<1x128xf32>
    %111 = arith.divf %109, %110 : vector<1x128xf32>
    %112 = vector.broadcast %111 : vector<1x128xf32> to vector<256x128xf32>
    %113 = arith.mulf %90, %112 : vector<256x128xf32>
    %c0_35 = arith.constant 0 : index
    %c0_36 = arith.constant 0 : index
    %c0_37 = arith.constant 0 : index
    %c0_38 = arith.constant 0 : index
    %114 = vector.load %arg1[%c0_35, %c0_36, %c0_37, %c0_38] : memref<1x16x16x128xf32, #tpu.memory_space<vmem>>, vector<1x16x16x128xf32>
    %115 = vector.shape_cast %114 : vector<1x16x16x128xf32> to vector<16x16x128xf32>
    %116 = vector.shape_cast %113 : vector<256x128xf32> to vector<16x16x128xf32>
    %117 = arith.addf %115, %116 : vector<16x16x128xf32>
    %c0_39 = arith.constant 0 : index
    %c0_40 = arith.constant 0 : index
    %c0_41 = arith.constant 0 : index
    %c0_42 = arith.constant 0 : index
    %118 = vector.load %arg8[%c0_39, %c0_40, %c0_41, %c0_42] : memref<1x16x16x128xf32, #tpu.memory_space<vmem>>, vector<1x16x16x128xf32>
    %119 = vector.shape_cast %118 : vector<1x16x16x128xf32> to vector<16x16x128xf32>
    %120 = vector.shape_cast %117 : vector<16x16x128xf32> to vector<1x16x16x128xf32>
    tpu.vector_store %arg8[%c0_39, %c0_40, %c0_41, %c0_42], %120 {strides = array<i32>} : memref<1x16x16x128xf32, #tpu.memory_space<vmem>>, vector<1x16x16x128xf32>,
    return
  }
  func.func @transform_0(%arg0: i32) -> (i32, i32, i32, i32) {
    %c0_i32 = arith.constant 0 : i32
    %c0_i32_0 = arith.constant 0 : i32
    %c0_i32_1 = arith.constant 0 : i32
    %c0_i32_2 = arith.constant 0 : i32
    return %arg0, %c0_i32, %c0_i32_0, %c0_i32_1 : i32, i32, i32, i32
  }
  func.func @transform_1(%arg0: i32) -> (i32, i32) {
    %c0_i32 = arith.constant 0 : i32
    %c0_i32_0 = arith.constant 0 : i32
    %c0_i32_1 = arith.constant 0 : i32
    return %c0_i32, %c0_i32_0 : i32, i32
  }
  func.func @transform_2(%arg0: i32) -> (i32, i32) {
    %c0_i32 = arith.constant 0 : i32
    %c0_i32_0 = arith.constant 0 : i32
    %c0_i32_1 = arith.constant 0 : i32
    return %c0_i32, %c0_i32_0 : i32, i32
  }
  func.func @transform_3(%arg0: i32) -> (i32, i32) {
    %c0_i32 = arith.constant 0 : i32
    %c0_i32_0 = arith.constant 0 : i32
    %c0_i32_1 = arith.constant 0 : i32
    return %c0_i32, %c0_i32_0 : i32, i32
  }
  func.func @transform_4(%arg0: i32) -> (i32, i32) {
    %c0_i32 = arith.constant 0 : i32
    %c0_i32_0 = arith.constant 0 : i32
    %c0_i32_1 = arith.constant 0 : i32
    return %c0_i32, %c0_i32_0 : i32, i32
  }
  func.func @transform_5(%arg0: i32) -> (i32, i32) {
    %c0_i32 = arith.constant 0 : i32
    %c0_i32_0 = arith.constant 0 : i32
    %c0_i32_1 = arith.constant 0 : i32
    return %c0_i32, %c0_i32_0 : i32, i32
  }
  func.func @transform_6(%arg0: i32) -> (i32, i32) {
    %c0_i32 = arith.constant 0 : i32
    %c0_i32_0 = arith.constant 0 : i32
    %c0_i32_1 = arith.constant 0 : i32
    return %c0_i32, %c0_i32_0 : i32, i32
  }
  func.func @transform_7(%arg0: i32) -> (i32, i32, i32, i32) {
    %c0_i32 = arith.constant 0 : i32
    %c0_i32_0 = arith.constant 0 : i32
    %c0_i32_1 = arith.constant 0 : i32
    %c0_i32_2 = arith.constant 0 : i32
    return %arg0, %c0_i32, %c0_i32_0, %c0_i32_1 : i32, i32, i32, i32
  }
}

</mosaic_0001>

<llo_original>
// kernel: tpu_custom_call.1
$region0: #{tpu_custom_call.1}
  #allocation0 [shape = 'u32[]', space=smem, size = 0x4, offset = 0x4, fixed_abs, tag = 'smem constant byte address 0x4 - core index']
  #allocation1 [shape = 'u32[144,128]{1,0:T(1,128)}', space=vmem, size = 0x12000, scoped, tag = 'internal scratch']
  %s0 = inlined_call_operand.hbm [shape: f32[2,16,16,128], index: 0, kind: input, shape index: {}]
  %s1 = inlined_call_operand.hbm [shape: bf16[1152,128], index: 1, kind: input, shape index: {}]
  %s2 = inlined_call_operand.vmem [shape: f32[1,128], index: 2, kind: input, shape index: {}]
  %s3 = inlined_call_operand.hbm [shape: bf16[1152,128], index: 3, kind: input, shape index: {}]
  %s4 = inlined_call_operand.vmem [shape: f32[1,128], index: 4, kind: input, shape index: {}]
  %s5 = inlined_call_operand.vmem [shape: f32[8,128], index: 5, kind: input, shape index: {}]
  %s6 = inlined_call_operand.vmem [shape: f32[8,128], index: 6, kind: input, shape index: {}]
  %s7 = inlined_call_operand.hbm [shape: f32[2,16,16,128], index: 7, kind: output, shape index: {}]
  %s8 = sld [smem:[#allocation0]]
  $region73: #{tpu_custom_call.1} parent=0
    _
  %s10 = ssub.s32 1, %s8
  %s11 = scalar_select 0, %s10, %s8
  $region1: #{tpu_custom_call.1} parent=0
    #allocation2 [shape = 'u8[262144]{0}', space=vmem, size = 0x40000, scoped, tag = 'input window, operand 0']
    #allocation3 [shape = 's32[2]{0}', space=sflag, size = 0x8, scoped, tag = 'scoped memory for tpu_custom_call.1']
    #allocation4 [shape = 's32[2]{0}', space=sflag, size = 0x8, scoped, tag = 'scoped memory for tpu_custom_call.1']
    #allocation5 [shape = 'u8[294912]{0}', space=vmem, size = 0x48000, scoped, tag = 'input window, operand 1, single buffered']
    #allocation6 [shape = 's32[1]{0}', space=sflag, size = 0x4, scoped, tag = 'scoped memory for tpu_custom_call.1']
    #allocation7 [shape = 'u8[294912]{0}', space=vmem, size = 0x48000, scoped, tag = 'input window, operand 3, single buffered']
    #allocation8 [shape = 'u8[262144]{0}', space=vmem, size = 0x40000, scoped, tag = 'output window, operand 0']
    %12 = vsyncpa [#allocation3], 0
    %s13 = scalar_lea.sflag [#allocation3], 1
    %14 = vsyncpa %s13, 0
    %15 = vsyncpa [#allocation6], 0
    %16 = vsyncpa [#allocation4], 0
    %s17 = scalar_lea.sflag [#allocation4], 1
    %18 = vsyncpa %s17, 0
    loop: start=0, step=1, limit=4
    $region2: #{tpu_custom_call.1} parent=1 // loop_pre_header
      _
    $region3: #{tpu_custom_call.1} parent=1 // loop_header
      %s20 = sphi 0, %s24
      %p21 = scmp.ge.s32.totalorder %s20, 4
      %s30 = sphi 0, %s32
      %s33 = sphi 0, %s30
      %s34 = sphi 0, %s33
      %s50 = sphi 0, %s34
      %s54 = sphi 0, %s54
      %s56 = sphi 0, %s54
      %s57 = sphi 0, %s56
      %s71 = sphi 0, %s57
      %s75 = sphi 0, %s75
      %s77 = sphi 0, %s75
      %s78 = sphi 0, %s77
      %s92 = sphi 0, %s78
      %s96 = sphi 0, %s96
      %s98 = sphi 0, %s96
      %s99 = sphi 0, %s98
      %s113 = sphi 0, %s99
      %s117 = sphi 0, %s117
      %s119 = sphi 0, %s117
      %s120 = sphi 0, %s119
      %s134 = sphi 0, %s120
      %s138 = sphi 0, %s138
      %s140 = sphi 0, %s138
      %s141 = sphi 0, %s140
      %s155 = sphi 0, %s141
      %s159 = sphi 0, %s159
      %s161 = sphi 0, %s159
      %s162 = sphi 0, %s161
      %s176 = sphi 0, %s162
      %s182 = sphi 0, %s184
      %s185 = sphi 0, %s182
      %s186 = sphi 0, %s185
      %s202 = sphi 0, %s186
    $region4: #{tpu_custom_call.1} parent=1 // loop_header_branch
      %23 = sbr.rel (%p21) target = $region8
    $region5: #{tpu_custom_call.1} parent=1 // loop_body
      %s25 = ssub.s32 %s20, 1
      %s26 = ssub.s32 %s20, 2
      %s27 = sadd.s32 %s20, 1
      %s28 = ssub.s32 %s20, %s27
      %p29 = scmp.eq.s32.totalorder %s28, 0
      %s31 = sadd.s32 %s30, 1
      %s32 = scalar_select %p29, %s30, %s31
      %p35 = pneg %p29
      %p36 = scmp.eq.s32.totalorder %s20, 1
      %p37 = por %p35, %p36
      %p38 = scmp.ne.s32.totalorder %s30, %s33
      %p39 = scmp.eq.s32.totalorder %s20, 0
      %p40 = por %p38, %p39
      %p41 = scmp.ne.s32.totalorder %s30, %s33
      %p42 = scmp.eq.s32.totalorder %s25, 1
      %p43 = por %p41, %p42
      %p44 = scmp.ne.s32.totalorder %s33, %s34
      %p45 = scmp.eq.s32.totalorder %s25, 0
      %p46 = por %p44, %p45
      %p47 = scmp.ne.s32.totalorder %s33, %s34
      %p48 = scmp.eq.s32.totalorder %s26, 1
      %p49 = por %p47, %p48
      %p51 = scmp.ne.s32.totalorder %s34, %s50
      %p52 = scmp.eq.s32.totalorder %s26, 0
      %p53 = por %p51, %p52
      %s55 = sadd.s32 %s54, 1
      %p58 = scmp.eq.s32.totalorder %s20, 1
      %p59 = scmp.ne.s32.totalorder %s54, %s56
      %p60 = scmp.eq.s32.totalorder %s20, 0
      %p61 = por %p59, %p60
      %p62 = scmp.ne.s32.totalorder %s54, %s56
      %p63 = scmp.eq.s32.totalorder %s25, 1
      %p64 = por %p62, %p63
      %p65 = scmp.ne.s32.totalorder %s56, %s57
      %p66 = scmp.eq.s32.totalorder %s25, 0
      %p67 = por %p65, %p66
      %p68 = scmp.ne.s32.totalorder %s56, %s57
      %p69 = scmp.eq.s32.totalorder %s26, 1
      %p70 = por %p68, %p69
      %p72 = scmp.ne.s32.totalorder %s57, %s71
      %p73 = scmp.eq.s32.totalorder %s26, 0
      %p74 = por %p72, %p73
      %s76 = sadd.s32 %s75, 1
      %p79 = scmp.eq.s32.totalorder %s20, 1
      %p80 = scmp.ne.s32.totalorder %s75, %s77
      %p81 = scmp.eq.s32.totalorder %s20, 0
      %p82 = por %p80, %p81
      %p83 = scmp.ne.s32.totalorder %s75, %s77
      %p84 = scmp.eq.s32.totalorder %s25, 1
      %p85 = por %p83, %p84
      %p86 = scmp.ne.s32.totalorder %s77, %s78
      %p87 = scmp.eq.s32.totalorder %s25, 0
      %p88 = por %p86, %p87
      %p89 = scmp.ne.s32.totalorder %s77, %s78
      %p90 = scmp.eq.s32.totalorder %s26, 1
      %p91 = por %p89, %p90
      %p93 = scmp.ne.s32.totalorder %s78, %s92
      %p94 = scmp.eq.s32.totalorder %s26, 0
      %p95 = por %p93, %p94
      %s97 = sadd.s32 %s96, 1
      %p100 = scmp.eq.s32.totalorder %s20, 1
      %p101 = scmp.ne.s32.totalorder %s96, %s98
      %p102 = scmp.eq.s32.totalorder %s20, 0
      %p103 = por %p101, %p102
      %p104 = scmp.ne.s32.totalorder %s96, %s98
      %p105 = scmp.eq.s32.totalorder %s25, 1
      %p106 = por %p104, %p105
      %p107 = scmp.ne.s32.totalorder %s98, %s99
      %p108 = scmp.eq.s32.totalorder %s25, 0
      %p109 = por %p107, %p108
      %p110 = scmp.ne.s32.totalorder %s98, %s99
      %p111 = scmp.eq.s32.totalorder %s26, 1
      %p112 = por %p110, %p111
      %p114 = scmp.ne.s32.totalorder %s99, %s113
      %p115 = scmp.eq.s32.totalorder %s26, 0
      %p116 = por %p114, %p115
      %s118 = sadd.s32 %s117, 1
      %p121 = scmp.eq.s32.totalorder %s20, 1
      %p122 = scmp.ne.s32.totalorder %s117, %s119
      %p123 = scmp.eq.s32.totalorder %s20, 0
      %p124 = por %p122, %p123
      %p125 = scmp.ne.s32.totalorder %s117, %s119
      %p126 = scmp.eq.s32.totalorder %s25, 1
      %p127 = por %p125, %p126
      %p128 = scmp.ne.s32.totalorder %s119, %s120
      %p129 = scmp.eq.s32.totalorder %s25, 0
      %p130 = por %p128, %p129
      %p131 = scmp.ne.s32.totalorder %s119, %s120
      %p132 = scmp.eq.s32.totalorder %s26, 1
      %p133 = por %p131, %p132
      %p135 = scmp.ne.s32.totalorder %s120, %s134
      %p136 = scmp.eq.s32.totalorder %s26, 0
      %p137 = por %p135, %p136
      %s139 = sadd.s32 %s138, 1
      %p142 = scmp.eq.s32.totalorder %s20, 1
      %p143 = scmp.ne.s32.totalorder %s138, %s140
      %p144 = scmp.eq.s32.totalorder %s20, 0
      %p145 = por %p143, %p144
      %p146 = scmp.ne.s32.totalorder %s138, %s140
      %p147 = scmp.eq.s32.totalorder %s25, 1
      %p148 = por %p146, %p147
      %p149 = scmp.ne.s32.totalorder %s140, %s141
      %p150 = scmp.eq.s32.totalorder %s25, 0
      %p151 = por %p149, %p150
      %p152 = scmp.ne.s32.totalorder %s140, %s141
      %p153 = scmp.eq.s32.totalorder %s26, 1
      %p154 = por %p152, %p153
      %p156 = scmp.ne.s32.totalorder %s141, %s155
      %p157 = scmp.eq.s32.totalorder %s26, 0
      %p158 = por %p156, %p157
      %s160 = sadd.s32 %s159, 1
      %p163 = scmp.eq.s32.totalorder %s20, 1
      %p164 = scmp.ne.s32.totalorder %s159, %s161
      %p165 = scmp.eq.s32.totalorder %s20, 0
      %p166 = por %p164, %p165
      %p167 = scmp.ne.s32.totalorder %s159, %s161
      %p168 = scmp.eq.s32.totalorder %s25, 1
      %p169 = por %p167, %p168
      %p170 = scmp.ne.s32.totalorder %s161, %s162
      %p171 = scmp.eq.s32.totalorder %s25, 0
      %p172 = por %p170, %p171
      %p173 = scmp.ne.s32.totalorder %s161, %s162
      %p174 = scmp.eq.s32.totalorder %s26, 1
      %p175 = por %p173, %p174
      %p177 = scmp.ne.s32.totalorder %s162, %s176
      %p178 = scmp.eq.s32.totalorder %s26, 0
      %p179 = por %p177, %p178
      %s180 = ssub.s32 %s20, %s27
      %p181 = scmp.eq.s32.totalorder %s180, 0
      %s183 = sadd.s32 %s182, 1
      %s184 = scalar_select %p181, %s182, %s183
      %p187 = pneg %p181
      %p188 = scmp.eq.s32.totalorder %s20, 1
      %p189 = por %p187, %p188
      %p190 = scmp.ne.s32.totalorder %s182, %s185
      %p191 = scmp.eq.s32.totalorder %s20, 0
      %p192 = por %p190, %p191
      %p193 = scmp.ne.s32.totalorder %s182, %s185
      %p194 = scmp.eq.s32.totalorder %s25, 1
      %p195 = por %p193, %p194
      %p196 = scmp.ne.s32.totalorder %s185, %s186
      %p197 = scmp.eq.s32.totalorder %s25, 0
      %p198 = por %p196, %p197
      %p199 = scmp.ne.s32.totalorder %s185, %s186
      %p200 = scmp.eq.s32.totalorder %s26, 1
      %p201 = por %p199, %p200
      %p203 = scmp.ne.s32.totalorder %s186, %s202
      %p204 = scmp.eq.s32.totalorder %s26, 0
      %p205 = por %p203, %p204
      %p206 = scmp.le.s32.totalorder 1, %s20
      %p207 = scmp.lt.s32.totalorder %s20, 3
      %p208 = pnand %p206, %p207
      %p209 = pneg %p208
      // Predicated region
      $region9: #{tpu_custom_call.1} parent=5 // pred_check
        _
      $region10: #{tpu_custom_call.1} parent=5 // pred_check_branch
        %211 = sbr.rel (%p208) target = $region12
      $region11: #{tpu_custom_call.1} parent=5 // pred_region
        %s212 = ssub.s32 %s20, 1
        // Predicated region
        $region13: #{tpu_custom_call.1} parent=11 // pred_check
          %p213 = pneg %p67
        $region14: #{tpu_custom_call.1} parent=11 // pred_check_branch
          %215 = sbr.rel (%p213) target = $region16
        $region15: #{tpu_custom_call.1} parent=11 // pred_region
          %s217 = ssub.s32 9216, 9216
          %218 = vsyncadd [#allocation6], %s217
          %s219 = sshll.u32 [#allocation5], 4
          %s220 = int_to_ptr.vmem [resolvable:$true] %s219
          %225 = dma.hbm_to_vmem [thread:$0]  %s1, 9216, %s220, [#allocation6], 64, 64, 4
        $region16: #{tpu_custom_call.1} parent=11 // pred_fallthru
          _
        // Predicated region
        $region17: #{tpu_custom_call.1} parent=11 // pred_check
          %p226 = pneg %p88
        $region18: #{tpu_custom_call.1} parent=11 // pred_check_branch
          %228 = sbr.rel (%p226) target = $region20
        $region19: #{tpu_custom_call.1} parent=11 // pred_region
          _
        $region20: #{tpu_custom_call.1} parent=11 // pred_fallthru
          _
        // Predicated region
        $region21: #{tpu_custom_call.1} parent=11 // pred_check
          %p229 = pneg %p109
        $region22: #{tpu_custom_call.1} parent=11 // pred_check_branch
          %231 = sbr.rel (%p229) target = $region24
        $region23: #{tpu_custom_call.1} parent=11 // pred_region
          %s233 = ssub.s32 9216, 9216
          %234 = vsyncadd [#allocation6], %s233
          %s235 = sshll.u32 [#allocation7], 4
          %s236 = int_to_ptr.vmem [resolvable:$true] %s235
          %241 = dma.hbm_to_vmem [thread:$0]  %s3, 9216, %s236, [#allocation6], 64, 64, 4
        $region24: #{tpu_custom_call.1} parent=11 // pred_fallthru
          _
        // Predicated region
        $region25: #{tpu_custom_call.1} parent=11 // pred_check
          %p242 = pneg %p130
        $region26: #{tpu_custom_call.1} parent=11 // pred_check_branch
          %244 = sbr.rel (%p242) target = $region28
        $region27: #{tpu_custom_call.1} parent=11 // pred_region
          _
        $region28: #{tpu_custom_call.1} parent=11 // pred_fallthru
          _
        // Predicated region
        $region29: #{tpu_custom_call.1} parent=11 // pred_check
          %p245 = pneg %p151
        $region30: #{tpu_custom_call.1} parent=11 // pred_check_branch
          %247 = sbr.rel (%p245) target = $region32
        $region31: #{tpu_custom_call.1} parent=11 // pred_region
          _
        $region32: #{tpu_custom_call.1} parent=11 // pred_fallthru
          _
        // Predicated region
        $region33: #{tpu_custom_call.1} parent=11 // pred_check
          %p248 = pneg %p172
        $region34: #{tpu_custom_call.1} parent=11 // pred_check_branch
          %250 = sbr.rel (%p248) target = $region36
        $region35: #{tpu_custom_call.1} parent=11 // pred_region
          _
        $region36: #{tpu_custom_call.1} parent=11 // pred_fallthru
          _
      $region12: #{tpu_custom_call.1} parent=5 // pred_fallthru
        _
      %p251 = scmp.lt.s32.totalorder %s20, 2
      // Predicated region
      $region37: #{tpu_custom_call.1} parent=5 // pred_check
        %p252 = pneg %p251
      $region38: #{tpu_custom_call.1} parent=5 // pred_check_branch
        %254 = sbr.rel (%p252) target = $region40
      $region39: #{tpu_custom_call.1} parent=5 // pred_region
        // Predicated region
        $region41: #{tpu_custom_call.1} parent=39 // pred_check
          %p255 = pneg %p40
        $region42: #{tpu_custom_call.1} parent=39 // pred_check_branch
          %257 = sbr.rel (%p255) target = $region44
        $region43: #{tpu_custom_call.1} parent=39 // pred_region
          %s258 = sand.u32 %s30, 1
          %s259 = scalar_lea.sflag [#allocation3], %s258
          %s260 = sand.u32 %s30, 1
          %s261 = smul.addr %s260, 256
          %s262 = scalar_lea.vmem [#allocation2], %s261
          %s264 = ssub.s32 4096, 4096
          %265 = vsyncadd %s259, %s264
          %s266 = smul.addr %s20, 32
          %s267 = smul.addr %s266, 128
          %s268 = scalar_lea.hbm %s0, %s267
          %s269 = sshll.u32 %s262, 4
          %s270 = int_to_ptr.vmem [resolvable:$true] %s269
          %275 = dma.hbm_to_vmem [thread:$0]  %s268, 4096, %s270, %s259, 128, 128, 8
        $region44: #{tpu_custom_call.1} parent=39 // pred_fallthru
          _
      $region40: #{tpu_custom_call.1} parent=5 // pred_fallthru
        _
      %p276 = scmp.le.s32.totalorder 1, %s20
      %p277 = scmp.lt.s32.totalorder %s20, 3
      %p278 = pnand %p276, %p277
      %p279 = pneg %p278
      // Predicated region
      $region45: #{tpu_custom_call.1} parent=5 // pred_check
        _
      $region46: #{tpu_custom_call.1} parent=5 // pred_check_branch
        %281 = sbr.rel (%p278) target = $region48
      $region47: #{tpu_custom_call.1} parent=5 // pred_region
        %s282 = ssub.s32 %s20, 1
        %s283 = sand.u32 %s33, 1
        %s284 = scalar_lea.sflag [#allocation3], %s283
        %s285 = sand.u32 %s33, 1
        %s286 = smul.addr %s285, 256
        %s287 = scalar_lea.vmem [#allocation2], %s286
        // Predicated region
        $region49: #{tpu_custom_call.1} parent=47 // pred_check
          %p288 = pneg %p46
        $region50: #{tpu_custom_call.1} parent=47 // pred_check_branch
          %290 = sbr.rel (%p288) target = $region52
        $region51: #{tpu_custom_call.1} parent=47 // pred_region
          %291 = dma.done %s284, 4096
        $region52: #{tpu_custom_call.1} parent=47 // pred_fallthru
          _
        // Predicated region
        $region53: #{tpu_custom_call.1} parent=47 // pred_check
          %p292 = pneg %p67
        $region54: #{tpu_custom_call.1} parent=47 // pred_check_branch
          %294 = sbr.rel (%p292) target = $region56
        $region55: #{tpu_custom_call.1} parent=47 // pred_region
          %295 = dma.done [#allocation6], 9216
        $region56: #{tpu_custom_call.1} parent=47 // pred_fallthru
          _
        // Predicated region
        $region57: #{tpu_custom_call.1} parent=47 // pred_check
          %p296 = pneg %p109
        $region58: #{tpu_custom_call.1} parent=47 // pred_check_branch
          %298 = sbr.rel (%p296) target = $region60
        $region59: #{tpu_custom_call.1} parent=47 // pred_region
          %299 = dma.done [#allocation6], 9216
        $region60: #{tpu_custom_call.1} parent=47 // pred_fallthru
          _
        %s300 = sand.u32 %s33, 1
        %s301 = scalar_lea.sflag [#allocation3], %s300
        %s302 = sand.u32 %s33, 1
        %s303 = smul.addr %s302, 256
        %s304 = scalar_lea.vmem [#allocation2], %s303
        %p305 = pneg %p46
        %p306 = pneg %p43
        %p307 = pneg %p67
        %p308 = pneg %p64
        %p309 = pneg %p88
        %p310 = pneg %p85
        %p311 = pneg %p109
        %p312 = pneg %p106
        %p313 = pneg %p130
        %p314 = pneg %p127
        %p315 = pneg %p151
        %p316 = pneg %p148
        %p317 = pneg %p172
        %p318 = pneg %p169
        %p319 = pneg %p198
        %p320 = pneg %p195
        %s321 = sand.u32 %s185, 1
        %s322 = scalar_lea.sflag [#allocation4], %s321
        %s323 = sand.u32 %s185, 1
        %s324 = smul.addr %s323, 256
        %s325 = scalar_lea.vmem [#allocation8], %s324
        %v327 = vld [vmem:[%s287] sm:$0xff]
        %v328 = vld [vmem:[%s287 + $0x8] sm:$0xff]
        %v329 = vld [vmem:[%s287 + $0x10] sm:$0xff]
        %v330 = vld [vmem:[%s287 + $0x18] sm:$0xff]
        %v331 = vld [vmem:[%s287 + $0x20] sm:$0xff]
        %v332 = vld [vmem:[%s287 + $0x28] sm:$0xff]
        %v333 = vld [vmem:[%s287 + $0x30] sm:$0xff]
        %v334 = vld [vmem:[%s287 + $0x38] sm:$0xff]
        %v335 = vld [vmem:[%s287 + $0x40] sm:$0xff]
        %v336 = vld [vmem:[%s287 + $0x48] sm:$0xff]
        %v337 = vld [vmem:[%s287 + $0x50] sm:$0xff]
        %v338 = vld [vmem:[%s287 + $0x58] sm:$0xff]
        %v339 = vld [vmem:[%s287 + $0x60] sm:$0xff]
        %v340 = vld [vmem:[%s287 + $0x68] sm:$0xff]
        %v341 = vld [vmem:[%s287 + $0x70] sm:$0xff]
        %v342 = vld [vmem:[%s287 + $0x78] sm:$0xff]
        %v343 = vld [vmem:[%s287 + $0x80] sm:$0xff]
        %v344 = vld [vmem:[%s287 + $0x88] sm:$0xff]
        %v345 = vld [vmem:[%s287 + $0x90] sm:$0xff]
        %v346 = vld [vmem:[%s287 + $0x98] sm:$0xff]
        %v347 = vld [vmem:[%s287 + $0xa0] sm:$0xff]
        %v348 = vld [vmem:[%s287 + $0xa8] sm:$0xff]
        %v349 = vld [vmem:[%s287 + $0xb0] sm:$0xff]
        %v350 = vld [vmem:[%s287 + $0xb8] sm:$0xff]
        %v351 = vld [vmem:[%s287 + $0xc0] sm:$0xff]
        %v352 = vld [vmem:[%s287 + $0xc8] sm:$0xff]
        %v353 = vld [vmem:[%s287 + $0xd0] sm:$0xff]
        %v354 = vld [vmem:[%s287 + $0xd8] sm:$0xff]
        %v355 = vld [vmem:[%s287 + $0xe0] sm:$0xff]
        %v356 = vld [vmem:[%s287 + $0xe8] sm:$0xff]
        %v357 = vld [vmem:[%s287 + $0xf0] sm:$0xff]
        %v358 = vld [vmem:[%s287 + $0xf8] sm:$0xff]
        %v375 = vrot.slane %v329, 1
        %v376 = vrot.slane %v327, 1
        %v377 = vrot.slane %v331, 1
        %v378 = vrot.slane %v333, 1
        %v379 = vrot.slane %v335, 1
        %v380 = vrot.slane %v337, 1
        %v381 = vrot.slane %v339, 1
        %v382 = vrot.slane %v341, 1
        %v383 = vrot.slane %v343, 1
        %v384 = vrot.slane %v345, 1
        %v385 = vrot.slane %v347, 1
        %v386 = vrot.slane %v349, 1
        %v387 = vrot.slane %v351, 1
        %v388 = vrot.slane %v353, 1
        %v389 = vrot.slane %v355, 1
        %v390 = vrot.slane %v357, 1
        %vm423 = vcmask 1040384
        %v424 = vrot.slane %v329, 7
        %v425 = vrot.slane %v330, 7
        %v426 = vsel %vm423, %v424, %v425
        %v427 = vrot.slane %v327, 7
        %v428 = vrot.slane %v328, 7
        %v429 = vsel %vm423, %v427, %v428
        %v430 = vrot.slane %v331, 7
        %v431 = vrot.slane %v332, 7
        %v432 = vsel %vm423, %v430, %v431
        %v433 = vrot.slane %v333, 7
        %v434 = vrot.slane %v334, 7
        %v435 = vsel %vm423, %v433, %v434
        %v436 = vrot.slane %v335, 7
        %v437 = vrot.slane %v336, 7
        %v438 = vsel %vm423, %v436, %v437
        %v439 = vrot.slane %v337, 7
        %v440 = vrot.slane %v338, 7
        %v441 = vsel %vm423, %v439, %v440
        %v442 = vrot.slane %v339, 7
        %v443 = vrot.slane %v340, 7
        %v444 = vsel %vm423, %v442, %v443
        %v445 = vrot.slane %v341, 7
        %v446 = vrot.slane %v342, 7
        %v447 = vsel %vm423, %v445, %v446
        %v448 = vrot.slane %v343, 7
        %v449 = vrot.slane %v344, 7
        %v450 = vsel %vm423, %v448, %v449
        %v451 = vrot.slane %v345, 7
        %v452 = vrot.slane %v346, 7
        %v453 = vsel %vm423, %v451, %v452
        %v454 = vrot.slane %v347, 7
        %v455 = vrot.slane %v348, 7
        %v456 = vsel %vm423, %v454, %v455
        %v457 = vrot.slane %v349, 7
        %v458 = vrot.slane %v350, 7
        %v459 = vsel %vm423, %v457, %v458
        %v460 = vrot.slane %v351, 7
        %v461 = vrot.slane %v352, 7
        %v462 = vsel %vm423, %v460, %v461
        %v463 = vrot.slane %v353, 7
        %v464 = vrot.slane %v354, 7
        %v465 = vsel %vm423, %v463, %v464
        %v466 = vrot.slane %v355, 7
        %v467 = vrot.slane %v356, 7
        %v468 = vsel %vm423, %v466, %v467
        %v469 = vrot.slane %v357, 7
        %v470 = vrot.slane %v358, 7
        %v471 = vsel %vm423, %v469, %v470
        %v520 = vrot.slane %v330, 5
        %v521 = vrot.slane %v328, 5
        %v522 = vrot.slane %v332, 5
        %v523 = vrot.slane %v334, 5
        %v524 = vrot.slane %v336, 5
        %v525 = vrot.slane %v338, 5
        %v526 = vrot.slane %v340, 5
        %v527 = vrot.slane %v342, 5
        %v528 = vrot.slane %v344, 5
        %v529 = vrot.slane %v346, 5
        %v530 = vrot.slane %v348, 5
        %v531 = vrot.slane %v350, 5
        %v532 = vrot.slane %v352, 5
        %v533 = vrot.slane %v354, 5
        %v534 = vrot.slane %v356, 5
        %v535 = vrot.slane %v358, 5
        %v552 = vsel %vm423, %v375, %v424
        %v553 = vsel %vm423, %v376, %v427
        %v554 = vsel %vm423, %v377, %v430
        %v555 = vsel %vm423, %v378, %v433
        %v556 = vsel %vm423, %v379, %v436
        %v557 = vsel %vm423, %v380, %v439
        %v558 = vsel %vm423, %v381, %v442
        %v559 = vsel %vm423, %v382, %v445
        %v560 = vsel %vm423, %v383, %v448
        %v561 = vsel %vm423, %v384, %v451
        %v562 = vsel %vm423, %v385, %v454
        %v563 = vsel %vm423, %v386, %v457
        %v564 = vsel %vm423, %v387, %v460
        %v565 = vsel %vm423, %v388, %v463
        %v566 = vsel %vm423, %v389, %v466
        %v567 = vsel %vm423, %v390, %v469
        %v568 = vsel %vm423, %v425, %v520
        %v569 = vsel %vm423, %v428, %v521
        %v570 = vsel %vm423, %v431, %v522
        %v571 = vsel %vm423, %v434, %v523
        %v572 = vsel %vm423, %v437, %v524
        %v573 = vsel %vm423, %v440, %v525
        %v574 = vsel %vm423, %v443, %v526
        %v575 = vsel %vm423, %v446, %v527
        %v576 = vsel %vm423, %v449, %v528
        %v577 = vsel %vm423, %v452, %v529
        %v578 = vsel %vm423, %v455, %v530
        %v579 = vsel %vm423, %v458, %v531
        %v580 = vsel %vm423, %v461, %v532
        %v581 = vsel %vm423, %v464, %v533
        %v582 = vsel %vm423, %v467, %v534
        %v583 = vsel %vm423, %v470, %v535
        %vm614 = vcmask 1046528
        %v615 = vrot.slane %v552, 1
        %v616 = vrot.slane %v426, 1
        %v617 = vsel %vm614, %v615, %v616
        %v618 = vrot.slane %v568, 1
        %v619 = vsel %vm614, %v616, %v618
        %v620 = vrot.slane %v553, 1
        %v621 = vrot.slane %v429, 1
        %v622 = vsel %vm614, %v620, %v621
        %v623 = vrot.slane %v569, 1
        %v624 = vsel %vm614, %v621, %v623
        %v625 = vrot.slane %v554, 1
        %v626 = vrot.slane %v432, 1
        %v627 = vsel %vm614, %v625, %v626
        %v628 = vrot.slane %v570, 1
        %v629 = vsel %vm614, %v626, %v628
        %v630 = vrot.slane %v555, 1
        %v631 = vrot.slane %v435, 1
        %v632 = vsel %vm614, %v630, %v631
        %v633 = vrot.slane %v571, 1
        %v634 = vsel %vm614, %v631, %v633
        %v635 = vrot.slane %v556, 1
        %v636 = vrot.slane %v438, 1
        %v637 = vsel %vm614, %v635, %v636
        %v638 = vrot.slane %v572, 1
        %v639 = vsel %vm614, %v636, %v638
        %v640 = vrot.slane %v557, 1
        %v641 = vrot.slane %v441, 1
        %v642 = vsel %vm614, %v640, %v641
        %v643 = vrot.slane %v573, 1
        %v644 = vsel %vm614, %v641, %v643
        %v645 = vrot.slane %v558, 1
        %v646 = vrot.slane %v444, 1
        %v647 = vsel %vm614, %v645, %v646
        %v648 = vrot.slane %v574, 1
        %v649 = vsel %vm614, %v646, %v648
        %v650 = vrot.slane %v559, 1
        %v651 = vrot.slane %v447, 1
        %v652 = vsel %vm614, %v650, %v651
        %v653 = vrot.slane %v575, 1
        %v654 = vsel %vm614, %v651, %v653
        %v655 = vrot.slane %v560, 1
        %v656 = vrot.slane %v450, 1
        %v657 = vsel %vm614, %v655, %v656
        %v658 = vrot.slane %v576, 1
        %v659 = vsel %vm614, %v656, %v658
        %v660 = vrot.slane %v561, 1
        %v661 = vrot.slane %v453, 1
        %v662 = vsel %vm614, %v660, %v661
        %v663 = vrot.slane %v577, 1
        %v664 = vsel %vm614, %v661, %v663
        %v665 = vrot.slane %v562, 1
        %v666 = vrot.slane %v456, 1
        %v667 = vsel %vm614, %v665, %v666
        %v668 = vrot.slane %v578, 1
        %v669 = vsel %vm614, %v666, %v668
        %v670 = vrot.slane %v563, 1
        %v671 = vrot.slane %v459, 1
        %v672 = vsel %vm614, %v670, %v671
        %v673 = vrot.slane %v579, 1
        %v674 = vsel %vm614, %v671, %v673
        %v675 = vrot.slane %v564, 1
        %v676 = vrot.slane %v462, 1
        %v677 = vsel %vm614, %v675, %v676
        %v678 = vrot.slane %v580, 1
        %v679 = vsel %vm614, %v676, %v678
        %v680 = vrot.slane %v565, 1
        %v681 = vrot.slane %v465, 1
        %v682 = vsel %vm614, %v680, %v681
        %v683 = vrot.slane %v581, 1
        %v684 = vsel %vm614, %v681, %v683
        %v685 = vrot.slane %v566, 1
        %v686 = vrot.slane %v468, 1
        %v687 = vsel %vm614, %v685, %v686
        %v688 = vrot.slane %v582, 1
        %v689 = vsel %vm614, %v686, %v688
        %vm720 = vcmask 1045504
        %v721 = vrot.slane %v552, 2
        %v722 = vrot.slane %v426, 2
        %v723 = vsel %vm720, %v721, %v722
        %v724 = vrot.slane %v568, 2
        %v725 = vsel %vm720, %v722, %v724
        %v726 = vrot.slane %v553, 2
        %v727 = vrot.slane %v429, 2
        %v728 = vsel %vm720, %v726, %v727
        %v729 = vrot.slane %v569, 2
        %v730 = vsel %vm720, %v727, %v729
        %v731 = vrot.slane %v554, 2
        %v732 = vrot.slane %v432, 2
        %v733 = vsel %vm720, %v731, %v732
        %v734 = vrot.slane %v570, 2
        %v735 = vsel %vm720, %v732, %v734
        %v736 = vrot.slane %v555, 2
        %v737 = vrot.slane %v435, 2
        %v738 = vsel %vm720, %v736, %v737
        %v739 = vrot.slane %v571, 2
        %v740 = vsel %vm720, %v737, %v739
        %v741 = vrot.slane %v556, 2
        %v742 = vrot.slane %v438, 2
        %v743 = vsel %vm720, %v741, %v742
        %v744 = vrot.slane %v572, 2
        %v745 = vsel %vm720, %v742, %v744
        %v746 = vrot.slane %v557, 2
        %v747 = vrot.slane %v441, 2
        %v748 = vsel %vm720, %v746, %v747
        %v749 = vrot.slane %v573, 2
        %v750 = vsel %vm720, %v747, %v749
        %v751 = vrot.slane %v558, 2
        %v752 = vrot.slane %v444, 2
        %v753 = vsel %vm720, %v751, %v752
        %v754 = vrot.slane %v574, 2
        %v755 = vsel %vm720, %v752, %v754
        %v756 = vrot.slane %v559, 2
        %v757 = vrot.slane %v447, 2
        %v758 = vsel %vm720, %v756, %v757
        %v759 = vrot.slane %v575, 2
        %v760 = vsel %vm720, %v757, %v759
        %v761 = vrot.slane %v560, 2
        %v762 = vrot.slane %v450, 2
        %v763 = vsel %vm720, %v761, %v762
        %v764 = vrot.slane %v576, 2
        %v765 = vsel %vm720, %v762, %v764
        %v766 = vrot.slane %v561, 2
        %v767 = vrot.slane %v453, 2
        %v768 = vsel %vm720, %v766, %v767
        %v769 = vrot.slane %v577, 2
        %v770 = vsel %vm720, %v767, %v769
        %v771 = vrot.slane %v562, 2
        %v772 = vrot.slane %v456, 2
        %v773 = vsel %vm720, %v771, %v772
        %v774 = vrot.slane %v578, 2
        %v775 = vsel %vm720, %v772, %v774
        %v776 = vrot.slane %v563, 2
        %v777 = vrot.slane %v459, 2
        %v778 = vsel %vm720, %v776, %v777
        %v779 = vrot.slane %v579, 2
        %v780 = vsel %vm720, %v777, %v779
        %v781 = vrot.slane %v564, 2
        %v782 = vrot.slane %v462, 2
        %v783 = vsel %vm720, %v781, %v782
        %v784 = vrot.slane %v580, 2
        %v785 = vsel %vm720, %v782, %v784
        %v786 = vrot.slane %v565, 2
        %v787 = vrot.slane %v465, 2
        %v788 = vsel %vm720, %v786, %v787
        %v789 = vrot.slane %v581, 2
        %v790 = vsel %vm720, %v787, %v789
        %v791 = vrot.slane %v566, 2
        %v792 = vrot.slane %v468, 2
        %v793 = vsel %vm720, %v791, %v792
        %v794 = vrot.slane %v582, 2
        %v795 = vsel %vm720, %v792, %v794
        %v828 = vrot.slane %v567, 1
        %v829 = vrot.slane %v471, 1
        %v830 = vsel %vm614, %v828, %v829
        %v831 = vrot.slane %v583, 1
        %v832 = vsel %vm614, %v829, %v831
        %v835 = vrot.slane %v567, 2
        %v836 = vrot.slane %v471, 2
        %v837 = vsel %vm720, %v835, %v836
        %v838 = vrot.slane %v583, 2
        %v839 = vsel %vm720, %v836, %v838
        %v842 = vpack.c.bf16 %v426, %v552
        %v843 = vpack.c.bf16 %v619, %v617
        %v844 = vpack.c.bf16 %v725, %v723
        %v845 = vpack.c.bf16 %v429, %v553
        %v846 = vpack.c.bf16 %v624, %v622
        %v847 = vpack.c.bf16 %v730, %v728
        %v848 = vpack.c.bf16 %v432, %v554
        %v849 = vpack.c.bf16 %v629, %v627
        %v850 = vpack.c.bf16 %v735, %v733
        %v851 = vpack.c.bf16 %v435, %v555
        %v852 = vpack.c.bf16 %v634, %v632
        %v853 = vpack.c.bf16 %v740, %v738
        %v854 = vpack.c.bf16 %v438, %v556
        %v855 = vpack.c.bf16 %v639, %v637
        %v856 = vpack.c.bf16 %v745, %v743
        %v857 = vpack.c.bf16 %v441, %v557
        %v858 = vpack.c.bf16 %v644, %v642
        %v859 = vpack.c.bf16 %v750, %v748
        %v860 = vpack.c.bf16 %v444, %v558
        %v861 = vpack.c.bf16 %v649, %v647
        %v862 = vpack.c.bf16 %v755, %v753
        %v863 = vpack.c.bf16 %v447, %v559
        %v864 = vpack.c.bf16 %v654, %v652
        %v865 = vpack.c.bf16 %v760, %v758
        %v866 = vpack.c.bf16 %v450, %v560
        %v867 = vpack.c.bf16 %v659, %v657
        %v868 = vpack.c.bf16 %v765, %v763
        %v869 = vpack.c.bf16 %v453, %v561
        %v870 = vpack.c.bf16 %v664, %v662
        %v871 = vpack.c.bf16 %v770, %v768
        %v872 = vpack.c.bf16 %v456, %v562
        %v873 = vpack.c.bf16 %v669, %v667
        %v874 = vpack.c.bf16 %v775, %v773
        %v875 = vpack.c.bf16 %v459, %v563
        %v876 = vpack.c.bf16 %v674, %v672
        %v877 = vpack.c.bf16 %v780, %v778
        %v878 = vpack.c.bf16 %v462, %v564
        %v879 = vpack.c.bf16 %v679, %v677
        %v880 = vpack.c.bf16 %v785, %v783
        %v881 = vpack.c.bf16 %v465, %v565
        %v882 = vpack.c.bf16 %v684, %v682
        %v883 = vpack.c.bf16 %v790, %v788
        %v884 = vpack.c.bf16 %v468, %v566
        %v885 = vpack.c.bf16 %v689, %v687
        %v886 = vpack.c.bf16 %v795, %v793
        %v887 = vpack.c.bf16 %v471, %v567
        %v888 = vpack.c.bf16 %v832, %v830
        %v889 = vpack.c.bf16 %v839, %v837
        %v890 = vld [vmem:[#allocation5] sm:$0xf]
        %v891 = vld [vmem:[#allocation5 + $0x4] sm:$0xf]
        %v892 = vld [vmem:[#allocation5 + $0x8] sm:$0xf]
        %v893 = vld [vmem:[#allocation5 + $0xc] sm:$0xf]
        %v894 = vld [vmem:[#allocation5 + $0x10] sm:$0xf]
        %v895 = vld [vmem:[#allocation5 + $0x14] sm:$0xf]
        %v896 = vld [vmem:[#allocation5 + $0x18] sm:$0xf]
        %v897 = vld [vmem:[#allocation5 + $0x1c] sm:$0xf]
        %v898 = vld [vmem:[#allocation5 + $0x20] sm:$0xf]
        %v899 = vld [vmem:[#allocation5 + $0x24] sm:$0xf]
        %v900 = vld [vmem:[#allocation5 + $0x28] sm:$0xf]
        %v901 = vld [vmem:[#allocation5 + $0x2c] sm:$0xf]
        %v902 = vld [vmem:[#allocation5 + $0x30] sm:$0xf]
        %v903 = vld [vmem:[#allocation5 + $0x34] sm:$0xf]
        %v904 = vld [vmem:[#allocation5 + $0x38] sm:$0xf]
        %v905 = vld [vmem:[#allocation5 + $0x3c] sm:$0xf]
        %v906 = vld [vmem:[#allocation5 + $0x40] sm:$0xf]
        %v907 = vld [vmem:[#allocation5 + $0x44] sm:$0xf]
        %v908 = vld [vmem:[#allocation5 + $0x48] sm:$0xf]
        %v909 = vld [vmem:[#allocation5 + $0x4c] sm:$0xf]
        %v910 = vld [vmem:[#allocation5 + $0x50] sm:$0xf]
        %v911 = vld [vmem:[#allocation5 + $0x54] sm:$0xf]
        %v912 = vld [vmem:[#allocation5 + $0x58] sm:$0xf]
        %v913 = vld [vmem:[#allocation5 + $0x5c] sm:$0xf]
        %v914 = vld [vmem:[#allocation5 + $0x60] sm:$0xf]
        %v915 = vld [vmem:[#allocation5 + $0x64] sm:$0xf]
        %v916 = vld [vmem:[#allocation5 + $0x68] sm:$0xf]
        %v917 = vld [vmem:[#allocation5 + $0x6c] sm:$0xf]
        %v918 = vld [vmem:[#allocation5 + $0x70] sm:$0xf]
        %v919 = vld [vmem:[#allocation5 + $0x74] sm:$0xf]
        %v920 = vld [vmem:[#allocation5 + $0x78] sm:$0xf]
        %v921 = vld [vmem:[#allocation5 + $0x7c] sm:$0xf]
        %v922 = vld [vmem:[#allocation5 + $0x80] sm:$0xf]
        %v923 = vld [vmem:[#allocation5 + $0x84] sm:$0xf]
        %v924 = vld [vmem:[#allocation5 + $0x88] sm:$0xf]
        %v925 = vld [vmem:[#allocation5 + $0x8c] sm:$0xf]
        %v926 = vld [vmem:[#allocation5 + $0x90] sm:$0xf]
        %v927 = vld [vmem:[#allocation5 + $0x94] sm:$0xf]
        %v928 = vld [vmem:[#allocation5 + $0x98] sm:$0xf]
        %v929 = vld [vmem:[#allocation5 + $0x9c] sm:$0xf]
        %v930 = vld [vmem:[#allocation5 + $0xa0] sm:$0xf]
        %v931 = vld [vmem:[#allocation5 + $0xa4] sm:$0xf]
        %v932 = vld [vmem:[#allocation5 + $0xa8] sm:$0xf]
        %v933 = vld [vmem:[#allocation5 + $0xac] sm:$0xf]
        %v934 = vld [vmem:[#allocation5 + $0xb0] sm:$0xf]
        %v935 = vld [vmem:[#allocation5 + $0xb4] sm:$0xf]
        %v936 = vld [vmem:[#allocation5 + $0xb8] sm:$0xf]
        %v937 = vld [vmem:[#allocation5 + $0xbc] sm:$0xf]
        %v938 = vld [vmem:[#allocation5 + $0xc0] sm:$0xf]
        %v939 = vld [vmem:[#allocation5 + $0xc4] sm:$0xf]
        %v940 = vld [vmem:[#allocation5 + $0xc8] sm:$0xf]
        %v941 = vld [vmem:[#allocation5 + $0xcc] sm:$0xf]
        %v942 = vld [vmem:[#allocation5 + $0xd0] sm:$0xf]
        %v943 = vld [vmem:[#allocation5 + $0xd4] sm:$0xf]
        %v944 = vld [vmem:[#allocation5 + $0xd8] sm:$0xf]
        %v945 = vld [vmem:[#allocation5 + $0xdc] sm:$0xf]
        %v946 = vld [vmem:[#allocation5 + $0xe0] sm:$0xf]
        %v947 = vld [vmem:[#allocation5 + $0xe4] sm:$0xf]
        %v948 = vld [vmem:[#allocation5 + $0xe8] sm:$0xf]
        %v949 = vld [vmem:[#allocation5 + $0xec] sm:$0xf]
        %v950 = vld [vmem:[#allocation5 + $0xf0] sm:$0xf]
        %v951 = vld [vmem:[#allocation5 + $0xf4] sm:$0xf]
        %v952 = vld [vmem:[#allocation5 + $0xf8] sm:$0xf]
        %v953 = vld [vmem:[#allocation5 + $0xfc] sm:$0xf]
        %v954 = vld [vmem:[#allocation5 + $0x100] sm:$0xf]
        %v955 = vld [vmem:[#allocation5 + $0x104] sm:$0xf]
        %v956 = vld [vmem:[#allocation5 + $0x108] sm:$0xf]
        %v957 = vld [vmem:[#allocation5 + $0x10c] sm:$0xf]
        %v958 = vld [vmem:[#allocation5 + $0x110] sm:$0xf]
        %v959 = vld [vmem:[#allocation5 + $0x114] sm:$0xf]
        %v960 = vld [vmem:[#allocation5 + $0x118] sm:$0xf]
        %v961 = vld [vmem:[#allocation5 + $0x11c] sm:$0xf]
        %v962 = vld [vmem:[#allocation5 + $0x120] sm:$0xf]
        %v963 = vld [vmem:[#allocation5 + $0x124] sm:$0xf]
        %v964 = vld [vmem:[#allocation5 + $0x128] sm:$0xf]
        %v965 = vld [vmem:[#allocation5 + $0x12c] sm:$0xf]
        %v966 = vld [vmem:[#allocation5 + $0x130] sm:$0xf]
        %v967 = vld [vmem:[#allocation5 + $0x134] sm:$0xf]
        %v968 = vld [vmem:[#allocation5 + $0x138] sm:$0xf]
        %v969 = vld [vmem:[#allocation5 + $0x13c] sm:$0xf]
        %v970 = vld [vmem:[#allocation5 + $0x140] sm:$0xf]
        %v971 = vld [vmem:[#allocation5 + $0x144] sm:$0xf]
        %v972 = vld [vmem:[#allocation5 + $0x148] sm:$0xf]
        %v973 = vld [vmem:[#allocation5 + $0x14c] sm:$0xf]
        %v974 = vld [vmem:[#allocation5 + $0x150] sm:$0xf]
        %v975 = vld [vmem:[#allocation5 + $0x154] sm:$0xf]
        %v976 = vld [vmem:[#allocation5 + $0x158] sm:$0xf]
        %v977 = vld [vmem:[#allocation5 + $0x15c] sm:$0xf]
        %v978 = vld [vmem:[#allocation5 + $0x160] sm:$0xf]
        %v979 = vld [vmem:[#allocation5 + $0x164] sm:$0xf]
        %v980 = vld [vmem:[#allocation5 + $0x168] sm:$0xf]
        %v981 = vld [vmem:[#allocation5 + $0x16c] sm:$0xf]
        %v982 = vld [vmem:[#allocation5 + $0x170] sm:$0xf]
        %v983 = vld [vmem:[#allocation5 + $0x174] sm:$0xf]
        %v984 = vld [vmem:[#allocation5 + $0x178] sm:$0xf]
        %v985 = vld [vmem:[#allocation5 + $0x17c] sm:$0xf]
        %v986 = vld [vmem:[#allocation5 + $0x180] sm:$0xf]
        %v987 = vld [vmem:[#allocation5 + $0x184] sm:$0xf]
        %v988 = vld [vmem:[#allocation5 + $0x188] sm:$0xf]
        %v989 = vld [vmem:[#allocation5 + $0x18c] sm:$0xf]
        %v990 = vld [vmem:[#allocation5 + $0x190] sm:$0xf]
        %v991 = vld [vmem:[#allocation5 + $0x194] sm:$0xf]
        %v992 = vld [vmem:[#allocation5 + $0x198] sm:$0xf]
        %v993 = vld [vmem:[#allocation5 + $0x19c] sm:$0xf]
        %v994 = vld [vmem:[#allocation5 + $0x1a0] sm:$0xf]
        %v995 = vld [vmem:[#allocation5 + $0x1a4] sm:$0xf]
        %v996 = vld [vmem:[#allocation5 + $0x1a8] sm:$0xf]
        %v997 = vld [vmem:[#allocation5 + $0x1ac] sm:$0xf]
        %v998 = vld [vmem:[#allocation5 + $0x1b0] sm:$0xf]
        %v999 = vld [vmem:[#allocation5 + $0x1b4] sm:$0xf]
        %v1000 = vld [vmem:[#allocation5 + $0x1b8] sm:$0xf]
        %v1001 = vld [vmem:[#allocation5 + $0x1bc] sm:$0xf]
        %v1002 = vld [vmem:[#allocation5 + $0x1c0] sm:$0xf]
        %v1003 = vld [vmem:[#allocation5 + $0x1c4] sm:$0xf]
        %v1004 = vld [vmem:[#allocation5 + $0x1c8] sm:$0xf]
        %v1005 = vld [vmem:[#allocation5 + $0x1cc] sm:$0xf]
        %v1006 = vld [vmem:[#allocation5 + $0x1d0] sm:$0xf]
        %v1007 = vld [vmem:[#allocation5 + $0x1d4] sm:$0xf]
        %v1008 = vld [vmem:[#allocation5 + $0x1d8] sm:$0xf]
        %v1009 = vld [vmem:[#allocation5 + $0x1dc] sm:$0xf]
        %v1010 = vld [vmem:[#allocation5 + $0x1e0] sm:$0xf]
        %v1011 = vld [vmem:[#allocation5 + $0x1e4] sm:$0xf]
        %v1012 = vld [vmem:[#allocation5 + $0x1e8] sm:$0xf]
        %v1013 = vld [vmem:[#allocation5 + $0x1ec] sm:$0xf]
        %v1014 = vld [vmem:[#allocation5 + $0x1f0] sm:$0xf]
        %v1015 = vld [vmem:[#allocation5 + $0x1f4] sm:$0xf]
        %v1016 = vld [vmem:[#allocation5 + $0x1f8] sm:$0xf]
        %v1017 = vld [vmem:[#allocation5 + $0x1fc] sm:$0xf]
        %v1018 = vld [vmem:[#allocation5 + $0x200] sm:$0xf]
        %v1019 = vld [vmem:[#allocation5 + $0x204] sm:$0xf]
        %v1020 = vld [vmem:[#allocation5 + $0x208] sm:$0xf]
        %v1021 = vld [vmem:[#allocation5 + $0x20c] sm:$0xf]
        %v1022 = vld [vmem:[#allocation5 + $0x210] sm:$0xf]
        %v1023 = vld [vmem:[#allocation5 + $0x214] sm:$0xf]
        %v1024 = vld [vmem:[#allocation5 + $0x218] sm:$0xf]
        %v1025 = vld [vmem:[#allocation5 + $0x21c] sm:$0xf]
        %v1026 = vld [vmem:[#allocation5 + $0x220] sm:$0xf]
        %v1027 = vld [vmem:[#allocation5 + $0x224] sm:$0xf]
        %v1028 = vld [vmem:[#allocation5 + $0x228] sm:$0xf]
        %v1029 = vld [vmem:[#allocation5 + $0x22c] sm:$0xf]
        %v1030 = vld [vmem:[#allocation5 + $0x230] sm:$0xf]
        %v1031 = vld [vmem:[#allocation5 + $0x234] sm:$0xf]
        %v1032 = vld [vmem:[#allocation5 + $0x238] sm:$0xf]
        %v1033 = vld [vmem:[#allocation5 + $0x23c] sm:$0xf]
        %v1034 = vld [vmem:[%s2] sm:$0x1]
        %v1036 = vlaneseq
        %v1037 = vshrl.u32 %v1036, 7
        %v1038 = vsub.s32 0, %v1037
        %v1039 = vrot.slane %v1034, %v1038
        %v1185 = vunpack.c.l.b16 %v890
        %v1186 = vunpack.c.l.b16 %v891
        %v1187 = vunpack.c.l.b16 %v892
        %v1188 = vunpack.c.l.b16 %v893
        %v1189 = vunpack.c.l.b16 %v894
        %v1190 = vunpack.c.l.b16 %v895
        %v1191 = vunpack.c.l.b16 %v896
        %v1192 = vunpack.c.l.b16 %v897
        %v1193 = vunpack.c.l.b16 %v898
        %v1194 = vunpack.c.l.b16 %v899
        %v1195 = vunpack.c.l.b16 %v900
        %v1196 = vunpack.c.l.b16 %v901
        %v1197 = vunpack.c.l.b16 %v902
        %v1198 = vunpack.c.l.b16 %v903
        %v1199 = vunpack.c.l.b16 %v904
        %v1200 = vunpack.c.l.b16 %v905
        %v1201 = vunpack.c.l.b16 %v906
        %v1202 = vunpack.c.l.b16 %v907
        %v1203 = vunpack.c.l.b16 %v908
        %v1204 = vunpack.c.l.b16 %v909
        %v1205 = vunpack.c.l.b16 %v910
        %v1206 = vunpack.c.l.b16 %v911
        %v1207 = vunpack.c.l.b16 %v912
        %v1208 = vunpack.c.l.b16 %v913
        %v1209 = vunpack.c.l.b16 %v914
        %v1210 = vunpack.c.l.b16 %v915
        %v1211 = vunpack.c.l.b16 %v916
        %v1212 = vunpack.c.l.b16 %v917
        %v1213 = vunpack.c.l.b16 %v918
        %v1214 = vunpack.c.l.b16 %v919
        %v1215 = vunpack.c.l.b16 %v920
        %v1216 = vunpack.c.l.b16 %v921
        %v1217 = vunpack.c.l.b16 %v922
        %v1218 = vunpack.c.l.b16 %v923
        %v1219 = vunpack.c.l.b16 %v924
        %v1220 = vunpack.c.l.b16 %v925
        %v1221 = vunpack.c.l.b16 %v926
        %v1222 = vunpack.c.l.b16 %v927
        %v1223 = vunpack.c.l.b16 %v928
        %v1224 = vunpack.c.l.b16 %v929
        %v1225 = vunpack.c.l.b16 %v930
        %v1226 = vunpack.c.l.b16 %v931
        %v1227 = vunpack.c.l.b16 %v932
        %v1228 = vunpack.c.l.b16 %v933
        %v1229 = vunpack.c.l.b16 %v934
        %v1230 = vunpack.c.l.b16 %v935
        %v1231 = vunpack.c.l.b16 %v936
        %v1232 = vunpack.c.l.b16 %v937
        %v1233 = vunpack.c.l.b16 %v938
        %v1234 = vunpack.c.l.b16 %v939
        %v1235 = vunpack.c.l.b16 %v940
        %v1236 = vunpack.c.l.b16 %v941
        %v1237 = vunpack.c.l.b16 %v942
        %v1238 = vunpack.c.l.b16 %v943
        %v1239 = vunpack.c.l.b16 %v944
        %v1240 = vunpack.c.l.b16 %v945
        %v1241 = vunpack.c.l.b16 %v946
        %v1242 = vunpack.c.l.b16 %v947
        %v1243 = vunpack.c.l.b16 %v948
        %v1244 = vunpack.c.l.b16 %v949
        %v1245 = vunpack.c.l.b16 %v950
        %v1246 = vunpack.c.l.b16 %v951
        %v1247 = vunpack.c.l.b16 %v952
        %v1248 = vunpack.c.l.b16 %v953
        %v1249 = vunpack.c.l.b16 %v954
        %v1250 = vunpack.c.l.b16 %v955
        %v1251 = vunpack.c.l.b16 %v956
        %v1252 = vunpack.c.l.b16 %v957
        %v1253 = vunpack.c.l.b16 %v958
        %v1254 = vunpack.c.l.b16 %v959
        %v1255 = vunpack.c.l.b16 %v960
        %v1256 = vunpack.c.l.b16 %v961
        %v1257 = vunpack.c.l.b16 %v962
        %v1258 = vunpack.c.l.b16 %v963
        %v1259 = vunpack.c.l.b16 %v964
        %v1260 = vunpack.c.l.b16 %v965
        %v1261 = vunpack.c.l.b16 %v966
        %v1262 = vunpack.c.l.b16 %v967
        %v1263 = vunpack.c.l.b16 %v968
        %v1264 = vunpack.c.l.b16 %v969
        %v1265 = vunpack.c.l.b16 %v970
        %v1266 = vunpack.c.l.b16 %v971
        %v1267 = vunpack.c.l.b16 %v972
        %v1268 = vunpack.c.l.b16 %v973
        %v1269 = vunpack.c.l.b16 %v974
        %v1270 = vunpack.c.l.b16 %v975
        %v1271 = vunpack.c.l.b16 %v976
        %v1272 = vunpack.c.l.b16 %v977
        %v1273 = vunpack.c.l.b16 %v978
        %v1274 = vunpack.c.l.b16 %v979
        %v1275 = vunpack.c.l.b16 %v980
        %v1276 = vunpack.c.l.b16 %v981
        %v1277 = vunpack.c.l.b16 %v982
        %v1278 = vunpack.c.l.b16 %v983
        %v1279 = vunpack.c.l.b16 %v984
        %v1280 = vunpack.c.l.b16 %v985
        %v1281 = vunpack.c.l.b16 %v986
        %v1282 = vunpack.c.l.b16 %v987
        %v1283 = vunpack.c.l.b16 %v988
        %v1284 = vunpack.c.l.b16 %v989
        %v1285 = vunpack.c.l.b16 %v990
        %v1286 = vunpack.c.l.b16 %v991
        %v1287 = vunpack.c.l.b16 %v992
        %v1288 = vunpack.c.l.b16 %v993
        %v1289 = vunpack.c.l.b16 %v994
        %v1290 = vunpack.c.l.b16 %v995
        %v1291 = vunpack.c.l.b16 %v996
        %v1292 = vunpack.c.l.b16 %v997
        %v1293 = vunpack.c.l.b16 %v998
        %v1294 = vunpack.c.l.b16 %v999
        %v1295 = vunpack.c.l.b16 %v1000
        %v1296 = vunpack.c.l.b16 %v1001
        %v1297 = vunpack.c.l.b16 %v1002
        %v1298 = vunpack.c.l.b16 %v1003
        %v1299 = vunpack.c.l.b16 %v1004
        %v1300 = vunpack.c.l.b16 %v1005
        %v1301 = vunpack.c.l.b16 %v1006
        %v1302 = vunpack.c.l.b16 %v1007
        %v1303 = vunpack.c.l.b16 %v1008
        %v1304 = vunpack.c.l.b16 %v1009
        %v1305 = vunpack.c.l.b16 %v1010
        %v1306 = vunpack.c.l.b16 %v1011
        %v1307 = vunpack.c.l.b16 %v1012
        %v1308 = vunpack.c.l.b16 %v1013
        %v1309 = vunpack.c.l.b16 %v1014
        %v1310 = vunpack.c.l.b16 %v1015
        %v1311 = vunpack.c.l.b16 %v1016
        %v1312 = vunpack.c.l.b16 %v1017
        %v1313 = vunpack.c.l.b16 %v1018
        %v1314 = vunpack.c.l.b16 %v1019
        %v1315 = vunpack.c.l.b16 %v1020
        %v1316 = vunpack.c.l.b16 %v1021
        %v1317 = vunpack.c.l.b16 %v1022
        %v1318 = vunpack.c.l.b16 %v1023
        %v1319 = vunpack.c.l.b16 %v1024
        %v1320 = vunpack.c.l.b16 %v1025
        %v1321 = vunpack.c.l.b16 %v1026
        %v1322 = vunpack.c.l.b16 %v1027
        %v1323 = vunpack.c.l.b16 %v1028
        %v1324 = vunpack.c.l.b16 %v1029
        %v1325 = vunpack.c.l.b16 %v1030
        %v1326 = vunpack.c.l.b16 %v1031
        %v1327 = vunpack.c.l.b16 %v1032
        %v1328 = vunpack.c.l.b16 %v1033
        %v1329 = vpack.c.b16 %v1186, %v1185
        %v1330 = vpack.c.b16 %v1188, %v1187
        %v1331 = vpack.c.b16 %v1190, %v1189
        %v1332 = vpack.c.b16 %v1192, %v1191
        %v1333 = vpack.c.b16 %v1194, %v1193
        %v1334 = vpack.c.b16 %v1196, %v1195
        %v1335 = vpack.c.b16 %v1198, %v1197
        %v1336 = vpack.c.b16 %v1200, %v1199
        %v1337 = vpack.c.b16 %v1202, %v1201
        %v1338 = vpack.c.b16 %v1204, %v1203
        %v1339 = vpack.c.b16 %v1206, %v1205
        %v1340 = vpack.c.b16 %v1208, %v1207
        %v1341 = vpack.c.b16 %v1210, %v1209
        %v1342 = vpack.c.b16 %v1212, %v1211
        %v1343 = vpack.c.b16 %v1214, %v1213
        %v1344 = vpack.c.b16 %v1216, %v1215
        %v1345 = vpack.c.b16 %v1218, %v1217
        %v1346 = vpack.c.b16 %v1220, %v1219
        %v1347 = vpack.c.b16 %v1222, %v1221
        %v1348 = vpack.c.b16 %v1224, %v1223
        %v1349 = vpack.c.b16 %v1226, %v1225
        %v1350 = vpack.c.b16 %v1228, %v1227
        %v1351 = vpack.c.b16 %v1230, %v1229
        %v1352 = vpack.c.b16 %v1232, %v1231
        %v1353 = vpack.c.b16 %v1234, %v1233
        %v1354 = vpack.c.b16 %v1236, %v1235
        %v1355 = vpack.c.b16 %v1238, %v1237
        %v1356 = vpack.c.b16 %v1240, %v1239
        %v1357 = vpack.c.b16 %v1242, %v1241
        %v1358 = vpack.c.b16 %v1244, %v1243
        %v1359 = vpack.c.b16 %v1246, %v1245
        %v1360 = vpack.c.b16 %v1248, %v1247
        %v1361 = vpack.c.b16 %v1250, %v1249
        %v1362 = vpack.c.b16 %v1252, %v1251
        %v1363 = vpack.c.b16 %v1254, %v1253
        %v1364 = vpack.c.b16 %v1256, %v1255
        %v1365 = vpack.c.b16 %v1258, %v1257
        %v1366 = vpack.c.b16 %v1260, %v1259
        %v1367 = vpack.c.b16 %v1262, %v1261
        %v1368 = vpack.c.b16 %v1264, %v1263
        %v1369 = vpack.c.b16 %v1266, %v1265
        %v1370 = vpack.c.b16 %v1268, %v1267
        %v1371 = vpack.c.b16 %v1270, %v1269
        %v1372 = vpack.c.b16 %v1272, %v1271
        %v1373 = vpack.c.b16 %v1274, %v1273
        %v1374 = vpack.c.b16 %v1276, %v1275
        %v1375 = vpack.c.b16 %v1278, %v1277
        %v1376 = vpack.c.b16 %v1280, %v1279
        %v1377 = vpack.c.b16 %v1282, %v1281
        %v1378 = vpack.c.b16 %v1284, %v1283
        %v1379 = vpack.c.b16 %v1286, %v1285
        %v1380 = vpack.c.b16 %v1288, %v1287
        %v1381 = vpack.c.b16 %v1290, %v1289
        %v1382 = vpack.c.b16 %v1292, %v1291
        %v1383 = vpack.c.b16 %v1294, %v1293
        %v1384 = vpack.c.b16 %v1296, %v1295
        %v1385 = vpack.c.b16 %v1298, %v1297
        %v1386 = vpack.c.b16 %v1300, %v1299
        %v1387 = vpack.c.b16 %v1302, %v1301
        %v1388 = vpack.c.b16 %v1304, %v1303
        %v1389 = vpack.c.b16 %v1306, %v1305
        %v1390 = vpack.c.b16 %v1308, %v1307
        %v1391 = vpack.c.b16 %v1310, %v1309
        %v1392 = vpack.c.b16 %v1312, %v1311
        %v1393 = vpack.c.b16 %v1314, %v1313
        %v1394 = vpack.c.b16 %v1316, %v1315
        %v1395 = vpack.c.b16 %v1318, %v1317
        %v1396 = vpack.c.b16 %v1320, %v1319
        %v1397 = vpack.c.b16 %v1322, %v1321
        %v1398 = vpack.c.b16 %v1324, %v1323
        %v1399 = vpack.c.b16 %v1326, %v1325
        %v1400 = vpack.c.b16 %v1328, %v1327
        %1473 = vmatprep.subr.bf16.mxu0 0
        %1474 = vmatpush1.bf16.msra.mxu0 %v1329
        %1475 = vmatprep.subr.bf16.mxu0 0
        %1476 = vmatpush1.bf16.msra.mxu0 %v1330
        %1477 = vmatprep.subr.bf16.mxu0 0
        %1478 = vmatpush1.bf16.msra.mxu0 %v1331
        %1479 = vmatprep.subr.bf16.mxu0 0
        %1480 = vmatpush1.bf16.msra.mxu0 %v1332
        %1481 = vmatprep.subr.bf16.mxu0 0
        %1482 = vmatpush1.bf16.msra.mxu0 %v1333
        %1483 = vmatprep.subr.bf16.mxu0 0
        %1484 = vmatpush1.bf16.msra.mxu0 %v1334
        %1485 = vmatprep.subr.bf16.mxu0 0
        %1486 = vmatpush1.bf16.msra.mxu0 %v1335
        %1487 = vmatprep.subr.bf16.mxu0 0
        %1488 = vmatpush1.bf16.msra.mxu0 %v1336
        %1489 = vmatprep.subr.bf16.mxu0 0
        %1490 = vmatpush1.bf16.msra.mxu0 %v1337
        %1491 = vmatprep.subr.bf16.mxu0 0
        %1492 = vmatpush1.bf16.msra.mxu0 %v1338
        %1493 = vmatprep.subr.bf16.mxu0 0
        %1494 = vmatpush1.bf16.msra.mxu0 %v1339
        %1495 = vmatprep.subr.bf16.mxu0 0
        %1496 = vmatpush1.bf16.msra.mxu0 %v1340
        %1497 = vmatprep.subr.bf16.mxu0 0
        %1498 = vmatpush1.bf16.msra.mxu0 %v1341
        %1499 = vmatprep.subr.bf16.mxu0 0
        %1500 = vmatpush1.bf16.msra.mxu0 %v1342
        %1501 = vmatprep.subr.bf16.mxu0 0
        %1502 = vmatpush1.bf16.msra.mxu0 %v1343
        %1503 = vmatprep.subr.bf16.mxu0 0
        %1504 = vmatpush1.bf16.msra.mxu0 %v1344
        %1505 = vmatprep.mubr.bf16.mxu0 %v843
        %1506 = vmatmul.mubr.bf16.gmra.mrb[0].mxu0 %v842
        %v1507 = vpop.f32.mrb[0].mxu0
        %v1508 = vadd.f32 %v1039, %v1507
        %v1509 = vpop.f32.mrb[0].mxu0
        %v1510 = vpop.f32.mrb[0].mxu0
        %v1511 = vadd.f32 %v1039, %v1510
        %v1512 = vpop.f32.mrb[0].mxu0
        %1513 = vmatprep.mubr.bf16.mxu0 %v846
        %1514 = vmatmul.mubr.bf16.gmra.mrb[0].mxu0 %v845
        %v1515 = vpop.f32.mrb[0].mxu0
        %v1516 = vadd.f32 %v1039, %v1515
        %v1517 = vpop.f32.mrb[0].mxu0
        %v1518 = vpop.f32.mrb[0].mxu0
        %v1519 = vadd.f32 %v1039, %v1518
        %v1520 = vpop.f32.mrb[0].mxu0
        %1521 = vmatprep.mubr.bf16.mxu0 %v843
        %1522 = vmatmul.mubr.bf16.gmra.mrb[0].mxu0 %v842
        %v1523 = vpop.f32.mrb[0].mxu0
        %v1524 = vadd.f32 %v1039, %v1523
        %v1525 = vpop.f32.mrb[0].mxu0
        %v1526 = vpop.f32.mrb[0].mxu0
        %v1527 = vadd.f32 %v1039, %v1526
        %v1528 = vpop.f32.mrb[0].mxu0
        %1529 = vmatprep.mubr.bf16.mxu0 %v849
        %1530 = vmatmul.mubr.bf16.gmra.mrb[0].mxu0 %v848
        %v1531 = vpop.f32.mrb[0].mxu0
        %v1532 = vadd.f32 %v1039, %v1531
        %v1533 = vpop.f32.mrb[0].mxu0
        %v1534 = vpop.f32.mrb[0].mxu0
        %v1535 = vadd.f32 %v1039, %v1534
        %v1536 = vpop.f32.mrb[0].mxu0
        %1537 = vmatprep.mubr.bf16.mxu0 %v852
        %1538 = vmatmul.mubr.bf16.gmra.mrb[0].mxu0 %v851
        %v1539 = vpop.f32.mrb[0].mxu0
        %v1540 = vadd.f32 %v1039, %v1539
        %v1541 = vpop.f32.mrb[0].mxu0
        %v1542 = vpop.f32.mrb[0].mxu0
        %v1543 = vadd.f32 %v1039, %v1542
        %v1544 = vpop.f32.mrb[0].mxu0
        %1545 = vmatprep.mubr.bf16.mxu0 %v855
        %1546 = vmatmul.mubr.bf16.gmra.mrb[0].mxu0 %v854
        %v1547 = vpop.f32.mrb[0].mxu0
        %v1548 = vadd.f32 %v1039, %v1547
        %v1549 = vpop.f32.mrb[0].mxu0
        %v1550 = vpop.f32.mrb[0].mxu0
        %v1551 = vadd.f32 %v1039, %v1550
        %v1552 = vpop.f32.mrb[0].mxu0
        %1553 = vmatprep.mubr.bf16.mxu0 %v858
        %1554 = vmatmul.mubr.bf16.gmra.mrb[0].mxu0 %v857
        %v1555 = vpop.f32.mrb[0].mxu0
        %v1556 = vadd.f32 %v1039, %v1555
        %v1557 = vpop.f32.mrb[0].mxu0
        %v1558 = vpop.f32.mrb[0].mxu0
        %v1559 = vadd.f32 %v1039, %v1558
        %v1560 = vpop.f32.mrb[0].mxu0
        %1561 = vmatprep.mubr.bf16.mxu0 %v861
        %1562 = vmatmul.mubr.bf16.gmra.mrb[0].mxu0 %v860
        %v1563 = vpop.f32.mrb[0].mxu0
        %v1564 = vadd.f32 %v1039, %v1563
        %v1565 = vpop.f32.mrb[0].mxu0
        %v1566 = vpop.f32.mrb[0].mxu0
        %v1567 = vadd.f32 %v1039, %v1566
        %v1568 = vpop.f32.mrb[0].mxu0
        %1569 = vmatprep.mubr.bf16.mxu0 %v864
        %1570 = vmatmul.mubr.bf16.gmra.mrb[0].mxu0 %v863
        %v1571 = vpop.f32.mrb[0].mxu0
        %v1572 = vadd.f32 %v1039, %v1571
        %v1573 = vpop.f32.mrb[0].mxu0
        %v1574 = vpop.f32.mrb[0].mxu0
        %v1575 = vadd.f32 %v1039, %v1574
        %v1576 = vpop.f32.mrb[0].mxu0
        %1577 = vmatprep.mubr.bf16.mxu0 %v867
        %1578 = vmatmul.mubr.bf16.gmra.mrb[0].mxu0 %v866
        %v1579 = vpop.f32.mrb[0].mxu0
        %v1580 = vadd.f32 %v1039, %v1579
        %v1581 = vpop.f32.mrb[0].mxu0
        %v1582 = vpop.f32.mrb[0].mxu0
        %v1583 = vadd.f32 %v1039, %v1582
        %v1584 = vpop.f32.mrb[0].mxu0
        %1585 = vmatprep.mubr.bf16.mxu0 %v870
        %1586 = vmatmul.mubr.bf16.gmra.mrb[0].mxu0 %v869
        %v1587 = vpop.f32.mrb[0].mxu0
        %v1588 = vadd.f32 %v1039, %v1587
        %v1589 = vpop.f32.mrb[0].mxu0
        %v1590 = vpop.f32.mrb[0].mxu0
        %v1591 = vadd.f32 %v1039, %v1590
        %v1592 = vpop.f32.mrb[0].mxu0
        %1593 = vmatprep.mubr.bf16.mxu0 %v873
        %1594 = vmatmul.mubr.bf16.gmra.mrb[0].mxu0 %v872
        %v1595 = vpop.f32.mrb[0].mxu0
        %v1596 = vadd.f32 %v1039, %v1595
        %v1597 = vpop.f32.mrb[0].mxu0
        %v1598 = vpop.f32.mrb[0].mxu0
        %v1599 = vadd.f32 %v1039, %v1598
        %v1600 = vpop.f32.mrb[0].mxu0
        %1601 = vmatprep.mubr.bf16.mxu0 %v876
        %1602 = vmatmul.mubr.bf16.gmra.mrb[0].mxu0 %v875
        %v1603 = vpop.f32.mrb[0].mxu0
        %v1604 = vadd.f32 %v1039, %v1603
        %v1605 = vpop.f32.mrb[0].mxu0
        %v1606 = vpop.f32.mrb[0].mxu0
        %v1607 = vadd.f32 %v1039, %v1606
        %v1608 = vpop.f32.mrb[0].mxu0
        %1609 = vmatprep.mubr.bf16.mxu0 %v879
        %1610 = vmatmul.mubr.bf16.gmra.mrb[0].mxu0 %v878
        %v1611 = vpop.f32.mrb[0].mxu0
        %v1612 = vadd.f32 %v1039, %v1611
        %v1613 = vpop.f32.mrb[0].mxu0
        %v1614 = vpop.f32.mrb[0].mxu0
        %v1615 = vadd.f32 %v1039, %v1614
        %v1616 = vpop.f32.mrb[0].mxu0
        %1617 = vmatprep.mubr.bf16.mxu0 %v882
        %1618 = vmatmul.mubr.bf16.gmra.mrb[0].mxu0 %v881
        %v1619 = vpop.f32.mrb[0].mxu0
        %v1620 = vadd.f32 %v1039, %v1619
        %v1621 = vpop.f32.mrb[0].mxu0
        %v1622 = vpop.f32.mrb[0].mxu0
        %v1623 = vadd.f32 %v1039, %v1622
        %v1624 = vpop.f32.mrb[0].mxu0
        %1625 = vmatprep.mubr.bf16.mxu0 %v885
        %1626 = vmatmul.mubr.bf16.gmra.mrb[0].mxu0 %v884
        %v1627 = vpop.f32.mrb[0].mxu0
        %v1628 = vadd.f32 %v1039, %v1627
        %v1629 = vpop.f32.mrb[0].mxu0
        %v1630 = vpop.f32.mrb[0].mxu0
        %v1631 = vadd.f32 %v1039, %v1630
        %v1632 = vpop.f32.mrb[0].mxu0
        %1633 = vdwg.mxu0
        %1634 = vmatprep.subr.bf16.mxu0 0
        %1635 = vmatpush1.bf16.msra.mxu0 %v1345
        %1636 = vmatprep.subr.bf16.mxu0 0
        %1637 = vmatpush1.bf16.msra.mxu0 %v1346
        %1638 = vmatprep.subr.bf16.mxu0 0
        %1639 = vmatpush1.bf16.msra.mxu0 %v1347
        %1640 = vmatprep.subr.bf16.mxu0 0
        %1641 = vmatpush1.bf16.msra.mxu0 %v1348
        %1642 = vmatprep.subr.bf16.mxu0 0
        %1643 = vmatpush1.bf16.msra.mxu0 %v1349
        %1644 = vmatprep.subr.bf16.mxu0 0
        %1645 = vmatpush1.bf16.msra.mxu0 %v1350
        %1646 = vmatprep.subr.bf16.mxu0 0
        %1647 = vmatpush1.bf16.msra.mxu0 %v1351
        %1648 = vmatprep.subr.bf16.mxu0 0
        %1649 = vmatpush1.bf16.msra.mxu0 %v1352
        %1650 = vmatprep.subr.bf16.mxu0 0
        %1651 = vmatpush1.bf16.msra.mxu0 %v1353
        %1652 = vmatprep.subr.bf16.mxu0 0
        %1653 = vmatpush1.bf16.msra.mxu0 %v1354
        %1654 = vmatprep.subr.bf16.mxu0 0
        %1655 = vmatpush1.bf16.msra.mxu0 %v1355
        %1656 = vmatprep.subr.bf16.mxu0 0
        %1657 = vmatpush1.bf16.msra.mxu0 %v1356
        %1658 = vmatprep.subr.bf16.mxu0 0
        %1659 = vmatpush1.bf16.msra.mxu0 %v1357
        %1660 = vmatprep.subr.bf16.mxu0 0
        %1661 = vmatpush1.bf16.msra.mxu0 %v1358
        %1662 = vmatprep.subr.bf16.mxu0 0
        %1663 = vmatpush1.bf16.msra.mxu0 %v1359
        %1664 = vmatprep.subr.bf16.mxu0 0
        %1665 = vmatpush1.bf16.msra.mxu0 %v1360
        %1666 = vmatprep.mubr.bf16.mxu0 %v845
        %1667 = vmatmul.mubr.bf16.gmra.mrb[0].mxu0 %v844
        %v1668 = vpop.f32.mrb[0].mxu0
        %v1669 = vadd.f32 %v1508, %v1668
        %v1670 = vpop.f32.mrb[0].mxu0
        %v1671 = vpop.f32.mrb[0].mxu0
        %v1672 = vadd.f32 %v1511, %v1671
        %v1673 = vpop.f32.mrb[0].mxu0
        %1674 = vmatprep.mubr.bf16.mxu0 %v842
        %1675 = vmatmul.mubr.bf16.gmra.mrb[0].mxu0 %v847
        %v1676 = vpop.f32.mrb[0].mxu0
        %v1677 = vadd.f32 %v1516, %v1676
        %v1678 = vpop.f32.mrb[0].mxu0
        %v1679 = vpop.f32.mrb[0].mxu0
        %v1680 = vadd.f32 %v1519, %v1679
        %v1681 = vpop.f32.mrb[0].mxu0
        %1682 = vmatprep.mubr.bf16.mxu0 %v848
        %1683 = vmatmul.mubr.bf16.gmra.mrb[0].mxu0 %v844
        %v1684 = vpop.f32.mrb[0].mxu0
        %v1685 = vadd.f32 %v1524, %v1684
        %v1686 = vpop.f32.mrb[0].mxu0
        %v1687 = vpop.f32.mrb[0].mxu0
        %v1688 = vadd.f32 %v1527, %v1687
        %v1689 = vpop.f32.mrb[0].mxu0
        %1690 = vmatprep.mubr.bf16.mxu0 %v851
        %1691 = vmatmul.mubr.bf16.gmra.mrb[0].mxu0 %v850
        %v1692 = vpop.f32.mrb[0].mxu0
        %v1693 = vadd.f32 %v1532, %v1692
        %v1694 = vpop.f32.mrb[0].mxu0
        %v1695 = vpop.f32.mrb[0].mxu0
        %v1696 = vadd.f32 %v1535, %v1695
        %v1697 = vpop.f32.mrb[0].mxu0
        %1698 = vmatprep.mubr.bf16.mxu0 %v854
        %1699 = vmatmul.mubr.bf16.gmra.mrb[0].mxu0 %v853
        %v1700 = vpop.f32.mrb[0].mxu0
        %v1701 = vadd.f32 %v1540, %v1700
        %v1702 = vpop.f32.mrb[0].mxu0
        %v1703 = vpop.f32.mrb[0].mxu0
        %v1704 = vadd.f32 %v1543, %v1703
        %v1705 = vpop.f32.mrb[0].mxu0
        %1706 = vmatprep.mubr.bf16.mxu0 %v857
        %1707 = vmatmul.mubr.bf16.gmra.mrb[0].mxu0 %v856
        %v1708 = vpop.f32.mrb[0].mxu0
        %v1709 = vadd.f32 %v1548, %v1708
        %v1710 = vpop.f32.mrb[0].mxu0
        %v1711 = vpop.f32.mrb[0].mxu0
        %v1712 = vadd.f32 %v1551, %v1711
        %v1713 = vpop.f32.mrb[0].mxu0
        %1714 = vmatprep.mubr.bf16.mxu0 %v860
        %1715 = vmatmul.mubr.bf16.gmra.mrb[0].mxu0 %v859
        %v1716 = vpop.f32.mrb[0].mxu0
        %v1717 = vadd.f32 %v1556, %v1716
        %v1718 = vpop.f32.mrb[0].mxu0
        %v1719 = vpop.f32.mrb[0].mxu0
        %v1720 = vadd.f32 %v1559, %v1719
        %v1721 = vpop.f32.mrb[0].mxu0
        %1722 = vmatprep.mubr.bf16.mxu0 %v863
        %1723 = vmatmul.mubr.bf16.gmra.mrb[0].mxu0 %v862
        %v1724 = vpop.f32.mrb[0].mxu0
        %v1725 = vadd.f32 %v1564, %v1724
        %v1726 = vpop.f32.mrb[0].mxu0
        %v1727 = vpop.f32.mrb[0].mxu0
        %v1728 = vadd.f32 %v1567, %v1727
        %v1729 = vpop.f32.mrb[0].mxu0
        %1730 = vmatprep.mubr.bf16.mxu0 %v866
        %1731 = vmatmul.mubr.bf16.gmra.mrb[0].mxu0 %v865
        %v1732 = vpop.f32.mrb[0].mxu0
        %v1733 = vadd.f32 %v1572, %v1732
        %v1734 = vpop.f32.mrb[0].mxu0
        %v1735 = vpop.f32.mrb[0].mxu0
        %v1736 = vadd.f32 %v1575, %v1735
        %v1737 = vpop.f32.mrb[0].mxu0
        %1738 = vmatprep.mubr.bf16.mxu0 %v869
        %1739 = vmatmul.mubr.bf16.gmra.mrb[0].mxu0 %v868
        %v1740 = vpop.f32.mrb[0].mxu0
        %v1741 = vadd.f32 %v1580, %v1740
        %v1742 = vpop.f32.mrb[0].mxu0
        %v1743 = vpop.f32.mrb[0].mxu0
        %v1744 = vadd.f32 %v1583, %v1743
        %v1745 = vpop.f32.mrb[0].mxu0
        %1746 = vmatprep.mubr.bf16.mxu0 %v872
        %1747 = vmatmul.mubr.bf16.gmra.mrb[0].mxu0 %v871
        %v1748 = vpop.f32.mrb[0].mxu0
        %v1749 = vadd.f32 %v1588, %v1748
        %v1750 = vpop.f32.mrb[0].mxu0
        %v1751 = vpop.f32.mrb[0].mxu0
        %v1752 = vadd.f32 %v1591, %v1751
        %v1753 = vpop.f32.mrb[0].mxu0
        %1754 = vmatprep.mubr.bf16.mxu0 %v875
        %1755 = vmatmul.mubr.bf16.gmra.mrb[0].mxu0 %v874
        %v1756 = vpop.f32.mrb[0].mxu0
        %v1757 = vadd.f32 %v1596, %v1756
        %v1758 = vpop.f32.mrb[0].mxu0
        %v1759 = vpop.f32.mrb[0].mxu0
        %v1760 = vadd.f32 %v1599, %v1759
        %v1761 = vpop.f32.mrb[0].mxu0
        %1762 = vmatprep.mubr.bf16.mxu0 %v878
        %1763 = vmatmul.mubr.bf16.gmra.mrb[0].mxu0 %v877
        %v1764 = vpop.f32.mrb[0].mxu0
        %v1765 = vadd.f32 %v1604, %v1764
        %v1766 = vpop.f32.mrb[0].mxu0
        %v1767 = vpop.f32.mrb[0].mxu0
        %v1768 = vadd.f32 %v1607, %v1767
        %v1769 = vpop.f32.mrb[0].mxu0
        %1770 = vmatprep.mubr.bf16.mxu0 %v881
        %1771 = vmatmul.mubr.bf16.gmra.mrb[0].mxu0 %v880
        %v1772 = vpop.f32.mrb[0].mxu0
        %v1773 = vadd.f32 %v1612, %v1772
        %v1774 = vpop.f32.mrb[0].mxu0
        %v1775 = vpop.f32.mrb[0].mxu0
        %v1776 = vadd.f32 %v1615, %v1775
        %v1777 = vpop.f32.mrb[0].mxu0
        %1778 = vmatprep.mubr.bf16.mxu0 %v884
        %1779 = vmatmul.mubr.bf16.gmra.mrb[0].mxu0 %v883
        %v1780 = vpop.f32.mrb[0].mxu0
        %v1781 = vadd.f32 %v1620, %v1780
        %v1782 = vpop.f32.mrb[0].mxu0
        %v1783 = vpop.f32.mrb[0].mxu0
        %v1784 = vadd.f32 %v1623, %v1783
        %v1785 = vpop.f32.mrb[0].mxu0
        %1786 = vmatprep.mubr.bf16.mxu0 %v887
        %1787 = vmatmul.mubr.bf16.gmra.mrb[0].mxu0 %v886
        %v1788 = vpop.f32.mrb[0].mxu0
        %v1789 = vadd.f32 %v1628, %v1788
        %v1790 = vpop.f32.mrb[0].mxu0
        %v1791 = vpop.f32.mrb[0].mxu0
        %v1792 = vadd.f32 %v1631, %v1791
        %v1793 = vpop.f32.mrb[0].mxu0
        %1794 = vdwg.mxu0
        %1795 = vmatprep.subr.bf16.mxu0 0
        %1796 = vmatpush1.bf16.msra.mxu0 %v1361
        %1797 = vmatprep.subr.bf16.mxu0 0
        %1798 = vmatpush1.bf16.msra.mxu0 %v1362
        %1799 = vmatprep.subr.bf16.mxu0 0
        %1800 = vmatpush1.bf16.msra.mxu0 %v1363
        %1801 = vmatprep.subr.bf16.mxu0 0
        %1802 = vmatpush1.bf16.msra.mxu0 %v1364
        %1803 = vmatprep.subr.bf16.mxu0 0
        %1804 = vmatpush1.bf16.msra.mxu0 %v1365
        %1805 = vmatprep.subr.bf16.mxu0 0
        %1806 = vmatpush1.bf16.msra.mxu0 %v1366
        %1807 = vmatprep.subr.bf16.mxu0 0
        %1808 = vmatpush1.bf16.msra.mxu0 %v1367
        %1809 = vmatprep.subr.bf16.mxu0 0
        %1810 = vmatpush1.bf16.msra.mxu0 %v1368
        %1811 = vmatprep.subr.bf16.mxu0 0
        %1812 = vmatpush1.bf16.msra.mxu0 %v1369
        %1813 = vmatprep.subr.bf16.mxu0 0
        %1814 = vmatpush1.bf16.msra.mxu0 %v1370
        %1815 = vmatprep.subr.bf16.mxu0 0
        %1816 = vmatpush1.bf16.msra.mxu0 %v1371
        %1817 = vmatprep.subr.bf16.mxu0 0
        %1818 = vmatpush1.bf16.msra.mxu0 %v1372
        %1819 = vmatprep.subr.bf16.mxu0 0
        %1820 = vmatpush1.bf16.msra.mxu0 %v1373
        %1821 = vmatprep.subr.bf16.mxu0 0
        %1822 = vmatpush1.bf16.msra.mxu0 %v1374
        %1823 = vmatprep.subr.bf16.mxu0 0
        %1824 = vmatpush1.bf16.msra.mxu0 %v1375
        %1825 = vmatprep.subr.bf16.mxu0 0
        %1826 = vmatpush1.bf16.msra.mxu0 %v1376
        %1827 = vmatprep.mubr.bf16.mxu0 %v847
        %1828 = vmatmul.mubr.bf16.gmra.mrb[0].mxu0 %v846
        %v1829 = vpop.f32.mrb[0].mxu0
        %v1830 = vadd.f32 %v1669, %v1829
        %v1831 = vpop.f32.mrb[0].mxu0
        %v1832 = vpop.f32.mrb[0].mxu0
        %v1833 = vadd.f32 %v1672, %v1832
        %v1834 = vpop.f32.mrb[0].mxu0
        %1835 = vmatprep.mubr.bf16.mxu0 %v844
        %1836 = vmatmul.mubr.bf16.gmra.mrb[0].mxu0 %v843
        %v1837 = vpop.f32.mrb[0].mxu0
        %v1838 = vadd.f32 %v1677, %v1837
        %v1839 = vpop.f32.mrb[0].mxu0
        %v1840 = vpop.f32.mrb[0].mxu0
        %v1841 = vadd.f32 %v1680, %v1840
        %v1842 = vpop.f32.mrb[0].mxu0
        %1843 = vmatprep.mubr.bf16.mxu0 %v850
        %1844 = vmatmul.mubr.bf16.gmra.mrb[0].mxu0 %v849
        %v1845 = vpop.f32.mrb[0].mxu0
        %v1846 = vadd.f32 %v1685, %v1845
        %v1847 = vpop.f32.mrb[0].mxu0
        %v1848 = vpop.f32.mrb[0].mxu0
        %v1849 = vadd.f32 %v1688, %v1848
        %v1850 = vpop.f32.mrb[0].mxu0
        %1851 = vmatprep.mubr.bf16.mxu0 %v853
        %1852 = vmatmul.mubr.bf16.gmra.mrb[0].mxu0 %v852
        %v1853 = vpop.f32.mrb[0].mxu0
        %v1854 = vadd.f32 %v1693, %v1853
        %v1855 = vpop.f32.mrb[0].mxu0
        %v1856 = vpop.f32.mrb[0].mxu0
        %v1857 = vadd.f32 %v1696, %v1856
        %v1858 = vpop.f32.mrb[0].mxu0
        %1859 = vmatprep.mubr.bf16.mxu0 %v856
        %1860 = vmatmul.mubr.bf16.gmra.mrb[0].mxu0 %v855
        %v1861 = vpop.f32.mrb[0].mxu0
        %v1862 = vadd.f32 %v1701, %v1861
        %v1863 = vpop.f32.mrb[0].mxu0
        %v1864 = vpop.f32.mrb[0].mxu0
        %v1865 = vadd.f32 %v1704, %v1864
        %v1866 = vpop.f32.mrb[0].mxu0
        %1867 = vmatprep.mubr.bf16.mxu0 %v859
        %1868 = vmatmul.mubr.bf16.gmra.mrb[0].mxu0 %v858
        %v1869 = vpop.f32.mrb[0].mxu0
        %v1870 = vadd.f32 %v1709, %v1869
        %v1871 = vpop.f32.mrb[0].mxu0
        %v1872 = vpop.f32.mrb[0].mxu0
        %v1873 = vadd.f32 %v1712, %v1872
        %v1874 = vpop.f32.mrb[0].mxu0
        %1875 = vmatprep.mubr.bf16.mxu0 %v862
        %1876 = vmatmul.mubr.bf16.gmra.mrb[0].mxu0 %v861
        %v1877 = vpop.f32.mrb[0].mxu0
        %v1878 = vadd.f32 %v1717, %v1877
        %v1879 = vpop.f32.mrb[0].mxu0
        %v1880 = vpop.f32.mrb[0].mxu0
        %v1881 = vadd.f32 %v1720, %v1880
        %v1882 = vpop.f32.mrb[0].mxu0
        %1883 = vmatprep.mubr.bf16.mxu0 %v865
        %1884 = vmatmul.mubr.bf16.gmra.mrb[0].mxu0 %v864
        %v1885 = vpop.f32.mrb[0].mxu0
        %v1886 = vadd.f32 %v1725, %v1885
        %v1887 = vpop.f32.mrb[0].mxu0
        %v1888 = vpop.f32.mrb[0].mxu0
        %v1889 = vadd.f32 %v1728, %v1888
        %v1890 = vpop.f32.mrb[0].mxu0
        %1891 = vmatprep.mubr.bf16.mxu0 %v868
        %1892 = vmatmul.mubr.bf16.gmra.mrb[0].mxu0 %v867
        %v1893 = vpop.f32.mrb[0].mxu0
        %v1894 = vadd.f32 %v1733, %v1893
        %v1895 = vpop.f32.mrb[0].mxu0
        %v1896 = vpop.f32.mrb[0].mxu0
        %v1897 = vadd.f32 %v1736, %v1896
        %v1898 = vpop.f32.mrb[0].mxu0
        %1899 = vmatprep.mubr.bf16.mxu0 %v871
        %1900 = vmatmul.mubr.bf16.gmra.mrb[0].mxu0 %v870
        %v1901 = vpop.f32.mrb[0].mxu0
        %v1902 = vadd.f32 %v1741, %v1901
        %v1903 = vpop.f32.mrb[0].mxu0
        %v1904 = vpop.f32.mrb[0].mxu0
        %v1905 = vadd.f32 %v1744, %v1904
        %v1906 = vpop.f32.mrb[0].mxu0
        %1907 = vmatprep.mubr.bf16.mxu0 %v874
        %1908 = vmatmul.mubr.bf16.gmra.mrb[0].mxu0 %v873
        %v1909 = vpop.f32.mrb[0].mxu0
        %v1910 = vadd.f32 %v1749, %v1909
        %v1911 = vpop.f32.mrb[0].mxu0
        %v1912 = vpop.f32.mrb[0].mxu0
        %v1913 = vadd.f32 %v1752, %v1912
        %v1914 = vpop.f32.mrb[0].mxu0
        %1915 = vmatprep.mubr.bf16.mxu0 %v877
        %1916 = vmatmul.mubr.bf16.gmra.mrb[0].mxu0 %v876
        %v1917 = vpop.f32.mrb[0].mxu0
        %v1918 = vadd.f32 %v1757, %v1917
        %v1919 = vpop.f32.mrb[0].mxu0
        %v1920 = vpop.f32.mrb[0].mxu0
        %v1921 = vadd.f32 %v1760, %v1920
        %v1922 = vpop.f32.mrb[0].mxu0
        %1923 = vmatprep.mubr.bf16.mxu0 %v880
        %1924 = vmatmul.mubr.bf16.gmra.mrb[0].mxu0 %v879
        %v1925 = vpop.f32.mrb[0].mxu0
        %v1926 = vadd.f32 %v1765, %v1925
        %v1927 = vpop.f32.mrb[0].mxu0
        %v1928 = vpop.f32.mrb[0].mxu0
        %v1929 = vadd.f32 %v1768, %v1928
        %v1930 = vpop.f32.mrb[0].mxu0
        %1931 = vmatprep.mubr.bf16.mxu0 %v883
        %1932 = vmatmul.mubr.bf16.gmra.mrb[0].mxu0 %v882
        %v1933 = vpop.f32.mrb[0].mxu0
        %v1934 = vadd.f32 %v1773, %v1933
        %v1935 = vpop.f32.mrb[0].mxu0
        %v1936 = vpop.f32.mrb[0].mxu0
        %v1937 = vadd.f32 %v1776, %v1936
        %v1938 = vpop.f32.mrb[0].mxu0
        %1939 = vmatprep.mubr.bf16.mxu0 %v886
        %1940 = vmatmul.mubr.bf16.gmra.mrb[0].mxu0 %v885
        %v1941 = vpop.f32.mrb[0].mxu0
        %v1942 = vadd.f32 %v1781, %v1941
        %v1943 = vpop.f32.mrb[0].mxu0
        %v1944 = vpop.f32.mrb[0].mxu0
        %v1945 = vadd.f32 %v1784, %v1944
        %v1946 = vpop.f32.mrb[0].mxu0
        %1947 = vmatprep.mubr.bf16.mxu0 %v889
        %1948 = vmatmul.mubr.bf16.gmra.mrb[0].mxu0 %v888
        %v1949 = vpop.f32.mrb[0].mxu0
        %v1950 = vadd.f32 %v1789, %v1949
        %v1951 = vpop.f32.mrb[0].mxu0
        %v1952 = vpop.f32.mrb[0].mxu0
        %v1953 = vadd.f32 %v1792, %v1952
        %v1954 = vpop.f32.mrb[0].mxu0
        %1955 = vdwg.mxu0
        %1956 = vmatprep.subr.bf16.mxu0 0
        %1957 = vmatpush1.bf16.msra.mxu0 %v1377
        %1958 = vmatprep.subr.bf16.mxu0 0
        %1959 = vmatpush1.bf16.msra.mxu0 %v1378
        %1960 = vmatprep.subr.bf16.mxu0 0
        %1961 = vmatpush1.bf16.msra.mxu0 %v1379
        %1962 = vmatprep.subr.bf16.mxu0 0
        %1963 = vmatpush1.bf16.msra.mxu0 %v1380
        %1964 = vmatprep.subr.bf16.mxu0 0
        %1965 = vmatpush1.bf16.msra.mxu0 %v1381
        %1966 = vmatprep.subr.bf16.mxu0 0
        %1967 = vmatpush1.bf16.msra.mxu0 %v1382
        %1968 = vmatprep.subr.bf16.mxu0 0
        %1969 = vmatpush1.bf16.msra.mxu0 %v1383
        %1970 = vmatprep.subr.bf16.mxu0 0
        %1971 = vmatpush1.bf16.msra.mxu0 %v1384
        %1972 = vmatprep.subr.bf16.mxu0 0
        %1973 = vmatpush1.bf16.msra.mxu0 %v1385
        %1974 = vmatprep.subr.bf16.mxu0 0
        %1975 = vmatpush1.bf16.msra.mxu0 %v1386
        %1976 = vmatprep.subr.bf16.mxu0 0
        %1977 = vmatpush1.bf16.msra.mxu0 %v1387
        %1978 = vmatprep.subr.bf16.mxu0 0
        %1979 = vmatpush1.bf16.msra.mxu0 %v1388
        %1980 = vmatprep.subr.bf16.mxu0 0
        %1981 = vmatpush1.bf16.msra.mxu0 %v1389
        %1982 = vmatprep.subr.bf16.mxu0 0
        %1983 = vmatpush1.bf16.msra.mxu0 %v1390
        %1984 = vmatprep.subr.bf16.mxu0 0
        %1985 = vmatpush1.bf16.msra.mxu0 %v1391
        %1986 = vmatprep.subr.bf16.mxu0 0
        %1987 = vmatpush1.bf16.msra.mxu0 %v1392
        %1988 = vmatprep.mubr.bf16.mxu0 %v843
        %1989 = vmatmul.mubr.bf16.gmra.mrb[0].mxu0 %v842
        %v1990 = vpop.f32.mrb[0].mxu0
        %v1991 = vadd.f32 %v1830, %v1990
        %v1992 = vpop.f32.mrb[0].mxu0
        %v1993 = vpop.f32.mrb[0].mxu0
        %v1994 = vadd.f32 %v1833, %v1993
        %v1995 = vpop.f32.mrb[0].mxu0
        %1996 = vmatprep.mubr.bf16.mxu0 %v849
        %1997 = vmatmul.mubr.bf16.gmra.mrb[0].mxu0 %v848
        %v1998 = vpop.f32.mrb[0].mxu0
        %v1999 = vadd.f32 %v1838, %v1998
        %v2000 = vpop.f32.mrb[0].mxu0
        %v2001 = vpop.f32.mrb[0].mxu0
        %v2002 = vadd.f32 %v1841, %v2001
        %v2003 = vpop.f32.mrb[0].mxu0
        %2004 = vmatprep.mubr.bf16.mxu0 %v852
        %2005 = vmatmul.mubr.bf16.gmra.mrb[0].mxu0 %v851
        %v2006 = vpop.f32.mrb[0].mxu0
        %v2007 = vadd.f32 %v1846, %v2006
        %v2008 = vpop.f32.mrb[0].mxu0
        %v2009 = vpop.f32.mrb[0].mxu0
        %v2010 = vadd.f32 %v1849, %v2009
        %v2011 = vpop.f32.mrb[0].mxu0
        %2012 = vmatprep.mubr.bf16.mxu0 %v855
        %2013 = vmatmul.mubr.bf16.gmra.mrb[0].mxu0 %v854
        %v2014 = vpop.f32.mrb[0].mxu0
        %v2015 = vadd.f32 %v1854, %v2014
        %v2016 = vpop.f32.mrb[0].mxu0
        %v2017 = vpop.f32.mrb[0].mxu0
        %v2018 = vadd.f32 %v1857, %v2017
        %v2019 = vpop.f32.mrb[0].mxu0
        %2020 = vmatprep.mubr.bf16.mxu0 %v858
        %2021 = vmatmul.mubr.bf16.gmra.mrb[0].mxu0 %v857
        %v2022 = vpop.f32.mrb[0].mxu0
        %v2023 = vadd.f32 %v1862, %v2022
        %v2024 = vpop.f32.mrb[0].mxu0
        %v2025 = vpop.f32.mrb[0].mxu0
        %v2026 = vadd.f32 %v1865, %v2025
        %v2027 = vpop.f32.mrb[0].mxu0
        %2028 = vmatprep.mubr.bf16.mxu0 %v861
        %2029 = vmatmul.mubr.bf16.gmra.mrb[0].mxu0 %v860
        %v2030 = vpop.f32.mrb[0].mxu0
        %v2031 = vadd.f32 %v1870, %v2030
        %v2032 = vpop.f32.mrb[0].mxu0
        %v2033 = vpop.f32.mrb[0].mxu0
        %v2034 = vadd.f32 %v1873, %v2033
        %v2035 = vpop.f32.mrb[0].mxu0
        %2036 = vmatprep.mubr.bf16.mxu0 %v864
        %2037 = vmatmul.mubr.bf16.gmra.mrb[0].mxu0 %v863
        %v2038 = vpop.f32.mrb[0].mxu0
        %v2039 = vadd.f32 %v1878, %v2038
        %v2040 = vpop.f32.mrb[0].mxu0
        %v2041 = vpop.f32.mrb[0].mxu0
        %v2042 = vadd.f32 %v1881, %v2041
        %v2043 = vpop.f32.mrb[0].mxu0
        %2044 = vmatprep.mubr.bf16.mxu0 %v867
        %2045 = vmatmul.mubr.bf16.gmra.mrb[0].mxu0 %v866
        %v2046 = vpop.f32.mrb[0].mxu0
        %v2047 = vadd.f32 %v1886, %v2046
        %v2048 = vpop.f32.mrb[0].mxu0
        %v2049 = vpop.f32.mrb[0].mxu0
        %v2050 = vadd.f32 %v1889, %v2049
        %v2051 = vpop.f32.mrb[0].mxu0
        %2052 = vmatprep.mubr.bf16.mxu0 %v870
        %2053 = vmatmul.mubr.bf16.gmra.mrb[0].mxu0 %v869
        %v2054 = vpop.f32.mrb[0].mxu0
        %v2055 = vadd.f32 %v1894, %v2054
        %v2056 = vpop.f32.mrb[0].mxu0
        %v2057 = vpop.f32.mrb[0].mxu0
        %v2058 = vadd.f32 %v1897, %v2057
        %v2059 = vpop.f32.mrb[0].mxu0
        %2060 = vmatprep.mubr.bf16.mxu0 %v873
        %2061 = vmatmul.mubr.bf16.gmra.mrb[0].mxu0 %v872
        %v2062 = vpop.f32.mrb[0].mxu0
        %v2063 = vadd.f32 %v1902, %v2062
        %v2064 = vpop.f32.mrb[0].mxu0
        %v2065 = vpop.f32.mrb[0].mxu0
        %v2066 = vadd.f32 %v1905, %v2065
        %v2067 = vpop.f32.mrb[0].mxu0
        %2068 = vmatprep.mubr.bf16.mxu0 %v876
        %2069 = vmatmul.mubr.bf16.gmra.mrb[0].mxu0 %v875
        %v2070 = vpop.f32.mrb[0].mxu0
        %v2071 = vadd.f32 %v1910, %v2070
        %v2072 = vpop.f32.mrb[0].mxu0
        %v2073 = vpop.f32.mrb[0].mxu0
        %v2074 = vadd.f32 %v1913, %v2073
        %v2075 = vpop.f32.mrb[0].mxu0
        %2076 = vmatprep.mubr.bf16.mxu0 %v879
        %2077 = vmatmul.mubr.bf16.gmra.mrb[0].mxu0 %v878
        %v2078 = vpop.f32.mrb[0].mxu0
        %v2079 = vadd.f32 %v1918, %v2078
        %v2080 = vpop.f32.mrb[0].mxu0
        %v2081 = vpop.f32.mrb[0].mxu0
        %v2082 = vadd.f32 %v1921, %v2081
        %v2083 = vpop.f32.mrb[0].mxu0
        %2084 = vmatprep.mubr.bf16.mxu0 %v882
        %2085 = vmatmul.mubr.bf16.gmra.mrb[0].mxu0 %v881
        %v2086 = vpop.f32.mrb[0].mxu0
        %v2087 = vadd.f32 %v1926, %v2086
        %v2088 = vpop.f32.mrb[0].mxu0
        %v2089 = vpop.f32.mrb[0].mxu0
        %v2090 = vadd.f32 %v1929, %v2089
        %v2091 = vpop.f32.mrb[0].mxu0
        %2092 = vmatprep.mubr.bf16.mxu0 %v885
        %2093 = vmatmul.mubr.bf16.gmra.mrb[0].mxu0 %v884
        %v2094 = vpop.f32.mrb[0].mxu0
        %v2095 = vadd.f32 %v1934, %v2094
        %v2096 = vpop.f32.mrb[0].mxu0
        %v2097 = vpop.f32.mrb[0].mxu0
        %v2098 = vadd.f32 %v1937, %v2097
        %v2099 = vpop.f32.mrb[0].mxu0
        %2100 = vmatprep.mubr.bf16.mxu0 %v888
        %2101 = vmatmul.mubr.bf16.gmra.mrb[0].mxu0 %v887
        %v2102 = vpop.f32.mrb[0].mxu0
        %v2103 = vadd.f32 %v1942, %v2102
        %v2104 = vpop.f32.mrb[0].mxu0
        %v2105 = vpop.f32.mrb[0].mxu0
        %v2106 = vadd.f32 %v1945, %v2105
        %v2107 = vpop.f32.mrb[0].mxu0
        %2108 = vmatprep.mubr.bf16.mxu0 %v885
        %2109 = vmatmul.mubr.bf16.gmra.mrb[0].mxu0 %v884
        %v2110 = vpop.f32.mrb[0].mxu0
        %v2111 = vadd.f32 %v1950, %v2110
        %v2112 = vpop.f32.mrb[0].mxu0
        %v2113 = vpop.f32.mrb[0].mxu0
        %v2114 = vadd.f32 %v1953, %v2113
        %v2115 = vpop.f32.mrb[0].mxu0
        %2116 = vdwg.mxu0
        %2117 = vmatprep.subr.bf16.mxu0 0
        %2118 = vmatpush1.bf16.msra.mxu0 %v1393
        %2119 = vmatprep.subr.bf16.mxu0 0
        %2120 = vmatpush1.bf16.msra.mxu0 %v1394
        %2121 = vmatprep.subr.bf16.mxu0 0
        %2122 = vmatpush1.bf16.msra.mxu0 %v1395
        %2123 = vmatprep.subr.bf16.mxu0 0
        %2124 = vmatpush1.bf16.msra.mxu0 %v1396
        %2125 = vmatprep.subr.bf16.mxu0 0
        %2126 = vmatpush1.bf16.msra.mxu0 %v1397
        %2127 = vmatprep.subr.bf16.mxu0 0
        %2128 = vmatpush1.bf16.msra.mxu0 %v1398
        %2129 = vmatprep.subr.bf16.mxu0 0
        %2130 = vmatpush1.bf16.msra.mxu0 %v1399
        %2131 = vmatprep.subr.bf16.mxu0 0
        %2132 = vmatpush1.bf16.msra.mxu0 %v1400
        %2133 = vmatprep.subr.bf16.mxu0 0
        %2134 = vmatpush1.bf16.msra.mxu0 0
        %2135 = vmatprep.subr.bf16.mxu0 0
        %2136 = vmatpush1.bf16.msra.mxu0 0
        %2137 = vmatprep.subr.bf16.mxu0 0
        %2138 = vmatpush1.bf16.msra.mxu0 0
        %2139 = vmatprep.subr.bf16.mxu0 0
        %2140 = vmatpush1.bf16.msra.mxu0 0
        %2141 = vmatprep.subr.bf16.mxu0 0
        %2142 = vmatpush1.bf16.msra.mxu0 0
        %2143 = vmatprep.subr.bf16.mxu0 0
        %2144 = vmatpush1.bf16.msra.mxu0 0
        %2145 = vmatprep.subr.bf16.mxu0 0
        %2146 = vmatpush1.bf16.msra.mxu0 0
        %2147 = vmatprep.subr.bf16.mxu0 0
        %2148 = vmatpush1.bf16.msra.mxu0 0
        %2149 = vmatprep.mubr.bf16.mxu0 0
        %2150 = vmatmul.mubr.bf16.gmra.mrb[0].mxu0 %v844
        %v2151 = vpop.f32.mrb[0].mxu0
        %v2152 = vadd.f32 %v1991, %v2151
        %v2153 = vpop.f32.mrb[0].mxu0
        %v2154 = vpop.f32.mrb[0].mxu0
        %v2155 = vadd.f32 %v1994, %v2154
        %v2156 = vpop.f32.mrb[0].mxu0
        %2157 = vmatprep.mubr.bf16.mxu0 0
        %2158 = vmatmul.mubr.bf16.gmra.mrb[0].mxu0 %v850
        %v2159 = vpop.f32.mrb[0].mxu0
        %v2160 = vadd.f32 %v1999, %v2159
        %v2161 = vpop.f32.mrb[0].mxu0
        %v2162 = vpop.f32.mrb[0].mxu0
        %v2163 = vadd.f32 %v2002, %v2162
        %v2164 = vpop.f32.mrb[0].mxu0
        %2165 = vmatprep.mubr.bf16.mxu0 0
        %2166 = vmatmul.mubr.bf16.gmra.mrb[0].mxu0 %v853
        %v2167 = vpop.f32.mrb[0].mxu0
        %v2168 = vadd.f32 %v2007, %v2167
        %v2169 = vpop.f32.mrb[0].mxu0
        %v2170 = vpop.f32.mrb[0].mxu0
        %v2171 = vadd.f32 %v2010, %v2170
        %v2172 = vpop.f32.mrb[0].mxu0
        %2173 = vmatprep.mubr.bf16.mxu0 0
        %2174 = vmatmul.mubr.bf16.gmra.mrb[0].mxu0 %v856
        %v2175 = vpop.f32.mrb[0].mxu0
        %v2176 = vadd.f32 %v2015, %v2175
        %v2177 = vpop.f32.mrb[0].mxu0
        %v2178 = vpop.f32.mrb[0].mxu0
        %v2179 = vadd.f32 %v2018, %v2178
        %v2180 = vpop.f32.mrb[0].mxu0
        %2181 = vmatprep.mubr.bf16.mxu0 0
        %2182 = vmatmul.mubr.bf16.gmra.mrb[0].mxu0 %v859
        %v2183 = vpop.f32.mrb[0].mxu0
        %v2184 = vadd.f32 %v2023, %v2183
        %v2185 = vpop.f32.mrb[0].mxu0
        %v2186 = vpop.f32.mrb[0].mxu0
        %v2187 = vadd.f32 %v2026, %v2186
        %v2188 = vpop.f32.mrb[0].mxu0
        %2189 = vmatprep.mubr.bf16.mxu0 0
        %2190 = vmatmul.mubr.bf16.gmra.mrb[0].mxu0 %v862
        %v2191 = vpop.f32.mrb[0].mxu0
        %v2192 = vadd.f32 %v2031, %v2191
        %v2193 = vpop.f32.mrb[0].mxu0
        %v2194 = vpop.f32.mrb[0].mxu0
        %v2195 = vadd.f32 %v2034, %v2194
        %v2196 = vpop.f32.mrb[0].mxu0
        %2197 = vmatprep.mubr.bf16.mxu0 0
        %2198 = vmatmul.mubr.bf16.gmra.mrb[0].mxu0 %v865
        %v2199 = vpop.f32.mrb[0].mxu0
        %v2200 = vadd.f32 %v2039, %v2199
        %v2201 = vpop.f32.mrb[0].mxu0
        %v2202 = vpop.f32.mrb[0].mxu0
        %v2203 = vadd.f32 %v2042, %v2202
        %v2204 = vpop.f32.mrb[0].mxu0
        %2205 = vmatprep.mubr.bf16.mxu0 0
        %2206 = vmatmul.mubr.bf16.gmra.mrb[0].mxu0 %v868
        %v2207 = vpop.f32.mrb[0].mxu0
        %v2208 = vadd.f32 %v2047, %v2207
        %v2209 = vpop.f32.mrb[0].mxu0
        %v2210 = vpop.f32.mrb[0].mxu0
        %v2211 = vadd.f32 %v2050, %v2210
        %v2212 = vpop.f32.mrb[0].mxu0
        %2213 = vmatprep.mubr.bf16.mxu0 0
        %2214 = vmatmul.mubr.bf16.gmra.mrb[0].mxu0 %v871
        %v2215 = vpop.f32.mrb[0].mxu0
        %v2216 = vadd.f32 %v2055, %v2215
        %v2217 = vpop.f32.mrb[0].mxu0
        %v2218 = vpop.f32.mrb[0].mxu0
        %v2219 = vadd.f32 %v2058, %v2218
        %v2220 = vpop.f32.mrb[0].mxu0
        %2221 = vmatprep.mubr.bf16.mxu0 0
        %2222 = vmatmul.mubr.bf16.gmra.mrb[0].mxu0 %v874
        %v2223 = vpop.f32.mrb[0].mxu0
        %v2224 = vadd.f32 %v2063, %v2223
        %v2225 = vpop.f32.mrb[0].mxu0
        %v2226 = vpop.f32.mrb[0].mxu0
        %v2227 = vadd.f32 %v2066, %v2226
        %v2228 = vpop.f32.mrb[0].mxu0
        %2229 = vmatprep.mubr.bf16.mxu0 0
        %2230 = vmatmul.mubr.bf16.gmra.mrb[0].mxu0 %v877
        %v2231 = vpop.f32.mrb[0].mxu0
        %v2232 = vadd.f32 %v2071, %v2231
        %v2233 = vpop.f32.mrb[0].mxu0
        %v2234 = vpop.f32.mrb[0].mxu0
        %v2235 = vadd.f32 %v2074, %v2234
        %v2236 = vpop.f32.mrb[0].mxu0
        %2237 = vmatprep.mubr.bf16.mxu0 0
        %2238 = vmatmul.mubr.bf16.gmra.mrb[0].mxu0 %v880
        %v2239 = vpop.f32.mrb[0].mxu0
        %v2240 = vadd.f32 %v2079, %v2239
        %v2241 = vpop.f32.mrb[0].mxu0
        %v2242 = vpop.f32.mrb[0].mxu0
        %v2243 = vadd.f32 %v2082, %v2242
        %v2244 = vpop.f32.mrb[0].mxu0
        %2245 = vmatprep.mubr.bf16.mxu0 0
        %2246 = vmatmul.mubr.bf16.gmra.mrb[0].mxu0 %v883
        %v2247 = vpop.f32.mrb[0].mxu0
        %v2248 = vadd.f32 %v2087, %v2247
        %v2249 = vpop.f32.mrb[0].mxu0
        %v2250 = vpop.f32.mrb[0].mxu0
        %v2251 = vadd.f32 %v2090, %v2250
        %v2252 = vpop.f32.mrb[0].mxu0
        %2253 = vmatprep.mubr.bf16.mxu0 0
        %2254 = vmatmul.mubr.bf16.gmra.mrb[0].mxu0 %v886
        %v2255 = vpop.f32.mrb[0].mxu0
        %v2256 = vadd.f32 %v2095, %v2255
        %v2257 = vpop.f32.mrb[0].mxu0
        %v2258 = vpop.f32.mrb[0].mxu0
        %v2259 = vadd.f32 %v2098, %v2258
        %v2260 = vpop.f32.mrb[0].mxu0
        %2261 = vmatprep.mubr.bf16.mxu0 0
        %2262 = vmatmul.mubr.bf16.gmra.mrb[0].mxu0 %v889
        %v2263 = vpop.f32.mrb[0].mxu0
        %v2264 = vadd.f32 %v2103, %v2263
        %v2265 = vpop.f32.mrb[0].mxu0
        %v2266 = vpop.f32.mrb[0].mxu0
        %v2267 = vadd.f32 %v2106, %v2266
        %v2268 = vpop.f32.mrb[0].mxu0
        %2269 = vmatprep.mubr.bf16.mxu0 0
        %2270 = vmatmul.mubr.bf16.gmra.mrb[0].mxu0 %v886
        %v2271 = vpop.f32.mrb[0].mxu0
        %v2272 = vadd.f32 %v2111, %v2271
        %v2273 = vpop.f32.mrb[0].mxu0
        %v2274 = vpop.f32.mrb[0].mxu0
        %v2275 = vadd.f32 %v2114, %v2274
        %v2276 = vpop.f32.mrb[0].mxu0
        %2277 = vdwg.mxu0
        %v2278 = vadd.f32 %v2152, %v2155
        %v2279 = vadd.f32 %v2278, %v2160
        %v2280 = vadd.f32 %v2279, %v2163
        %v2281 = vadd.f32 %v2280, %v2168
        %v2282 = vadd.f32 %v2281, %v2171
        %v2283 = vadd.f32 %v2282, %v2176
        %v2284 = vadd.f32 %v2283, %v2179
        %v2285 = vadd.f32 %v2284, %v2184
        %v2286 = vadd.f32 %v2285, %v2187
        %v2287 = vadd.f32 %v2286, %v2192
        %v2288 = vadd.f32 %v2287, %v2195
        %v2289 = vadd.f32 %v2288, %v2200
        %v2290 = vadd.f32 %v2289, %v2203
        %v2291 = vadd.f32 %v2290, %v2208
        %v2292 = vadd.f32 %v2291, %v2211
        %v2293 = vadd.f32 %v2292, %v2216
        %v2294 = vadd.f32 %v2293, %v2219
        %v2295 = vadd.f32 %v2294, %v2224
        %v2296 = vadd.f32 %v2295, %v2227
        %v2297 = vadd.f32 %v2296, %v2232
        %v2298 = vadd.f32 %v2297, %v2235
        %v2299 = vadd.f32 %v2298, %v2240
        %v2300 = vadd.f32 %v2299, %v2243
        %v2301 = vadd.f32 %v2300, %v2248
        %v2302 = vadd.f32 %v2301, %v2251
        %v2303 = vadd.f32 %v2302, %v2256
        %v2304 = vadd.f32 %v2303, %v2259
        %v2305 = vadd.f32 %v2304, %v2264
        %v2306 = vadd.f32 %v2305, %v2267
        %v2307 = vadd.f32 %v2306, %v2272
        %v2308 = vadd.f32 %v2307, %v2275
        %v2309 = vrot.slane %v2308, 4
        %v2310 = vadd.f32 %v2308, %v2309
        %v2311 = vrot.slane %v2310, 2
        %v2312 = vadd.f32 %v2310, %v2311
        %v2313 = vrot.slane %v2312, 1
        %v2314 = vadd.f32 %v2312, %v2313
        %v2315 = vmul.f32 %v2152, %v2152
        %v2316 = vmul.f32 %v2155, %v2155
        %v2317 = vmul.f32 %v2160, %v2160
        %v2318 = vmul.f32 %v2163, %v2163
        %v2319 = vmul.f32 %v2168, %v2168
        %v2320 = vmul.f32 %v2171, %v2171
        %v2321 = vmul.f32 %v2176, %v2176
        %v2322 = vmul.f32 %v2179, %v2179
        %v2323 = vmul.f32 %v2184, %v2184
        %v2324 = vmul.f32 %v2187, %v2187
        %v2325 = vmul.f32 %v2192, %v2192
        %v2326 = vmul.f32 %v2195, %v2195
        %v2327 = vmul.f32 %v2200, %v2200
        %v2328 = vmul.f32 %v2203, %v2203
        %v2329 = vmul.f32 %v2208, %v2208
        %v2330 = vmul.f32 %v2211, %v2211
        %v2331 = vmul.f32 %v2216, %v2216
        %v2332 = vmul.f32 %v2219, %v2219
        %v2333 = vmul.f32 %v2224, %v2224
        %v2334 = vmul.f32 %v2227, %v2227
        %v2335 = vmul.f32 %v2232, %v2232
        %v2336 = vmul.f32 %v2235, %v2235
        %v2337 = vmul.f32 %v2240, %v2240
        %v2338 = vmul.f32 %v2243, %v2243
        %v2339 = vmul.f32 %v2248, %v2248
        %v2340 = vmul.f32 %v2251, %v2251
        %v2341 = vmul.f32 %v2256, %v2256
        %v2342 = vmul.f32 %v2259, %v2259
        %v2343 = vmul.f32 %v2264, %v2264
        %v2344 = vmul.f32 %v2267, %v2267
        %v2345 = vmul.f32 %v2272, %v2272
        %v2346 = vmul.f32 %v2275, %v2275
        %v2347 = vadd.f32 %v2315, %v2316
        %v2348 = vadd.f32 %v2347, %v2317
        %v2349 = vadd.f32 %v2348, %v2318
        %v2350 = vadd.f32 %v2349, %v2319
        %v2351 = vadd.f32 %v2350, %v2320
        %v2352 = vadd.f32 %v2351, %v2321
        %v2353 = vadd.f32 %v2352, %v2322
        %v2354 = vadd.f32 %v2353, %v2323
        %v2355 = vadd.f32 %v2354, %v2324
        %v2356 = vadd.f32 %v2355, %v2325
        %v2357 = vadd.f32 %v2356, %v2326
        %v2358 = vadd.f32 %v2357, %v2327
        %v2359 = vadd.f32 %v2358, %v2328
        %v2360 = vadd.f32 %v2359, %v2329
        %v2361 = vadd.f32 %v2360, %v2330
        %v2362 = vadd.f32 %v2361, %v2331
        %v2363 = vadd.f32 %v2362, %v2332
        %v2364 = vadd.f32 %v2363, %v2333
        %v2365 = vadd.f32 %v2364, %v2334
        %v2366 = vadd.f32 %v2365, %v2335
        %v2367 = vadd.f32 %v2366, %v2336
        %v2368 = vadd.f32 %v2367, %v2337
        %v2369 = vadd.f32 %v2368, %v2338
        %v2370 = vadd.f32 %v2369, %v2339
        %v2371 = vadd.f32 %v2370, %v2340
        %v2372 = vadd.f32 %v2371, %v2341
        %v2373 = vadd.f32 %v2372, %v2342
        %v2374 = vadd.f32 %v2373, %v2343
        %v2375 = vadd.f32 %v2374, %v2344
        %v2376 = vadd.f32 %v2375, %v2345
        %v2377 = vadd.f32 %v2376, %v2346
        %v2378 = vrot.slane %v2377, 4
        %v2379 = vadd.f32 %v2377, %v2378
        %v2380 = vrot.slane %v2379, 2
        %v2381 = vadd.f32 %v2379, %v2380
        %v2382 = vrot.slane %v2381, 1
        %v2383 = vadd.f32 %v2381, %v2382
        %v2384 = vmul.f32 %v2314, 0.00390625
        %v2385 = vmul.f32 %v2383, 0.00390625
        %v2386 = vmul.f32 %v2384, %v2384
        %v2387 = vsub.f32 %v2385, %v2386
        %v2388 = vmax.f32 %v2387, 0.0
        %v2389 = vsub.f32 %v2152, %v2384
        %v2390 = vsub.f32 %v2155, %v2384
        %v2391 = vsub.f32 %v2160, %v2384
        %v2392 = vsub.f32 %v2163, %v2384
        %v2393 = vsub.f32 %v2168, %v2384
        %v2394 = vsub.f32 %v2171, %v2384
        %v2395 = vsub.f32 %v2176, %v2384
        %v2396 = vsub.f32 %v2179, %v2384
        %v2397 = vsub.f32 %v2184, %v2384
        %v2398 = vsub.f32 %v2187, %v2384
        %v2399 = vsub.f32 %v2192, %v2384
        %v2400 = vsub.f32 %v2195, %v2384
        %v2401 = vsub.f32 %v2200, %v2384
        %v2402 = vsub.f32 %v2203, %v2384
        %v2403 = vsub.f32 %v2208, %v2384
        %v2404 = vsub.f32 %v2211, %v2384
        %v2405 = vsub.f32 %v2216, %v2384
        %v2406 = vsub.f32 %v2219, %v2384
        %v2407 = vsub.f32 %v2224, %v2384
        %v2408 = vsub.f32 %v2227, %v2384
        %v2409 = vsub.f32 %v2232, %v2384
        %v2410 = vsub.f32 %v2235, %v2384
        %v2411 = vsub.f32 %v2240, %v2384
        %v2412 = vsub.f32 %v2243, %v2384
        %v2413 = vsub.f32 %v2248, %v2384
        %v2414 = vsub.f32 %v2251, %v2384
        %v2415 = vsub.f32 %v2256, %v2384
        %v2416 = vsub.f32 %v2259, %v2384
        %v2417 = vsub.f32 %v2264, %v2384
        %v2418 = vsub.f32 %v2267, %v2384
        %v2419 = vsub.f32 %v2272, %v2384
        %v2420 = vsub.f32 %v2275, %v2384
        %v2421 = vadd.f32 %v2388, 1e-05
        %v2422 = vrsqrt.pop %v2421
        %v2423 = vmul.f32 %v2389, %v2422
        %v2424 = vmul.f32 %v2390, %v2422
        %v2425 = vmul.f32 %v2391, %v2422
        %v2426 = vmul.f32 %v2392, %v2422
        %v2427 = vmul.f32 %v2393, %v2422
        %v2428 = vmul.f32 %v2394, %v2422
        %v2429 = vmul.f32 %v2395, %v2422
        %v2430 = vmul.f32 %v2396, %v2422
        %v2431 = vmul.f32 %v2397, %v2422
        %v2432 = vmul.f32 %v2398, %v2422
        %v2433 = vmul.f32 %v2399, %v2422
        %v2434 = vmul.f32 %v2400, %v2422
        %v2435 = vmul.f32 %v2401, %v2422
        %v2436 = vmul.f32 %v2402, %v2422
        %v2437 = vmul.f32 %v2403, %v2422
        %v2438 = vmul.f32 %v2404, %v2422
        %v2439 = vmul.f32 %v2405, %v2422
        %v2440 = vmul.f32 %v2406, %v2422
        %v2441 = vmul.f32 %v2407, %v2422
        %v2442 = vmul.f32 %v2408, %v2422
        %v2443 = vmul.f32 %v2409, %v2422
        %v2444 = vmul.f32 %v2410, %v2422
        %v2445 = vmul.f32 %v2411, %v2422
        %v2446 = vmul.f32 %v2412, %v2422
        %v2447 = vmul.f32 %v2413, %v2422
        %v2448 = vmul.f32 %v2414, %v2422
        %v2449 = vmul.f32 %v2415, %v2422
        %v2450 = vmul.f32 %v2416, %v2422
        %v2451 = vmul.f32 %v2417, %v2422
        %v2452 = vmul.f32 %v2418, %v2422
        %v2453 = vmul.f32 %v2419, %v2422
        %v2454 = vmul.f32 %v2420, %v2422
        %v2455 = vmax.f32 %v2423, 0.0
        %v2456 = vmax.f32 %v2424, 0.0
        %v2457 = vmax.f32 %v2425, 0.0
        %v2458 = vmax.f32 %v2426, 0.0
        %v2459 = vmax.f32 %v2427, 0.0
        %v2460 = vmax.f32 %v2428, 0.0
        %v2461 = vmax.f32 %v2429, 0.0
        %v2462 = vmax.f32 %v2430, 0.0
        %v2463 = vmax.f32 %v2431, 0.0
        %v2464 = vmax.f32 %v2432, 0.0
        %v2465 = vmax.f32 %v2433, 0.0
        %v2466 = vmax.f32 %v2434, 0.0
        %v2467 = vmax.f32 %v2435, 0.0
        %v2468 = vmax.f32 %v2436, 0.0
        %v2469 = vmax.f32 %v2437, 0.0
        %v2470 = vmax.f32 %v2438, 0.0
        %v2471 = vmax.f32 %v2439, 0.0
        %v2472 = vmax.f32 %v2440, 0.0
        %v2473 = vmax.f32 %v2441, 0.0
        %v2474 = vmax.f32 %v2442, 0.0
        %v2475 = vmax.f32 %v2443, 0.0
        %v2476 = vmax.f32 %v2444, 0.0
        %v2477 = vmax.f32 %v2445, 0.0
        %v2478 = vmax.f32 %v2446, 0.0
        %v2479 = vmax.f32 %v2447, 0.0
        %v2480 = vmax.f32 %v2448, 0.0
        %v2481 = vmax.f32 %v2449, 0.0
        %v2482 = vmax.f32 %v2450, 0.0
        %v2483 = vmax.f32 %v2451, 0.0
        %v2484 = vmax.f32 %v2452, 0.0
        %v2485 = vmax.f32 %v2453, 0.0
        %v2486 = vmax.f32 %v2454, 0.0
        %v2503 = vrot.slane %v2457, 1
        %v2504 = vrot.slane %v2455, 1
        %v2505 = vrot.slane %v2459, 1
        %v2506 = vrot.slane %v2461, 1
        %v2507 = vrot.slane %v2463, 1
        %v2508 = vrot.slane %v2465, 1
        %v2509 = vrot.slane %v2467, 1
        %v2510 = vrot.slane %v2469, 1
        %v2511 = vrot.slane %v2471, 1
        %v2512 = vrot.slane %v2473, 1
        %v2513 = vrot.slane %v2475, 1
        %v2514 = vrot.slane %v2477, 1
        %v2515 = vrot.slane %v2479, 1
        %v2516 = vrot.slane %v2481, 1
        %v2517 = vrot.slane %v2483, 1
        %v2518 = vrot.slane %v2485, 1
        %v2551 = vrot.slane %v2457, 7
        %v2552 = vrot.slane %v2458, 7
        %v2553 = vsel %vm423, %v2551, %v2552
        %v2554 = vrot.slane %v2455, 7
        %v2555 = vrot.slane %v2456, 7
        %v2556 = vsel %vm423, %v2554, %v2555
        %v2557 = vrot.slane %v2459, 7
        %v2558 = vrot.slane %v2460, 7
        %v2559 = vsel %vm423, %v2557, %v2558
        %v2560 = vrot.slane %v2461, 7
        %v2561 = vrot.slane %v2462, 7
        %v2562 = vsel %vm423, %v2560, %v2561
        %v2563 = vrot.slane %v2463, 7
        %v2564 = vrot.slane %v2464, 7
        %v2565 = vsel %vm423, %v2563, %v2564
        %v2566 = vrot.slane %v2465, 7
        %v2567 = vrot.slane %v2466, 7
        %v2568 = vsel %vm423, %v2566, %v2567
        %v2569 = vrot.slane %v2467, 7
        %v2570 = vrot.slane %v2468, 7
        %v2571 = vsel %vm423, %v2569, %v2570
        %v2572 = vrot.slane %v2469, 7
        %v2573 = vrot.slane %v2470, 7
        %v2574 = vsel %vm423, %v2572, %v2573
        %v2575 = vrot.slane %v2471, 7
        %v2576 = vrot.slane %v2472, 7
        %v2577 = vsel %vm423, %v2575, %v2576
        %v2578 = vrot.slane %v2473, 7
        %v2579 = vrot.slane %v2474, 7
        %v2580 = vsel %vm423, %v2578, %v2579
        %v2581 = vrot.slane %v2475, 7
        %v2582 = vrot.slane %v2476, 7
        %v2583 = vsel %vm423, %v2581, %v2582
        %v2584 = vrot.slane %v2477, 7
        %v2585 = vrot.slane %v2478, 7
        %v2586 = vsel %vm423, %v2584, %v2585
        %v2587 = vrot.slane %v2479, 7
        %v2588 = vrot.slane %v2480, 7
        %v2589 = vsel %vm423, %v2587, %v2588
        %v2590 = vrot.slane %v2481, 7
        %v2591 = vrot.slane %v2482, 7
        %v2592 = vsel %vm423, %v2590, %v2591
        %v2593 = vrot.slane %v2483, 7
        %v2594 = vrot.slane %v2484, 7
        %v2595 = vsel %vm423, %v2593, %v2594
        %v2596 = vrot.slane %v2485, 7
        %v2597 = vrot.slane %v2486, 7
        %v2598 = vsel %vm423, %v2596, %v2597
        %v2647 = vrot.slane %v2458, 5
        %v2648 = vrot.slane %v2456, 5
        %v2649 = vrot.slane %v2460, 5
        %v2650 = vrot.slane %v2462, 5
        %v2651 = vrot.slane %v2464, 5
        %v2652 = vrot.slane %v2466, 5
        %v2653 = vrot.slane %v2468, 5
        %v2654 = vrot.slane %v2470, 5
        %v2655 = vrot.slane %v2472, 5
        %v2656 = vrot.slane %v2474, 5
        %v2657 = vrot.slane %v2476, 5
        %v2658 = vrot.slane %v2478, 5
        %v2659 = vrot.slane %v2480, 5
        %v2660 = vrot.slane %v2482, 5
        %v2661 = vrot.slane %v2484, 5
        %v2662 = vrot.slane %v2486, 5
        %v2679 = vsel %vm423, %v2503, %v2551
        %v2680 = vsel %vm423, %v2504, %v2554
        %v2681 = vsel %vm423, %v2505, %v2557
        %v2682 = vsel %vm423, %v2506, %v2560
        %v2683 = vsel %vm423, %v2507, %v2563
        %v2684 = vsel %vm423, %v2508, %v2566
        %v2685 = vsel %vm423, %v2509, %v2569
        %v2686 = vsel %vm423, %v2510, %v2572
        %v2687 = vsel %vm423, %v2511, %v2575
        %v2688 = vsel %vm423, %v2512, %v2578
        %v2689 = vsel %vm423, %v2513, %v2581
        %v2690 = vsel %vm423, %v2514, %v2584
        %v2691 = vsel %vm423, %v2515, %v2587
        %v2692 = vsel %vm423, %v2516, %v2590
        %v2693 = vsel %vm423, %v2517, %v2593
        %v2694 = vsel %vm423, %v2518, %v2596
        %v2695 = vsel %vm423, %v2552, %v2647
        %v2696 = vsel %vm423, %v2555, %v2648
        %v2697 = vsel %vm423, %v2558, %v2649
        %v2698 = vsel %vm423, %v2561, %v2650
        %v2699 = vsel %vm423, %v2564, %v2651
        %v2700 = vsel %vm423, %v2567, %v2652
        %v2701 = vsel %vm423, %v2570, %v2653
        %v2702 = vsel %vm423, %v2573, %v2654
        %v2703 = vsel %vm423, %v2576, %v2655
        %v2704 = vsel %vm423, %v2579, %v2656
        %v2705 = vsel %vm423, %v2582, %v2657
        %v2706 = vsel %vm423, %v2585, %v2658
        %v2707 = vsel %vm423, %v2588, %v2659
        %v2708 = vsel %vm423, %v2591, %v2660
        %v2709 = vsel %vm423, %v2594, %v2661
        %v2710 = vsel %vm423, %v2597, %v2662
        %v2741 = vrot.slane %v2679, 1
        %v2742 = vrot.slane %v2553, 1
        %v2743 = vsel %vm614, %v2741, %v2742
        %v2744 = vrot.slane %v2695, 1
        %v2745 = vsel %vm614, %v2742, %v2744
        %v2746 = vrot.slane %v2680, 1
        %v2747 = vrot.slane %v2556, 1
        %v2748 = vsel %vm614, %v2746, %v2747
        %v2749 = vrot.slane %v2696, 1
        %v2750 = vsel %vm614, %v2747, %v2749
        %v2751 = vrot.slane %v2681, 1
        %v2752 = vrot.slane %v2559, 1
        %v2753 = vsel %vm614, %v2751, %v2752
        %v2754 = vrot.slane %v2697, 1
        %v2755 = vsel %vm614, %v2752, %v2754
        %v2756 = vrot.slane %v2682, 1
        %v2757 = vrot.slane %v2562, 1
        %v2758 = vsel %vm614, %v2756, %v2757
        %v2759 = vrot.slane %v2698, 1
        %v2760 = vsel %vm614, %v2757, %v2759
        %v2761 = vrot.slane %v2683, 1
        %v2762 = vrot.slane %v2565, 1
        %v2763 = vsel %vm614, %v2761, %v2762
        %v2764 = vrot.slane %v2699, 1
        %v2765 = vsel %vm614, %v2762, %v2764
        %v2766 = vrot.slane %v2684, 1
        %v2767 = vrot.slane %v2568, 1
        %v2768 = vsel %vm614, %v2766, %v2767
        %v2769 = vrot.slane %v2700, 1
        %v2770 = vsel %vm614, %v2767, %v2769
        %v2771 = vrot.slane %v2685, 1
        %v2772 = vrot.slane %v2571, 1
        %v2773 = vsel %vm614, %v2771, %v2772
        %v2774 = vrot.slane %v2701, 1
        %v2775 = vsel %vm614, %v2772, %v2774
        %v2776 = vrot.slane %v2686, 1
        %v2777 = vrot.slane %v2574, 1
        %v2778 = vsel %vm614, %v2776, %v2777
        %v2779 = vrot.slane %v2702, 1
        %v2780 = vsel %vm614, %v2777, %v2779
        %v2781 = vrot.slane %v2687, 1
        %v2782 = vrot.slane %v2577, 1
        %v2783 = vsel %vm614, %v2781, %v2782
        %v2784 = vrot.slane %v2703, 1
        %v2785 = vsel %vm614, %v2782, %v2784
        %v2786 = vrot.slane %v2688, 1
        %v2787 = vrot.slane %v2580, 1
        %v2788 = vsel %vm614, %v2786, %v2787
        %v2789 = vrot.slane %v2704, 1
        %v2790 = vsel %vm614, %v2787, %v2789
        %v2791 = vrot.slane %v2689, 1
        %v2792 = vrot.slane %v2583, 1
        %v2793 = vsel %vm614, %v2791, %v2792
        %v2794 = vrot.slane %v2705, 1
        %v2795 = vsel %vm614, %v2792, %v2794
        %v2796 = vrot.slane %v2690, 1
        %v2797 = vrot.slane %v2586, 1
        %v2798 = vsel %vm614, %v2796, %v2797
        %v2799 = vrot.slane %v2706, 1
        %v2800 = vsel %vm614, %v2797, %v2799
        %v2801 = vrot.slane %v2691, 1
        %v2802 = vrot.slane %v2589, 1
        %v2803 = vsel %vm614, %v2801, %v2802
        %v2804 = vrot.slane %v2707, 1
        %v2805 = vsel %vm614, %v2802, %v2804
        %v2806 = vrot.slane %v2692, 1
        %v2807 = vrot.slane %v2592, 1
        %v2808 = vsel %vm614, %v2806, %v2807
        %v2809 = vrot.slane %v2708, 1
        %v2810 = vsel %vm614, %v2807, %v2809
        %v2811 = vrot.slane %v2693, 1
        %v2812 = vrot.slane %v2595, 1
        %v2813 = vsel %vm614, %v2811, %v2812
        %v2814 = vrot.slane %v2709, 1
        %v2815 = vsel %vm614, %v2812, %v2814
        %v2846 = vrot.slane %v2679, 2
        %v2847 = vrot.slane %v2553, 2
        %v2848 = vsel %vm720, %v2846, %v2847
        %v2849 = vrot.slane %v2695, 2
        %v2850 = vsel %vm720, %v2847, %v2849
        %v2851 = vrot.slane %v2680, 2
        %v2852 = vrot.slane %v2556, 2
        %v2853 = vsel %vm720, %v2851, %v2852
        %v2854 = vrot.slane %v2696, 2
        %v2855 = vsel %vm720, %v2852, %v2854
        %v2856 = vrot.slane %v2681, 2
        %v2857 = vrot.slane %v2559, 2
        %v2858 = vsel %vm720, %v2856, %v2857
        %v2859 = vrot.slane %v2697, 2
        %v2860 = vsel %vm720, %v2857, %v2859
        %v2861 = vrot.slane %v2682, 2
        %v2862 = vrot.slane %v2562, 2
        %v2863 = vsel %vm720, %v2861, %v2862
        %v2864 = vrot.slane %v2698, 2
        %v2865 = vsel %vm720, %v2862, %v2864
        %v2866 = vrot.slane %v2683, 2
        %v2867 = vrot.slane %v2565, 2
        %v2868 = vsel %vm720, %v2866, %v2867
        %v2869 = vrot.slane %v2699, 2
        %v2870 = vsel %vm720, %v2867, %v2869
        %v2871 = vrot.slane %v2684, 2
        %v2872 = vrot.slane %v2568, 2
        %v2873 = vsel %vm720, %v2871, %v2872
        %v2874 = vrot.slane %v2700, 2
        %v2875 = vsel %vm720, %v2872, %v2874
        %v2876 = vrot.slane %v2685, 2
        %v2877 = vrot.slane %v2571, 2
        %v2878 = vsel %vm720, %v2876, %v2877
        %v2879 = vrot.slane %v2701, 2
        %v2880 = vsel %vm720, %v2877, %v2879
        %v2881 = vrot.slane %v2686, 2
        %v2882 = vrot.slane %v2574, 2
        %v2883 = vsel %vm720, %v2881, %v2882
        %v2884 = vrot.slane %v2702, 2
        %v2885 = vsel %vm720, %v2882, %v2884
        %v2886 = vrot.slane %v2687, 2
        %v2887 = vrot.slane %v2577, 2
        %v2888 = vsel %vm720, %v2886, %v2887
        %v2889 = vrot.slane %v2703, 2
        %v2890 = vsel %vm720, %v2887, %v2889
        %v2891 = vrot.slane %v2688, 2
        %v2892 = vrot.slane %v2580, 2
        %v2893 = vsel %vm720, %v2891, %v2892
        %v2894 = vrot.slane %v2704, 2
        %v2895 = vsel %vm720, %v2892, %v2894
        %v2896 = vrot.slane %v2689, 2
        %v2897 = vrot.slane %v2583, 2
        %v2898 = vsel %vm720, %v2896, %v2897
        %v2899 = vrot.slane %v2705, 2
        %v2900 = vsel %vm720, %v2897, %v2899
        %v2901 = vrot.slane %v2690, 2
        %v2902 = vrot.slane %v2586, 2
        %v2903 = vsel %vm720, %v2901, %v2902
        %v2904 = vrot.slane %v2706, 2
        %v2905 = vsel %vm720, %v2902, %v2904
        %v2906 = vrot.slane %v2691, 2
        %v2907 = vrot.slane %v2589, 2
        %v2908 = vsel %vm720, %v2906, %v2907
        %v2909 = vrot.slane %v2707, 2
        %v2910 = vsel %vm720, %v2907, %v2909
        %v2911 = vrot.slane %v2692, 2
        %v2912 = vrot.slane %v2592, 2
        %v2913 = vsel %vm720, %v2911, %v2912
        %v2914 = vrot.slane %v2708, 2
        %v2915 = vsel %vm720, %v2912, %v2914
        %v2916 = vrot.slane %v2693, 2
        %v2917 = vrot.slane %v2595, 2
        %v2918 = vsel %vm720, %v2916, %v2917
        %v2919 = vrot.slane %v2709, 2
        %v2920 = vsel %vm720, %v2917, %v2919
        %v2953 = vrot.slane %v2694, 1
        %v2954 = vrot.slane %v2598, 1
        %v2955 = vsel %vm614, %v2953, %v2954
        %v2956 = vrot.slane %v2710, 1
        %v2957 = vsel %vm614, %v2954, %v2956
        %v2960 = vrot.slane %v2694, 2
        %v2961 = vrot.slane %v2598, 2
        %v2962 = vsel %vm720, %v2960, %v2961
        %v2963 = vrot.slane %v2710, 2
        %v2964 = vsel %vm720, %v2961, %v2963
        %v2967 = vpack.c.bf16 %v2553, %v2679
        %v2968 = vpack.c.bf16 %v2745, %v2743
        %v2969 = vpack.c.bf16 %v2850, %v2848
        %v2970 = vpack.c.bf16 %v2556, %v2680
        %v2971 = vpack.c.bf16 %v2750, %v2748
        %v2972 = vpack.c.bf16 %v2855, %v2853
        %v2973 = vpack.c.bf16 %v2559, %v2681
        %v2974 = vpack.c.bf16 %v2755, %v2753
        %v2975 = vpack.c.bf16 %v2860, %v2858
        %v2976 = vpack.c.bf16 %v2562, %v2682
        %v2977 = vpack.c.bf16 %v2760, %v2758
        %v2978 = vpack.c.bf16 %v2865, %v2863
        %v2979 = vpack.c.bf16 %v2565, %v2683
        %v2980 = vpack.c.bf16 %v2765, %v2763
        %v2981 = vpack.c.bf16 %v2870, %v2868
        %v2982 = vpack.c.bf16 %v2568, %v2684
        %v2983 = vpack.c.bf16 %v2770, %v2768
        %v2984 = vpack.c.bf16 %v2875, %v2873
        %v2985 = vpack.c.bf16 %v2571, %v2685
        %v2986 = vpack.c.bf16 %v2775, %v2773
        %v2987 = vpack.c.bf16 %v2880, %v2878
        %v2988 = vpack.c.bf16 %v2574, %v2686
        %v2989 = vpack.c.bf16 %v2780, %v2778
        %v2990 = vpack.c.bf16 %v2885, %v2883
        %v2991 = vpack.c.bf16 %v2577, %v2687
        %v2992 = vpack.c.bf16 %v2785, %v2783
        %v2993 = vpack.c.bf16 %v2890, %v2888
        %v2994 = vpack.c.bf16 %v2580, %v2688
        %v2995 = vpack.c.bf16 %v2790, %v2788
        %v2996 = vpack.c.bf16 %v2895, %v2893
        %v2997 = vpack.c.bf16 %v2583, %v2689
        %v2998 = vpack.c.bf16 %v2795, %v2793
        %v2999 = vpack.c.bf16 %v2900, %v2898
        %v3000 = vpack.c.bf16 %v2586, %v2690
        %v3001 = vpack.c.bf16 %v2800, %v2798
        %v3002 = vpack.c.bf16 %v2905, %v2903
        %v3003 = vpack.c.bf16 %v2589, %v2691
        %v3004 = vpack.c.bf16 %v2805, %v2803
        %v3005 = vpack.c.bf16 %v2910, %v2908
        %v3006 = vpack.c.bf16 %v2592, %v2692
        %v3007 = vpack.c.bf16 %v2810, %v2808
        %v3008 = vpack.c.bf16 %v2915, %v2913
        %v3009 = vpack.c.bf16 %v2595, %v2693
        %v3010 = vpack.c.bf16 %v2815, %v2813
        %v3011 = vpack.c.bf16 %v2920, %v2918
        %v3012 = vpack.c.bf16 %v2598, %v2694
        %v3013 = vpack.c.bf16 %v2957, %v2955
        %v3014 = vpack.c.bf16 %v2964, %v2962
        %v3015 = vld [vmem:[#allocation7] sm:$0xf]
        %v3016 = vld [vmem:[#allocation7 + $0x4] sm:$0xf]
        %v3017 = vld [vmem:[#allocation7 + $0x8] sm:$0xf]
        %v3018 = vld [vmem:[#allocation7 + $0xc] sm:$0xf]
        %v3019 = vld [vmem:[#allocation7 + $0x10] sm:$0xf]
        %v3020 = vld [vmem:[#allocation7 + $0x14] sm:$0xf]
        %v3021 = vld [vmem:[#allocation7 + $0x18] sm:$0xf]
        %v3022 = vld [vmem:[#allocation7 + $0x1c] sm:$0xf]
        %v3023 = vld [vmem:[#allocation7 + $0x20] sm:$0xf]
        %v3024 = vld [vmem:[#allocation7 + $0x24] sm:$0xf]
        %v3025 = vld [vmem:[#allocation7 + $0x28] sm:$0xf]
        %v3026 = vld [vmem:[#allocation7 + $0x2c] sm:$0xf]
        %v3027 = vld [vmem:[#allocation7 + $0x30] sm:$0xf]
        %v3028 = vld [vmem:[#allocation7 + $0x34] sm:$0xf]
        %v3029 = vld [vmem:[#allocation7 + $0x38] sm:$0xf]
        %v3030 = vld [vmem:[#allocation7 + $0x3c] sm:$0xf]
        %v3031 = vld [vmem:[#allocation7 + $0x40] sm:$0xf]
        %v3032 = vld [vmem:[#allocation7 + $0x44] sm:$0xf]
        %v3033 = vld [vmem:[#allocation7 + $0x48] sm:$0xf]
        %v3034 = vld [vmem:[#allocation7 + $0x4c] sm:$0xf]
        %v3035 = vld [vmem:[#allocation7 + $0x50] sm:$0xf]
        %v3036 = vld [vmem:[#allocation7 + $0x54] sm:$0xf]
        %v3037 = vld [vmem:[#allocation7 + $0x58] sm:$0xf]
        %v3038 = vld [vmem:[#allocation7 + $0x5c] sm:$0xf]
        %v3039 = vld [vmem:[#allocation7 + $0x60] sm:$0xf]
        %v3040 = vld [vmem:[#allocation7 + $0x64] sm:$0xf]
        %v3041 = vld [vmem:[#allocation7 + $0x68] sm:$0xf]
        %v3042 = vld [vmem:[#allocation7 + $0x6c] sm:$0xf]
        %v3043 = vld [vmem:[#allocation7 + $0x70] sm:$0xf]
        %v3044 = vld [vmem:[#allocation7 + $0x74] sm:$0xf]
        %v3045 = vld [vmem:[#allocation7 + $0x78] sm:$0xf]
        %v3046 = vld [vmem:[#allocation7 + $0x7c] sm:$0xf]
        %v3047 = vld [vmem:[#allocation7 + $0x80] sm:$0xf]
        %v3048 = vld [vmem:[#allocation7 + $0x84] sm:$0xf]
        %v3049 = vld [vmem:[#allocation7 + $0x88] sm:$0xf]
        %v3050 = vld [vmem:[#allocation7 + $0x8c] sm:$0xf]
        %v3051 = vld [vmem:[#allocation7 + $0x90] sm:$0xf]
        %v3052 = vld [vmem:[#allocation7 + $0x94] sm:$0xf]
        %v3053 = vld [vmem:[#allocation7 + $0x98] sm:$0xf]
        %v3054 = vld [vmem:[#allocation7 + $0x9c] sm:$0xf]
        %v3055 = vld [vmem:[#allocation7 + $0xa0] sm:$0xf]
        %v3056 = vld [vmem:[#allocation7 + $0xa4] sm:$0xf]
        %v3057 = vld [vmem:[#allocation7 + $0xa8] sm:$0xf]
        %v3058 = vld [vmem:[#allocation7 + $0xac] sm:$0xf]
        %v3059 = vld [vmem:[#allocation7 + $0xb0] sm:$0xf]
        %v3060 = vld [vmem:[#allocation7 + $0xb4] sm:$0xf]
        %v3061 = vld [vmem:[#allocation7 + $0xb8] sm:$0xf]
        %v3062 = vld [vmem:[#allocation7 + $0xbc] sm:$0xf]
        %v3063 = vld [vmem:[#allocation7 + $0xc0] sm:$0xf]
        %v3064 = vld [vmem:[#allocation7 + $0xc4] sm:$0xf]
        %v3065 = vld [vmem:[#allocation7 + $0xc8] sm:$0xf]
        %v3066 = vld [vmem:[#allocation7 + $0xcc] sm:$0xf]
        %v3067 = vld [vmem:[#allocation7 + $0xd0] sm:$0xf]
        %v3068 = vld [vmem:[#allocation7 + $0xd4] sm:$0xf]
        %v3069 = vld [vmem:[#allocation7 + $0xd8] sm:$0xf]
        %v3070 = vld [vmem:[#allocation7 + $0xdc] sm:$0xf]
        %v3071 = vld [vmem:[#allocation7 + $0xe0] sm:$0xf]
        %v3072 = vld [vmem:[#allocation7 + $0xe4] sm:$0xf]
        %v3073 = vld [vmem:[#allocation7 + $0xe8] sm:$0xf]
        %v3074 = vld [vmem:[#allocation7 + $0xec] sm:$0xf]
        %v3075 = vld [vmem:[#allocation7 + $0xf0] sm:$0xf]
        %v3076 = vld [vmem:[#allocation7 + $0xf4] sm:$0xf]
        %v3077 = vld [vmem:[#allocation7 + $0xf8] sm:$0xf]
        %v3078 = vld [vmem:[#allocation7 + $0xfc] sm:$0xf]
        %v3079 = vld [vmem:[#allocation7 + $0x100] sm:$0xf]
        %v3080 = vld [vmem:[#allocation7 + $0x104] sm:$0xf]
        %v3081 = vld [vmem:[#allocation7 + $0x108] sm:$0xf]
        %v3082 = vld [vmem:[#allocation7 + $0x10c] sm:$0xf]
        %v3083 = vld [vmem:[#allocation7 + $0x110] sm:$0xf]
        %v3084 = vld [vmem:[#allocation7 + $0x114] sm:$0xf]
        %v3085 = vld [vmem:[#allocation7 + $0x118] sm:$0xf]
        %v3086 = vld [vmem:[#allocation7 + $0x11c] sm:$0xf]
        %v3087 = vld [vmem:[#allocation7 + $0x120] sm:$0xf]
        %v3088 = vld [vmem:[#allocation7 + $0x124] sm:$0xf]
        %v3089 = vld [vmem:[#allocation7 + $0x128] sm:$0xf]
        %v3090 = vld [vmem:[#allocation7 + $0x12c] sm:$0xf]
        %v3091 = vld [vmem:[#allocation7 + $0x130] sm:$0xf]
        %v3092 = vld [vmem:[#allocation7 + $0x134] sm:$0xf]
        %v3093 = vld [vmem:[#allocation7 + $0x138] sm:$0xf]
        %v3094 = vld [vmem:[#allocation7 + $0x13c] sm:$0xf]
        %v3095 = vld [vmem:[#allocation7 + $0x140] sm:$0xf]
        %v3096 = vld [vmem:[#allocation7 + $0x144] sm:$0xf]
        %v3097 = vld [vmem:[#allocation7 + $0x148] sm:$0xf]
        %v3098 = vld [vmem:[#allocation7 + $0x14c] sm:$0xf]
        %v3099 = vld [vmem:[#allocation7 + $0x150] sm:$0xf]
        %v3100 = vld [vmem:[#allocation7 + $0x154] sm:$0xf]
        %v3101 = vld [vmem:[#allocation7 + $0x158] sm:$0xf]
        %v3102 = vld [vmem:[#allocation7 + $0x15c] sm:$0xf]
        %v3103 = vld [vmem:[#allocation7 + $0x160] sm:$0xf]
        %v3104 = vld [vmem:[#allocation7 + $0x164] sm:$0xf]
        %v3105 = vld [vmem:[#allocation7 + $0x168] sm:$0xf]
        %v3106 = vld [vmem:[#allocation7 + $0x16c] sm:$0xf]
        %v3107 = vld [vmem:[#allocation7 + $0x170] sm:$0xf]
        %v3108 = vld [vmem:[#allocation7 + $0x174] sm:$0xf]
        %v3109 = vld [vmem:[#allocation7 + $0x178] sm:$0xf]
        %v3110 = vld [vmem:[#allocation7 + $0x17c] sm:$0xf]
        %v3111 = vld [vmem:[#allocation7 + $0x180] sm:$0xf]
        %v3112 = vld [vmem:[#allocation7 + $0x184] sm:$0xf]
        %v3113 = vld [vmem:[#allocation7 + $0x188] sm:$0xf]
        %v3114 = vld [vmem:[#allocation7 + $0x18c] sm:$0xf]
        %v3115 = vld [vmem:[#allocation7 + $0x190] sm:$0xf]
        %v3116 = vld [vmem:[#allocation7 + $0x194] sm:$0xf]
        %v3117 = vld [vmem:[#allocation7 + $0x198] sm:$0xf]
        %v3118 = vld [vmem:[#allocation7 + $0x19c] sm:$0xf]
        %v3119 = vld [vmem:[#allocation7 + $0x1a0] sm:$0xf]
        %v3120 = vld [vmem:[#allocation7 + $0x1a4] sm:$0xf]
        %v3121 = vld [vmem:[#allocation7 + $0x1a8] sm:$0xf]
        %v3122 = vld [vmem:[#allocation7 + $0x1ac] sm:$0xf]
        %v3123 = vld [vmem:[#allocation7 + $0x1b0] sm:$0xf]
        %v3124 = vld [vmem:[#allocation7 + $0x1b4] sm:$0xf]
        %v3125 = vld [vmem:[#allocation7 + $0x1b8] sm:$0xf]
        %v3126 = vld [vmem:[#allocation7 + $0x1bc] sm:$0xf]
        %v3127 = vld [vmem:[#allocation7 + $0x1c0] sm:$0xf]
        %v3128 = vld [vmem:[#allocation7 + $0x1c4] sm:$0xf]
        %v3129 = vld [vmem:[#allocation7 + $0x1c8] sm:$0xf]
        %v3130 = vld [vmem:[#allocation7 + $0x1cc] sm:$0xf]
        %v3131 = vld [vmem:[#allocation7 + $0x1d0] sm:$0xf]
        %v3132 = vld [vmem:[#allocation7 + $0x1d4] sm:$0xf]
        %v3133 = vld [vmem:[#allocation7 + $0x1d8] sm:$0xf]
        %v3134 = vld [vmem:[#allocation7 + $0x1dc] sm:$0xf]
        %v3135 = vld [vmem:[#allocation7 + $0x1e0] sm:$0xf]
        %v3136 = vld [vmem:[#allocation7 + $0x1e4] sm:$0xf]
        %v3137 = vld [vmem:[#allocation7 + $0x1e8] sm:$0xf]
        %v3138 = vld [vmem:[#allocation7 + $0x1ec] sm:$0xf]
        %v3139 = vld [vmem:[#allocation7 + $0x1f0] sm:$0xf]
        %v3140 = vld [vmem:[#allocation7 + $0x1f4] sm:$0xf]
        %v3141 = vld [vmem:[#allocation7 + $0x1f8] sm:$0xf]
        %v3142 = vld [vmem:[#allocation7 + $0x1fc] sm:$0xf]
        %v3143 = vld [vmem:[#allocation7 + $0x200] sm:$0xf]
        %v3144 = vld [vmem:[#allocation7 + $0x204] sm:$0xf]
        %v3145 = vld [vmem:[#allocation7 + $0x208] sm:$0xf]
        %v3146 = vld [vmem:[#allocation7 + $0x20c] sm:$0xf]
        %v3147 = vld [vmem:[#allocation7 + $0x210] sm:$0xf]
        %v3148 = vld [vmem:[#allocation7 + $0x214] sm:$0xf]
        %v3149 = vld [vmem:[#allocation7 + $0x218] sm:$0xf]
        %v3150 = vld [vmem:[#allocation7 + $0x21c] sm:$0xf]
        %v3151 = vld [vmem:[#allocation7 + $0x220] sm:$0xf]
        %v3152 = vld [vmem:[#allocation7 + $0x224] sm:$0xf]
        %v3153 = vld [vmem:[#allocation7 + $0x228] sm:$0xf]
        %v3154 = vld [vmem:[#allocation7 + $0x22c] sm:$0xf]
        %v3155 = vld [vmem:[#allocation7 + $0x230] sm:$0xf]
        %v3156 = vld [vmem:[#allocation7 + $0x234] sm:$0xf]
        %v3157 = vld [vmem:[#allocation7 + $0x238] sm:$0xf]
        %v3158 = vld [vmem:[#allocation7 + $0x23c] sm:$0xf]
        %v3159 = vld [vmem:[%s4] sm:$0x1]
        %v3161 = vlaneseq
        %v3162 = vshrl.u32 %v3161, 7
        %v3163 = vsub.s32 0, %v3162
        %v3164 = vrot.slane %v3159, %v3163
        %v3310 = vunpack.c.l.b16 %v3015
        %v3311 = vunpack.c.l.b16 %v3016
        %v3312 = vunpack.c.l.b16 %v3017
        %v3313 = vunpack.c.l.b16 %v3018
        %v3314 = vunpack.c.l.b16 %v3019
        %v3315 = vunpack.c.l.b16 %v3020
        %v3316 = vunpack.c.l.b16 %v3021
        %v3317 = vunpack.c.l.b16 %v3022
        %v3318 = vunpack.c.l.b16 %v3023
        %v3319 = vunpack.c.l.b16 %v3024
        %v3320 = vunpack.c.l.b16 %v3025
        %v3321 = vunpack.c.l.b16 %v3026
        %v3322 = vunpack.c.l.b16 %v3027
        %v3323 = vunpack.c.l.b16 %v3028
        %v3324 = vunpack.c.l.b16 %v3029
        %v3325 = vunpack.c.l.b16 %v3030
        %v3326 = vunpack.c.l.b16 %v3031
        %v3327 = vunpack.c.l.b16 %v3032
        %v3328 = vunpack.c.l.b16 %v3033
        %v3329 = vunpack.c.l.b16 %v3034
        %v3330 = vunpack.c.l.b16 %v3035
        %v3331 = vunpack.c.l.b16 %v3036
        %v3332 = vunpack.c.l.b16 %v3037
        %v3333 = vunpack.c.l.b16 %v3038
        %v3334 = vunpack.c.l.b16 %v3039
        %v3335 = vunpack.c.l.b16 %v3040
        %v3336 = vunpack.c.l.b16 %v3041
        %v3337 = vunpack.c.l.b16 %v3042
        %v3338 = vunpack.c.l.b16 %v3043
        %v3339 = vunpack.c.l.b16 %v3044
        %v3340 = vunpack.c.l.b16 %v3045
        %v3341 = vunpack.c.l.b16 %v3046
        %v3342 = vunpack.c.l.b16 %v3047
        %v3343 = vunpack.c.l.b16 %v3048
        %v3344 = vunpack.c.l.b16 %v3049
        %v3345 = vunpack.c.l.b16 %v3050
        %v3346 = vunpack.c.l.b16 %v3051
        %v3347 = vunpack.c.l.b16 %v3052
        %v3348 = vunpack.c.l.b16 %v3053
        %v3349 = vunpack.c.l.b16 %v3054
        %v3350 = vunpack.c.l.b16 %v3055
        %v3351 = vunpack.c.l.b16 %v3056
        %v3352 = vunpack.c.l.b16 %v3057
        %v3353 = vunpack.c.l.b16 %v3058
        %v3354 = vunpack.c.l.b16 %v3059
        %v3355 = vunpack.c.l.b16 %v3060
        %v3356 = vunpack.c.l.b16 %v3061
        %v3357 = vunpack.c.l.b16 %v3062
        %v3358 = vunpack.c.l.b16 %v3063
        %v3359 = vunpack.c.l.b16 %v3064
        %v3360 = vunpack.c.l.b16 %v3065
        %v3361 = vunpack.c.l.b16 %v3066
        %v3362 = vunpack.c.l.b16 %v3067
        %v3363 = vunpack.c.l.b16 %v3068
        %v3364 = vunpack.c.l.b16 %v3069
        %v3365 = vunpack.c.l.b16 %v3070
        %v3366 = vunpack.c.l.b16 %v3071
        %v3367 = vunpack.c.l.b16 %v3072
        %v3368 = vunpack.c.l.b16 %v3073
        %v3369 = vunpack.c.l.b16 %v3074
        %v3370 = vunpack.c.l.b16 %v3075
        %v3371 = vunpack.c.l.b16 %v3076
        %v3372 = vunpack.c.l.b16 %v3077
        %v3373 = vunpack.c.l.b16 %v3078
        %v3374 = vunpack.c.l.b16 %v3079
        %v3375 = vunpack.c.l.b16 %v3080
        %v3376 = vunpack.c.l.b16 %v3081
        %v3377 = vunpack.c.l.b16 %v3082
        %v3378 = vunpack.c.l.b16 %v3083
        %v3379 = vunpack.c.l.b16 %v3084
        %v3380 = vunpack.c.l.b16 %v3085
        %v3381 = vunpack.c.l.b16 %v3086
        %v3382 = vunpack.c.l.b16 %v3087
        %v3383 = vunpack.c.l.b16 %v3088
        %v3384 = vunpack.c.l.b16 %v3089
        %v3385 = vunpack.c.l.b16 %v3090
        %v3386 = vunpack.c.l.b16 %v3091
        %v3387 = vunpack.c.l.b16 %v3092
        %v3388 = vunpack.c.l.b16 %v3093
        %v3389 = vunpack.c.l.b16 %v3094
        %v3390 = vunpack.c.l.b16 %v3095
        %v3391 = vunpack.c.l.b16 %v3096
        %v3392 = vunpack.c.l.b16 %v3097
        %v3393 = vunpack.c.l.b16 %v3098
        %v3394 = vunpack.c.l.b16 %v3099
        %v3395 = vunpack.c.l.b16 %v3100
        %v3396 = vunpack.c.l.b16 %v3101
        %v3397 = vunpack.c.l.b16 %v3102
        %v3398 = vunpack.c.l.b16 %v3103
        %v3399 = vunpack.c.l.b16 %v3104
        %v3400 = vunpack.c.l.b16 %v3105
        %v3401 = vunpack.c.l.b16 %v3106
        %v3402 = vunpack.c.l.b16 %v3107
        %v3403 = vunpack.c.l.b16 %v3108
        %v3404 = vunpack.c.l.b16 %v3109
        %v3405 = vunpack.c.l.b16 %v3110
        %v3406 = vunpack.c.l.b16 %v3111
        %v3407 = vunpack.c.l.b16 %v3112
        %v3408 = vunpack.c.l.b16 %v3113
        %v3409 = vunpack.c.l.b16 %v3114
        %v3410 = vunpack.c.l.b16 %v3115
        %v3411 = vunpack.c.l.b16 %v3116
        %v3412 = vunpack.c.l.b16 %v3117
        %v3413 = vunpack.c.l.b16 %v3118
        %v3414 = vunpack.c.l.b16 %v3119
        %v3415 = vunpack.c.l.b16 %v3120
        %v3416 = vunpack.c.l.b16 %v3121
        %v3417 = vunpack.c.l.b16 %v3122
        %v3418 = vunpack.c.l.b16 %v3123
        %v3419 = vunpack.c.l.b16 %v3124
        %v3420 = vunpack.c.l.b16 %v3125
        %v3421 = vunpack.c.l.b16 %v3126
        %v3422 = vunpack.c.l.b16 %v3127
        %v3423 = vunpack.c.l.b16 %v3128
        %v3424 = vunpack.c.l.b16 %v3129
        %v3425 = vunpack.c.l.b16 %v3130
        %v3426 = vunpack.c.l.b16 %v3131
        %v3427 = vunpack.c.l.b16 %v3132
        %v3428 = vunpack.c.l.b16 %v3133
        %v3429 = vunpack.c.l.b16 %v3134
        %v3430 = vunpack.c.l.b16 %v3135
        %v3431 = vunpack.c.l.b16 %v3136
        %v3432 = vunpack.c.l.b16 %v3137
        %v3433 = vunpack.c.l.b16 %v3138
        %v3434 = vunpack.c.l.b16 %v3139
        %v3435 = vunpack.c.l.b16 %v3140
        %v3436 = vunpack.c.l.b16 %v3141
        %v3437 = vunpack.c.l.b16 %v3142
        %v3438 = vunpack.c.l.b16 %v3143
        %v3439 = vunpack.c.l.b16 %v3144
        %v3440 = vunpack.c.l.b16 %v3145
        %v3441 = vunpack.c.l.b16 %v3146
        %v3442 = vunpack.c.l.b16 %v3147
        %v3443 = vunpack.c.l.b16 %v3148
        %v3444 = vunpack.c.l.b16 %v3149
        %v3445 = vunpack.c.l.b16 %v3150
        %v3446 = vunpack.c.l.b16 %v3151
        %v3447 = vunpack.c.l.b16 %v3152
        %v3448 = vunpack.c.l.b16 %v3153
        %v3449 = vunpack.c.l.b16 %v3154
        %v3450 = vunpack.c.l.b16 %v3155
        %v3451 = vunpack.c.l.b16 %v3156
        %v3452 = vunpack.c.l.b16 %v3157
        %v3453 = vunpack.c.l.b16 %v3158
        %v3454 = vpack.c.b16 %v3311, %v3310
        %v3455 = vpack.c.b16 %v3313, %v3312
        %v3456 = vpack.c.b16 %v3315, %v3314
        %v3457 = vpack.c.b16 %v3317, %v3316
        %v3458 = vpack.c.b16 %v3319, %v3318
        %v3459 = vpack.c.b16 %v3321, %v3320
        %v3460 = vpack.c.b16 %v3323, %v3322
        %v3461 = vpack.c.b16 %v3325, %v3324
        %v3462 = vpack.c.b16 %v3327, %v3326
        %v3463 = vpack.c.b16 %v3329, %v3328
        %v3464 = vpack.c.b16 %v3331, %v3330
        %v3465 = vpack.c.b16 %v3333, %v3332
        %v3466 = vpack.c.b16 %v3335, %v3334
        %v3467 = vpack.c.b16 %v3337, %v3336
        %v3468 = vpack.c.b16 %v3339, %v3338
        %v3469 = vpack.c.b16 %v3341, %v3340
        %v3470 = vpack.c.b16 %v3343, %v3342
        %v3471 = vpack.c.b16 %v3345, %v3344
        %v3472 = vpack.c.b16 %v3347, %v3346
        %v3473 = vpack.c.b16 %v3349, %v3348
        %v3474 = vpack.c.b16 %v3351, %v3350
        %v3475 = vpack.c.b16 %v3353, %v3352
        %v3476 = vpack.c.b16 %v3355, %v3354
        %v3477 = vpack.c.b16 %v3357, %v3356
        %v3478 = vpack.c.b16 %v3359, %v3358
        %v3479 = vpack.c.b16 %v3361, %v3360
        %v3480 = vpack.c.b16 %v3363, %v3362
        %v3481 = vpack.c.b16 %v3365, %v3364
        %v3482 = vpack.c.b16 %v3367, %v3366
        %v3483 = vpack.c.b16 %v3369, %v3368
        %v3484 = vpack.c.b16 %v3371, %v3370
        %v3485 = vpack.c.b16 %v3373, %v3372
        %v3486 = vpack.c.b16 %v3375, %v3374
        %v3487 = vpack.c.b16 %v3377, %v3376
        %v3488 = vpack.c.b16 %v3379, %v3378
        %v3489 = vpack.c.b16 %v3381, %v3380
        %v3490 = vpack.c.b16 %v3383, %v3382
        %v3491 = vpack.c.b16 %v3385, %v3384
        %v3492 = vpack.c.b16 %v3387, %v3386
        %v3493 = vpack.c.b16 %v3389, %v3388
        %v3494 = vpack.c.b16 %v3391, %v3390
        %v3495 = vpack.c.b16 %v3393, %v3392
        %v3496 = vpack.c.b16 %v3395, %v3394
        %v3497 = vpack.c.b16 %v3397, %v3396
        %v3498 = vpack.c.b16 %v3399, %v3398
        %v3499 = vpack.c.b16 %v3401, %v3400
        %v3500 = vpack.c.b16 %v3403, %v3402
        %v3501 = vpack.c.b16 %v3405, %v3404
        %v3502 = vpack.c.b16 %v3407, %v3406
        %v3503 = vpack.c.b16 %v3409, %v3408
        %v3504 = vpack.c.b16 %v3411, %v3410
        %v3505 = vpack.c.b16 %v3413, %v3412
        %v3506 = vpack.c.b16 %v3415, %v3414
        %v3507 = vpack.c.b16 %v3417, %v3416
        %v3508 = vpack.c.b16 %v3419, %v3418
        %v3509 = vpack.c.b16 %v3421, %v3420
        %v3510 = vpack.c.b16 %v3423, %v3422
        %v3511 = vpack.c.b16 %v3425, %v3424
        %v3512 = vpack.c.b16 %v3427, %v3426
        %v3513 = vpack.c.b16 %v3429, %v3428
        %v3514 = vpack.c.b16 %v3431, %v3430
        %v3515 = vpack.c.b16 %v3433, %v3432
        %v3516 = vpack.c.b16 %v3435, %v3434
        %v3517 = vpack.c.b16 %v3437, %v3436
        %v3518 = vpack.c.b16 %v3439, %v3438
        %v3519 = vpack.c.b16 %v3441, %v3440
        %v3520 = vpack.c.b16 %v3443, %v3442
        %v3521 = vpack.c.b16 %v3445, %v3444
        %v3522 = vpack.c.b16 %v3447, %v3446
        %v3523 = vpack.c.b16 %v3449, %v3448
        %v3524 = vpack.c.b16 %v3451, %v3450
        %v3525 = vpack.c.b16 %v3453, %v3452
        %3598 = vmatprep.subr.bf16.mxu0 0
        %3599 = vmatpush1.bf16.msra.mxu0 %v3454
        %3600 = vmatprep.subr.bf16.mxu0 0
        %3601 = vmatpush1.bf16.msra.mxu0 %v3455
        %3602 = vmatprep.subr.bf16.mxu0 0
        %3603 = vmatpush1.bf16.msra.mxu0 %v3456
        %3604 = vmatprep.subr.bf16.mxu0 0
        %3605 = vmatpush1.bf16.msra.mxu0 %v3457
        %3606 = vmatprep.subr.bf16.mxu0 0
        %3607 = vmatpush1.bf16.msra.mxu0 %v3458
        %3608 = vmatprep.subr.bf16.mxu0 0
        %3609 = vmatpush1.bf16.msra.mxu0 %v3459
        %3610 = vmatprep.subr.bf16.mxu0 0
        %3611 = vmatpush1.bf16.msra.mxu0 %v3460
        %3612 = vmatprep.subr.bf16.mxu0 0
        %3613 = vmatpush1.bf16.msra.mxu0 %v3461
        %3614 = vmatprep.subr.bf16.mxu0 0
        %3615 = vmatpush1.bf16.msra.mxu0 %v3462
        %3616 = vmatprep.subr.bf16.mxu0 0
        %3617 = vmatpush1.bf16.msra.mxu0 %v3463
        %3618 = vmatprep.subr.bf16.mxu0 0
        %3619 = vmatpush1.bf16.msra.mxu0 %v3464
        %3620 = vmatprep.subr.bf16.mxu0 0
        %3621 = vmatpush1.bf16.msra.mxu0 %v3465
        %3622 = vmatprep.subr.bf16.mxu0 0
        %3623 = vmatpush1.bf16.msra.mxu0 %v3466
        %3624 = vmatprep.subr.bf16.mxu0 0
        %3625 = vmatpush1.bf16.msra.mxu0 %v3467
        %3626 = vmatprep.subr.bf16.mxu0 0
        %3627 = vmatpush1.bf16.msra.mxu0 %v3468
        %3628 = vmatprep.subr.bf16.mxu0 0
        %3629 = vmatpush1.bf16.msra.mxu0 %v3469
        %3630 = vmatprep.mubr.bf16.mxu0 %v2968
        %3631 = vmatmul.mubr.bf16.gmra.mrb[0].mxu0 %v2967
        %v3632 = vpop.f32.mrb[0].mxu0
        %v3633 = vadd.f32 %v3164, %v3632
        %v3634 = vpop.f32.mrb[0].mxu0
        %v3635 = vpop.f32.mrb[0].mxu0
        %v3636 = vadd.f32 %v3164, %v3635
        %v3637 = vpop.f32.mrb[0].mxu0
        %3638 = vmatprep.mubr.bf16.mxu0 %v2971
        %3639 = vmatmul.mubr.bf16.gmra.mrb[0].mxu0 %v2970
        %v3640 = vpop.f32.mrb[0].mxu0
        %v3641 = vadd.f32 %v3164, %v3640
        %v3642 = vpop.f32.mrb[0].mxu0
        %v3643 = vpop.f32.mrb[0].mxu0
        %v3644 = vadd.f32 %v3164, %v3643
        %v3645 = vpop.f32.mrb[0].mxu0
        %3646 = vmatprep.mubr.bf16.mxu0 %v2968
        %3647 = vmatmul.mubr.bf16.gmra.mrb[0].mxu0 %v2967
        %v3648 = vpop.f32.mrb[0].mxu0
        %v3649 = vadd.f32 %v3164, %v3648
        %v3650 = vpop.f32.mrb[0].mxu0
        %v3651 = vpop.f32.mrb[0].mxu0
        %v3652 = vadd.f32 %v3164, %v3651
        %v3653 = vpop.f32.mrb[0].mxu0
        %3654 = vmatprep.mubr.bf16.mxu0 %v2974
        %3655 = vmatmul.mubr.bf16.gmra.mrb[0].mxu0 %v2973
        %v3656 = vpop.f32.mrb[0].mxu0
        %v3657 = vadd.f32 %v3164, %v3656
        %v3658 = vpop.f32.mrb[0].mxu0
        %v3659 = vpop.f32.mrb[0].mxu0
        %v3660 = vadd.f32 %v3164, %v3659
        %v3661 = vpop.f32.mrb[0].mxu0
        %3662 = vmatprep.mubr.bf16.mxu0 %v2977
        %3663 = vmatmul.mubr.bf16.gmra.mrb[0].mxu0 %v2976
        %v3664 = vpop.f32.mrb[0].mxu0
        %v3665 = vadd.f32 %v3164, %v3664
        %v3666 = vpop.f32.mrb[0].mxu0
        %v3667 = vpop.f32.mrb[0].mxu0
        %v3668 = vadd.f32 %v3164, %v3667
        %v3669 = vpop.f32.mrb[0].mxu0
        %3670 = vmatprep.mubr.bf16.mxu0 %v2980
        %3671 = vmatmul.mubr.bf16.gmra.mrb[0].mxu0 %v2979
        %v3672 = vpop.f32.mrb[0].mxu0
        %v3673 = vadd.f32 %v3164, %v3672
        %v3674 = vpop.f32.mrb[0].mxu0
        %v3675 = vpop.f32.mrb[0].mxu0
        %v3676 = vadd.f32 %v3164, %v3675
        %v3677 = vpop.f32.mrb[0].mxu0
        %3678 = vmatprep.mubr.bf16.mxu0 %v2983
        %3679 = vmatmul.mubr.bf16.gmra.mrb[0].mxu0 %v2982
        %v3680 = vpop.f32.mrb[0].mxu0
        %v3681 = vadd.f32 %v3164, %v3680
        %v3682 = vpop.f32.mrb[0].mxu0
        %v3683 = vpop.f32.mrb[0].mxu0
        %v3684 = vadd.f32 %v3164, %v3683
        %v3685 = vpop.f32.mrb[0].mxu0
        %3686 = vmatprep.mubr.bf16.mxu0 %v2986
        %3687 = vmatmul.mubr.bf16.gmra.mrb[0].mxu0 %v2985
        %v3688 = vpop.f32.mrb[0].mxu0
        %v3689 = vadd.f32 %v3164, %v3688
        %v3690 = vpop.f32.mrb[0].mxu0
        %v3691 = vpop.f32.mrb[0].mxu0
        %v3692 = vadd.f32 %v3164, %v3691
        %v3693 = vpop.f32.mrb[0].mxu0
        %3694 = vmatprep.mubr.bf16.mxu0 %v2989
        %3695 = vmatmul.mubr.bf16.gmra.mrb[0].mxu0 %v2988
        %v3696 = vpop.f32.mrb[0].mxu0
        %v3697 = vadd.f32 %v3164, %v3696
        %v3698 = vpop.f32.mrb[0].mxu0
        %v3699 = vpop.f32.mrb[0].mxu0
        %v3700 = vadd.f32 %v3164, %v3699
        %v3701 = vpop.f32.mrb[0].mxu0
        %3702 = vmatprep.mubr.bf16.mxu0 %v2992
        %3703 = vmatmul.mubr.bf16.gmra.mrb[0].mxu0 %v2991
        %v3704 = vpop.f32.mrb[0].mxu0
        %v3705 = vadd.f32 %v3164, %v3704
        %v3706 = vpop.f32.mrb[0].mxu0
        %v3707 = vpop.f32.mrb[0].mxu0
        %v3708 = vadd.f32 %v3164, %v3707
        %v3709 = vpop.f32.mrb[0].mxu0
        %3710 = vmatprep.mubr.bf16.mxu0 %v2995
        %3711 = vmatmul.mubr.bf16.gmra.mrb[0].mxu0 %v2994
        %v3712 = vpop.f32.mrb[0].mxu0
        %v3713 = vadd.f32 %v3164, %v3712
        %v3714 = vpop.f32.mrb[0].mxu0
        %v3715 = vpop.f32.mrb[0].mxu0
        %v3716 = vadd.f32 %v3164, %v3715
        %v3717 = vpop.f32.mrb[0].mxu0
        %3718 = vmatprep.mubr.bf16.mxu0 %v2998
        %3719 = vmatmul.mubr.bf16.gmra.mrb[0].mxu0 %v2997
        %v3720 = vpop.f32.mrb[0].mxu0
        %v3721 = vadd.f32 %v3164, %v3720
        %v3722 = vpop.f32.mrb[0].mxu0
        %v3723 = vpop.f32.mrb[0].mxu0
        %v3724 = vadd.f32 %v3164, %v3723
        %v3725 = vpop.f32.mrb[0].mxu0
        %3726 = vmatprep.mubr.bf16.mxu0 %v3001
        %3727 = vmatmul.mubr.bf16.gmra.mrb[0].mxu0 %v3000
        %v3728 = vpop.f32.mrb[0].mxu0
        %v3729 = vadd.f32 %v3164, %v3728
        %v3730 = vpop.f32.mrb[0].mxu0
        %v3731 = vpop.f32.mrb[0].mxu0
        %v3732 = vadd.f32 %v3164, %v3731
        %v3733 = vpop.f32.mrb[0].mxu0
        %3734 = vmatprep.mubr.bf16.mxu0 %v3004
        %3735 = vmatmul.mubr.bf16.gmra.mrb[0].mxu0 %v3003
        %v3736 = vpop.f32.mrb[0].mxu0
        %v3737 = vadd.f32 %v3164, %v3736
        %v3738 = vpop.f32.mrb[0].mxu0
        %v3739 = vpop.f32.mrb[0].mxu0
        %v3740 = vadd.f32 %v3164, %v3739
        %v3741 = vpop.f32.mrb[0].mxu0
        %3742 = vmatprep.mubr.bf16.mxu0 %v3007
        %3743 = vmatmul.mubr.bf16.gmra.mrb[0].mxu0 %v3006
        %v3744 = vpop.f32.mrb[0].mxu0
        %v3745 = vadd.f32 %v3164, %v3744
        %v3746 = vpop.f32.mrb[0].mxu0
        %v3747 = vpop.f32.mrb[0].mxu0
        %v3748 = vadd.f32 %v3164, %v3747
        %v3749 = vpop.f32.mrb[0].mxu0
        %3750 = vmatprep.mubr.bf16.mxu0 %v3010
        %3751 = vmatmul.mubr.bf16.gmra.mrb[0].mxu0 %v3009
        %v3752 = vpop.f32.mrb[0].mxu0
        %v3753 = vadd.f32 %v3164, %v3752
        %v3754 = vpop.f32.mrb[0].mxu0
        %v3755 = vpop.f32.mrb[0].mxu0
        %v3756 = vadd.f32 %v3164, %v3755
        %v3757 = vpop.f32.mrb[0].mxu0
        %3758 = vdwg.mxu0
        %3759 = vmatprep.subr.bf16.mxu0 0
        %3760 = vmatpush1.bf16.msra.mxu0 %v3470
        %3761 = vmatprep.subr.bf16.mxu0 0
        %3762 = vmatpush1.bf16.msra.mxu0 %v3471
        %3763 = vmatprep.subr.bf16.mxu0 0
        %3764 = vmatpush1.bf16.msra.mxu0 %v3472
        %3765 = vmatprep.subr.bf16.mxu0 0
        %3766 = vmatpush1.bf16.msra.mxu0 %v3473
        %3767 = vmatprep.subr.bf16.mxu0 0
        %3768 = vmatpush1.bf16.msra.mxu0 %v3474
        %3769 = vmatprep.subr.bf16.mxu0 0
        %3770 = vmatpush1.bf16.msra.mxu0 %v3475
        %3771 = vmatprep.subr.bf16.mxu0 0
        %3772 = vmatpush1.bf16.msra.mxu0 %v3476
        %3773 = vmatprep.subr.bf16.mxu0 0
        %3774 = vmatpush1.bf16.msra.mxu0 %v3477
        %3775 = vmatprep.subr.bf16.mxu0 0
        %3776 = vmatpush1.bf16.msra.mxu0 %v3478
        %3777 = vmatprep.subr.bf16.mxu0 0
        %3778 = vmatpush1.bf16.msra.mxu0 %v3479
        %3779 = vmatprep.subr.bf16.mxu0 0
        %3780 = vmatpush1.bf16.msra.mxu0 %v3480
        %3781 = vmatprep.subr.bf16.mxu0 0
        %3782 = vmatpush1.bf16.msra.mxu0 %v3481
        %3783 = vmatprep.subr.bf16.mxu0 0
        %3784 = vmatpush1.bf16.msra.mxu0 %v3482
        %3785 = vmatprep.subr.bf16.mxu0 0
        %3786 = vmatpush1.bf16.msra.mxu0 %v3483
        %3787 = vmatprep.subr.bf16.mxu0 0
        %3788 = vmatpush1.bf16.msra.mxu0 %v3484
        %3789 = vmatprep.subr.bf16.mxu0 0
        %3790 = vmatpush1.bf16.msra.mxu0 %v3485
        %3791 = vmatprep.mubr.bf16.mxu0 %v2970
        %3792 = vmatmul.mubr.bf16.gmra.mrb[0].mxu0 %v2969
        %v3793 = vpop.f32.mrb[0].mxu0
        %v3794 = vadd.f32 %v3633, %v3793
        %v3795 = vpop.f32.mrb[0].mxu0
        %v3796 = vpop.f32.mrb[0].mxu0
        %v3797 = vadd.f32 %v3636, %v3796
        %v3798 = vpop.f32.mrb[0].mxu0
        %3799 = vmatprep.mubr.bf16.mxu0 %v2967
        %3800 = vmatmul.mubr.bf16.gmra.mrb[0].mxu0 %v2972
        %v3801 = vpop.f32.mrb[0].mxu0
        %v3802 = vadd.f32 %v3641, %v3801
        %v3803 = vpop.f32.mrb[0].mxu0
        %v3804 = vpop.f32.mrb[0].mxu0
        %v3805 = vadd.f32 %v3644, %v3804
        %v3806 = vpop.f32.mrb[0].mxu0
        %3807 = vmatprep.mubr.bf16.mxu0 %v2973
        %3808 = vmatmul.mubr.bf16.gmra.mrb[0].mxu0 %v2969
        %v3809 = vpop.f32.mrb[0].mxu0
        %v3810 = vadd.f32 %v3649, %v3809
        %v3811 = vpop.f32.mrb[0].mxu0
        %v3812 = vpop.f32.mrb[0].mxu0
        %v3813 = vadd.f32 %v3652, %v3812
        %v3814 = vpop.f32.mrb[0].mxu0
        %3815 = vmatprep.mubr.bf16.mxu0 %v2976
        %3816 = vmatmul.mubr.bf16.gmra.mrb[0].mxu0 %v2975
        %v3817 = vpop.f32.mrb[0].mxu0
        %v3818 = vadd.f32 %v3657, %v3817
        %v3819 = vpop.f32.mrb[0].mxu0
        %v3820 = vpop.f32.mrb[0].mxu0
        %v3821 = vadd.f32 %v3660, %v3820
        %v3822 = vpop.f32.mrb[0].mxu0
        %3823 = vmatprep.mubr.bf16.mxu0 %v2979
        %3824 = vmatmul.mubr.bf16.gmra.mrb[0].mxu0 %v2978
        %v3825 = vpop.f32.mrb[0].mxu0
        %v3826 = vadd.f32 %v3665, %v3825
        %v3827 = vpop.f32.mrb[0].mxu0
        %v3828 = vpop.f32.mrb[0].mxu0
        %v3829 = vadd.f32 %v3668, %v3828
        %v3830 = vpop.f32.mrb[0].mxu0
        %3831 = vmatprep.mubr.bf16.mxu0 %v2982
        %3832 = vmatmul.mubr.bf16.gmra.mrb[0].mxu0 %v2981
        %v3833 = vpop.f32.mrb[0].mxu0
        %v3834 = vadd.f32 %v3673, %v3833
        %v3835 = vpop.f32.mrb[0].mxu0
        %v3836 = vpop.f32.mrb[0].mxu0
        %v3837 = vadd.f32 %v3676, %v3836
        %v3838 = vpop.f32.mrb[0].mxu0
        %3839 = vmatprep.mubr.bf16.mxu0 %v2985
        %3840 = vmatmul.mubr.bf16.gmra.mrb[0].mxu0 %v2984
        %v3841 = vpop.f32.mrb[0].mxu0
        %v3842 = vadd.f32 %v3681, %v3841
        %v3843 = vpop.f32.mrb[0].mxu0
        %v3844 = vpop.f32.mrb[0].mxu0
        %v3845 = vadd.f32 %v3684, %v3844
        %v3846 = vpop.f32.mrb[0].mxu0
        %3847 = vmatprep.mubr.bf16.mxu0 %v2988
        %3848 = vmatmul.mubr.bf16.gmra.mrb[0].mxu0 %v2987
        %v3849 = vpop.f32.mrb[0].mxu0
        %v3850 = vadd.f32 %v3689, %v3849
        %v3851 = vpop.f32.mrb[0].mxu0
        %v3852 = vpop.f32.mrb[0].mxu0
        %v3853 = vadd.f32 %v3692, %v3852
        %v3854 = vpop.f32.mrb[0].mxu0
        %3855 = vmatprep.mubr.bf16.mxu0 %v2991
        %3856 = vmatmul.mubr.bf16.gmra.mrb[0].mxu0 %v2990
        %v3857 = vpop.f32.mrb[0].mxu0
        %v3858 = vadd.f32 %v3697, %v3857
        %v3859 = vpop.f32.mrb[0].mxu0
        %v3860 = vpop.f32.mrb[0].mxu0
        %v3861 = vadd.f32 %v3700, %v3860
        %v3862 = vpop.f32.mrb[0].mxu0
        %3863 = vmatprep.mubr.bf16.mxu0 %v2994
        %3864 = vmatmul.mubr.bf16.gmra.mrb[0].mxu0 %v2993
        %v3865 = vpop.f32.mrb[0].mxu0
        %v3866 = vadd.f32 %v3705, %v3865
        %v3867 = vpop.f32.mrb[0].mxu0
        %v3868 = vpop.f32.mrb[0].mxu0
        %v3869 = vadd.f32 %v3708, %v3868
        %v3870 = vpop.f32.mrb[0].mxu0
        %3871 = vmatprep.mubr.bf16.mxu0 %v2997
        %3872 = vmatmul.mubr.bf16.gmra.mrb[0].mxu0 %v2996
        %v3873 = vpop.f32.mrb[0].mxu0
        %v3874 = vadd.f32 %v3713, %v3873
        %v3875 = vpop.f32.mrb[0].mxu0
        %v3876 = vpop.f32.mrb[0].mxu0
        %v3877 = vadd.f32 %v3716, %v3876
        %v3878 = vpop.f32.mrb[0].mxu0
        %3879 = vmatprep.mubr.bf16.mxu0 %v3000
        %3880 = vmatmul.mubr.bf16.gmra.mrb[0].mxu0 %v2999
        %v3881 = vpop.f32.mrb[0].mxu0
        %v3882 = vadd.f32 %v3721, %v3881
        %v3883 = vpop.f32.mrb[0].mxu0
        %v3884 = vpop.f32.mrb[0].mxu0
        %v3885 = vadd.f32 %v3724, %v3884
        %v3886 = vpop.f32.mrb[0].mxu0
        %3887 = vmatprep.mubr.bf16.mxu0 %v3003
        %3888 = vmatmul.mubr.bf16.gmra.mrb[0].mxu0 %v3002
        %v3889 = vpop.f32.mrb[0].mxu0
        %v3890 = vadd.f32 %v3729, %v3889
        %v3891 = vpop.f32.mrb[0].mxu0
        %v3892 = vpop.f32.mrb[0].mxu0
        %v3893 = vadd.f32 %v3732, %v3892
        %v3894 = vpop.f32.mrb[0].mxu0
        %3895 = vmatprep.mubr.bf16.mxu0 %v3006
        %3896 = vmatmul.mubr.bf16.gmra.mrb[0].mxu0 %v3005
        %v3897 = vpop.f32.mrb[0].mxu0
        %v3898 = vadd.f32 %v3737, %v3897
        %v3899 = vpop.f32.mrb[0].mxu0
        %v3900 = vpop.f32.mrb[0].mxu0
        %v3901 = vadd.f32 %v3740, %v3900
        %v3902 = vpop.f32.mrb[0].mxu0
        %3903 = vmatprep.mubr.bf16.mxu0 %v3009
        %3904 = vmatmul.mubr.bf16.gmra.mrb[0].mxu0 %v3008
        %v3905 = vpop.f32.mrb[0].mxu0
        %v3906 = vadd.f32 %v3745, %v3905
        %v3907 = vpop.f32.mrb[0].mxu0
        %v3908 = vpop.f32.mrb[0].mxu0
        %v3909 = vadd.f32 %v3748, %v3908
        %v3910 = vpop.f32.mrb[0].mxu0
        %3911 = vmatprep.mubr.bf16.mxu0 %v3012
        %3912 = vmatmul.mubr.bf16.gmra.mrb[0].mxu0 %v3011
        %v3913 = vpop.f32.mrb[0].mxu0
        %v3914 = vadd.f32 %v3753, %v3913
        %v3915 = vpop.f32.mrb[0].mxu0
        %v3916 = vpop.f32.mrb[0].mxu0
        %v3917 = vadd.f32 %v3756, %v3916
        %v3918 = vpop.f32.mrb[0].mxu0
        %3919 = vdwg.mxu0
        %3920 = vmatprep.subr.bf16.mxu0 0
        %3921 = vmatpush1.bf16.msra.mxu0 %v3486
        %3922 = vmatprep.subr.bf16.mxu0 0
        %3923 = vmatpush1.bf16.msra.mxu0 %v3487
        %3924 = vmatprep.subr.bf16.mxu0 0
        %3925 = vmatpush1.bf16.msra.mxu0 %v3488
        %3926 = vmatprep.subr.bf16.mxu0 0
        %3927 = vmatpush1.bf16.msra.mxu0 %v3489
        %3928 = vmatprep.subr.bf16.mxu0 0
        %3929 = vmatpush1.bf16.msra.mxu0 %v3490
        %3930 = vmatprep.subr.bf16.mxu0 0
        %3931 = vmatpush1.bf16.msra.mxu0 %v3491
        %3932 = vmatprep.subr.bf16.mxu0 0
        %3933 = vmatpush1.bf16.msra.mxu0 %v3492
        %3934 = vmatprep.subr.bf16.mxu0 0
        %3935 = vmatpush1.bf16.msra.mxu0 %v3493
        %3936 = vmatprep.subr.bf16.mxu0 0
        %3937 = vmatpush1.bf16.msra.mxu0 %v3494
        %3938 = vmatprep.subr.bf16.mxu0 0
        %3939 = vmatpush1.bf16.msra.mxu0 %v3495
        %3940 = vmatprep.subr.bf16.mxu0 0
        %3941 = vmatpush1.bf16.msra.mxu0 %v3496
        %3942 = vmatprep.subr.bf16.mxu0 0
        %3943 = vmatpush1.bf16.msra.mxu0 %v3497
        %3944 = vmatprep.subr.bf16.mxu0 0
        %3945 = vmatpush1.bf16.msra.mxu0 %v3498
        %3946 = vmatprep.subr.bf16.mxu0 0
        %3947 = vmatpush1.bf16.msra.mxu0 %v3499
        %3948 = vmatprep.subr.bf16.mxu0 0
        %3949 = vmatpush1.bf16.msra.mxu0 %v3500
        %3950 = vmatprep.subr.bf16.mxu0 0
        %3951 = vmatpush1.bf16.msra.mxu0 %v3501
        %3952 = vmatprep.mubr.bf16.mxu0 %v2972
        %3953 = vmatmul.mubr.bf16.gmra.mrb[0].mxu0 %v2971
        %v3954 = vpop.f32.mrb[0].mxu0
        %v3955 = vadd.f32 %v3794, %v3954
        %v3956 = vpop.f32.mrb[0].mxu0
        %v3957 = vpop.f32.mrb[0].mxu0
        %v3958 = vadd.f32 %v3797, %v3957
        %v3959 = vpop.f32.mrb[0].mxu0
        %3960 = vmatprep.mubr.bf16.mxu0 %v2969
        %3961 = vmatmul.mubr.bf16.gmra.mrb[0].mxu0 %v2968
        %v3962 = vpop.f32.mrb[0].mxu0
        %v3963 = vadd.f32 %v3802, %v3962
        %v3964 = vpop.f32.mrb[0].mxu0
        %v3965 = vpop.f32.mrb[0].mxu0
        %v3966 = vadd.f32 %v3805, %v3965
        %v3967 = vpop.f32.mrb[0].mxu0
        %3968 = vmatprep.mubr.bf16.mxu0 %v2975
        %3969 = vmatmul.mubr.bf16.gmra.mrb[0].mxu0 %v2974
        %v3970 = vpop.f32.mrb[0].mxu0
        %v3971 = vadd.f32 %v3810, %v3970
        %v3972 = vpop.f32.mrb[0].mxu0
        %v3973 = vpop.f32.mrb[0].mxu0
        %v3974 = vadd.f32 %v3813, %v3973
        %v3975 = vpop.f32.mrb[0].mxu0
        %3976 = vmatprep.mubr.bf16.mxu0 %v2978
        %3977 = vmatmul.mubr.bf16.gmra.mrb[0].mxu0 %v2977
        %v3978 = vpop.f32.mrb[0].mxu0
        %v3979 = vadd.f32 %v3818, %v3978
        %v3980 = vpop.f32.mrb[0].mxu0
        %v3981 = vpop.f32.mrb[0].mxu0
        %v3982 = vadd.f32 %v3821, %v3981
        %v3983 = vpop.f32.mrb[0].mxu0
        %3984 = vmatprep.mubr.bf16.mxu0 %v2981
        %3985 = vmatmul.mubr.bf16.gmra.mrb[0].mxu0 %v2980
        %v3986 = vpop.f32.mrb[0].mxu0
        %v3987 = vadd.f32 %v3826, %v3986
        %v3988 = vpop.f32.mrb[0].mxu0
        %v3989 = vpop.f32.mrb[0].mxu0
        %v3990 = vadd.f32 %v3829, %v3989
        %v3991 = vpop.f32.mrb[0].mxu0
        %3992 = vmatprep.mubr.bf16.mxu0 %v2984
        %3993 = vmatmul.mubr.bf16.gmra.mrb[0].mxu0 %v2983
        %v3994 = vpop.f32.mrb[0].mxu0
        %v3995 = vadd.f32 %v3834, %v3994
        %v3996 = vpop.f32.mrb[0].mxu0
        %v3997 = vpop.f32.mrb[0].mxu0
        %v3998 = vadd.f32 %v3837, %v3997
        %v3999 = vpop.f32.mrb[0].mxu0
        %4000 = vmatprep.mubr.bf16.mxu0 %v2987
        %4001 = vmatmul.mubr.bf16.gmra.mrb[0].mxu0 %v2986
        %v4002 = vpop.f32.mrb[0].mxu0
        %v4003 = vadd.f32 %v3842, %v4002
        %v4004 = vpop.f32.mrb[0].mxu0
        %v4005 = vpop.f32.mrb[0].mxu0
        %v4006 = vadd.f32 %v3845, %v4005
        %v4007 = vpop.f32.mrb[0].mxu0
        %4008 = vmatprep.mubr.bf16.mxu0 %v2990
        %4009 = vmatmul.mubr.bf16.gmra.mrb[0].mxu0 %v2989
        %v4010 = vpop.f32.mrb[0].mxu0
        %v4011 = vadd.f32 %v3850, %v4010
        %v4012 = vpop.f32.mrb[0].mxu0
        %v4013 = vpop.f32.mrb[0].mxu0
        %v4014 = vadd.f32 %v3853, %v4013
        %v4015 = vpop.f32.mrb[0].mxu0
        %4016 = vmatprep.mubr.bf16.mxu0 %v2993
        %4017 = vmatmul.mubr.bf16.gmra.mrb[0].mxu0 %v2992
        %v4018 = vpop.f32.mrb[0].mxu0
        %v4019 = vadd.f32 %v3858, %v4018
        %v4020 = vpop.f32.mrb[0].mxu0
        %v4021 = vpop.f32.mrb[0].mxu0
        %v4022 = vadd.f32 %v3861, %v4021
        %v4023 = vpop.f32.mrb[0].mxu0
        %4024 = vmatprep.mubr.bf16.mxu0 %v2996
        %4025 = vmatmul.mubr.bf16.gmra.mrb[0].mxu0 %v2995
        %v4026 = vpop.f32.mrb[0].mxu0
        %v4027 = vadd.f32 %v3866, %v4026
        %v4028 = vpop.f32.mrb[0].mxu0
        %v4029 = vpop.f32.mrb[0].mxu0
        %v4030 = vadd.f32 %v3869, %v4029
        %v4031 = vpop.f32.mrb[0].mxu0
        %4032 = vmatprep.mubr.bf16.mxu0 %v2999
        %4033 = vmatmul.mubr.bf16.gmra.mrb[0].mxu0 %v2998
        %v4034 = vpop.f32.mrb[0].mxu0
        %v4035 = vadd.f32 %v3874, %v4034
        %v4036 = vpop.f32.mrb[0].mxu0
        %v4037 = vpop.f32.mrb[0].mxu0
        %v4038 = vadd.f32 %v3877, %v4037
        %v4039 = vpop.f32.mrb[0].mxu0
        %4040 = vmatprep.mubr.bf16.mxu0 %v3002
        %4041 = vmatmul.mubr.bf16.gmra.mrb[0].mxu0 %v3001
        %v4042 = vpop.f32.mrb[0].mxu0
        %v4043 = vadd.f32 %v3882, %v4042
        %v4044 = vpop.f32.mrb[0].mxu0
        %v4045 = vpop.f32.mrb[0].mxu0
        %v4046 = vadd.f32 %v3885, %v4045
        %v4047 = vpop.f32.mrb[0].mxu0
        %4048 = vmatprep.mubr.bf16.mxu0 %v3005
        %4049 = vmatmul.mubr.bf16.gmra.mrb[0].mxu0 %v3004
        %v4050 = vpop.f32.mrb[0].mxu0
        %v4051 = vadd.f32 %v3890, %v4050
        %v4052 = vpop.f32.mrb[0].mxu0
        %v4053 = vpop.f32.mrb[0].mxu0
        %v4054 = vadd.f32 %v3893, %v4053
        %v4055 = vpop.f32.mrb[0].mxu0
        %4056 = vmatprep.mubr.bf16.mxu0 %v3008
        %4057 = vmatmul.mubr.bf16.gmra.mrb[0].mxu0 %v3007
        %v4058 = vpop.f32.mrb[0].mxu0
        %v4059 = vadd.f32 %v3898, %v4058
        %v4060 = vpop.f32.mrb[0].mxu0
        %v4061 = vpop.f32.mrb[0].mxu0
        %v4062 = vadd.f32 %v3901, %v4061
        %v4063 = vpop.f32.mrb[0].mxu0
        %4064 = vmatprep.mubr.bf16.mxu0 %v3011
        %4065 = vmatmul.mubr.bf16.gmra.mrb[0].mxu0 %v3010
        %v4066 = vpop.f32.mrb[0].mxu0
        %v4067 = vadd.f32 %v3906, %v4066
        %v4068 = vpop.f32.mrb[0].mxu0
        %v4069 = vpop.f32.mrb[0].mxu0
        %v4070 = vadd.f32 %v3909, %v4069
        %v4071 = vpop.f32.mrb[0].mxu0
        %4072 = vmatprep.mubr.bf16.mxu0 %v3014
        %4073 = vmatmul.mubr.bf16.gmra.mrb[0].mxu0 %v3013
        %v4074 = vpop.f32.mrb[0].mxu0
        %v4075 = vadd.f32 %v3914, %v4074
        %v4076 = vpop.f32.mrb[0].mxu0
        %v4077 = vpop.f32.mrb[0].mxu0
        %v4078 = vadd.f32 %v3917, %v4077
        %v4079 = vpop.f32.mrb[0].mxu0
        %4080 = vdwg.mxu0
        %4081 = vmatprep.subr.bf16.mxu0 0
        %4082 = vmatpush1.bf16.msra.mxu0 %v3502
        %4083 = vmatprep.subr.bf16.mxu0 0
        %4084 = vmatpush1.bf16.msra.mxu0 %v3503
        %4085 = vmatprep.subr.bf16.mxu0 0
        %4086 = vmatpush1.bf16.msra.mxu0 %v3504
        %4087 = vmatprep.subr.bf16.mxu0 0
        %4088 = vmatpush1.bf16.msra.mxu0 %v3505
        %4089 = vmatprep.subr.bf16.mxu0 0
        %4090 = vmatpush1.bf16.msra.mxu0 %v3506
        %4091 = vmatprep.subr.bf16.mxu0 0
        %4092 = vmatpush1.bf16.msra.mxu0 %v3507
        %4093 = vmatprep.subr.bf16.mxu0 0
        %4094 = vmatpush1.bf16.msra.mxu0 %v3508
        %4095 = vmatprep.subr.bf16.mxu0 0
        %4096 = vmatpush1.bf16.msra.mxu0 %v3509
        %4097 = vmatprep.subr.bf16.mxu0 0
        %4098 = vmatpush1.bf16.msra.mxu0 %v3510
        %4099 = vmatprep.subr.bf16.mxu0 0
        %4100 = vmatpush1.bf16.msra.mxu0 %v3511
        %4101 = vmatprep.subr.bf16.mxu0 0
        %4102 = vmatpush1.bf16.msra.mxu0 %v3512
        %4103 = vmatprep.subr.bf16.mxu0 0
        %4104 = vmatpush1.bf16.msra.mxu0 %v3513
        %4105 = vmatprep.subr.bf16.mxu0 0
        %4106 = vmatpush1.bf16.msra.mxu0 %v3514
        %4107 = vmatprep.subr.bf16.mxu0 0
        %4108 = vmatpush1.bf16.msra.mxu0 %v3515
        %4109 = vmatprep.subr.bf16.mxu0 0
        %4110 = vmatpush1.bf16.msra.mxu0 %v3516
        %4111 = vmatprep.subr.bf16.mxu0 0
        %4112 = vmatpush1.bf16.msra.mxu0 %v3517
        %4113 = vmatprep.mubr.bf16.mxu0 %v2968
        %4114 = vmatmul.mubr.bf16.gmra.mrb[0].mxu0 %v2967
        %v4115 = vpop.f32.mrb[0].mxu0
        %v4116 = vadd.f32 %v3955, %v4115
        %v4117 = vpop.f32.mrb[0].mxu0
        %v4118 = vpop.f32.mrb[0].mxu0
        %v4119 = vadd.f32 %v3958, %v4118
        %v4120 = vpop.f32.mrb[0].mxu0
        %4121 = vmatprep.mubr.bf16.mxu0 %v2974
        %4122 = vmatmul.mubr.bf16.gmra.mrb[0].mxu0 %v2973
        %v4123 = vpop.f32.mrb[0].mxu0
        %v4124 = vadd.f32 %v3963, %v4123
        %v4125 = vpop.f32.mrb[0].mxu0
        %v4126 = vpop.f32.mrb[0].mxu0
        %v4127 = vadd.f32 %v3966, %v4126
        %v4128 = vpop.f32.mrb[0].mxu0
        %4129 = vmatprep.mubr.bf16.mxu0 %v2977
        %4130 = vmatmul.mubr.bf16.gmra.mrb[0].mxu0 %v2976
        %v4131 = vpop.f32.mrb[0].mxu0
        %v4132 = vadd.f32 %v3971, %v4131
        %v4133 = vpop.f32.mrb[0].mxu0
        %v4134 = vpop.f32.mrb[0].mxu0
        %v4135 = vadd.f32 %v3974, %v4134
        %v4136 = vpop.f32.mrb[0].mxu0
        %4137 = vmatprep.mubr.bf16.mxu0 %v2980
        %4138 = vmatmul.mubr.bf16.gmra.mrb[0].mxu0 %v2979
        %v4139 = vpop.f32.mrb[0].mxu0
        %v4140 = vadd.f32 %v3979, %v4139
        %v4141 = vpop.f32.mrb[0].mxu0
        %v4142 = vpop.f32.mrb[0].mxu0
        %v4143 = vadd.f32 %v3982, %v4142
        %v4144 = vpop.f32.mrb[0].mxu0
        %4145 = vmatprep.mubr.bf16.mxu0 %v2983
        %4146 = vmatmul.mubr.bf16.gmra.mrb[0].mxu0 %v2982
        %v4147 = vpop.f32.mrb[0].mxu0
        %v4148 = vadd.f32 %v3987, %v4147
        %v4149 = vpop.f32.mrb[0].mxu0
        %v4150 = vpop.f32.mrb[0].mxu0
        %v4151 = vadd.f32 %v3990, %v4150
        %v4152 = vpop.f32.mrb[0].mxu0
        %4153 = vmatprep.mubr.bf16.mxu0 %v2986
        %4154 = vmatmul.mubr.bf16.gmra.mrb[0].mxu0 %v2985
        %v4155 = vpop.f32.mrb[0].mxu0
        %v4156 = vadd.f32 %v3995, %v4155
        %v4157 = vpop.f32.mrb[0].mxu0
        %v4158 = vpop.f32.mrb[0].mxu0
        %v4159 = vadd.f32 %v3998, %v4158
        %v4160 = vpop.f32.mrb[0].mxu0
        %4161 = vmatprep.mubr.bf16.mxu0 %v2989
        %4162 = vmatmul.mubr.bf16.gmra.mrb[0].mxu0 %v2988
        %v4163 = vpop.f32.mrb[0].mxu0
        %v4164 = vadd.f32 %v4003, %v4163
        %v4165 = vpop.f32.mrb[0].mxu0
        %v4166 = vpop.f32.mrb[0].mxu0
        %v4167 = vadd.f32 %v4006, %v4166
        %v4168 = vpop.f32.mrb[0].mxu0
        %4169 = vmatprep.mubr.bf16.mxu0 %v2992
        %4170 = vmatmul.mubr.bf16.gmra.mrb[0].mxu0 %v2991
        %v4171 = vpop.f32.mrb[0].mxu0
        %v4172 = vadd.f32 %v4011, %v4171
        %v4173 = vpop.f32.mrb[0].mxu0
        %v4174 = vpop.f32.mrb[0].mxu0
        %v4175 = vadd.f32 %v4014, %v4174
        %v4176 = vpop.f32.mrb[0].mxu0
        %4177 = vmatprep.mubr.bf16.mxu0 %v2995
        %4178 = vmatmul.mubr.bf16.gmra.mrb[0].mxu0 %v2994
        %v4179 = vpop.f32.mrb[0].mxu0
        %v4180 = vadd.f32 %v4019, %v4179
        %v4181 = vpop.f32.mrb[0].mxu0
        %v4182 = vpop.f32.mrb[0].mxu0
        %v4183 = vadd.f32 %v4022, %v4182
        %v4184 = vpop.f32.mrb[0].mxu0
        %4185 = vmatprep.mubr.bf16.mxu0 %v2998
        %4186 = vmatmul.mubr.bf16.gmra.mrb[0].mxu0 %v2997
        %v4187 = vpop.f32.mrb[0].mxu0
        %v4188 = vadd.f32 %v4027, %v4187
        %v4189 = vpop.f32.mrb[0].mxu0
        %v4190 = vpop.f32.mrb[0].mxu0
        %v4191 = vadd.f32 %v4030, %v4190
        %v4192 = vpop.f32.mrb[0].mxu0
        %4193 = vmatprep.mubr.bf16.mxu0 %v3001
        %4194 = vmatmul.mubr.bf16.gmra.mrb[0].mxu0 %v3000
        %v4195 = vpop.f32.mrb[0].mxu0
        %v4196 = vadd.f32 %v4035, %v4195
        %v4197 = vpop.f32.mrb[0].mxu0
        %v4198 = vpop.f32.mrb[0].mxu0
        %v4199 = vadd.f32 %v4038, %v4198
        %v4200 = vpop.f32.mrb[0].mxu0
        %4201 = vmatprep.mubr.bf16.mxu0 %v3004
        %4202 = vmatmul.mubr.bf16.gmra.mrb[0].mxu0 %v3003
        %v4203 = vpop.f32.mrb[0].mxu0
        %v4204 = vadd.f32 %v4043, %v4203
        %v4205 = vpop.f32.mrb[0].mxu0
        %v4206 = vpop.f32.mrb[0].mxu0
        %v4207 = vadd.f32 %v4046, %v4206
        %v4208 = vpop.f32.mrb[0].mxu0
        %4209 = vmatprep.mubr.bf16.mxu0 %v3007
        %4210 = vmatmul.mubr.bf16.gmra.mrb[0].mxu0 %v3006
        %v4211 = vpop.f32.mrb[0].mxu0
        %v4212 = vadd.f32 %v4051, %v4211
        %v4213 = vpop.f32.mrb[0].mxu0
        %v4214 = vpop.f32.mrb[0].mxu0
        %v4215 = vadd.f32 %v4054, %v4214
        %v4216 = vpop.f32.mrb[0].mxu0
        %4217 = vmatprep.mubr.bf16.mxu0 %v3010
        %4218 = vmatmul.mubr.bf16.gmra.mrb[0].mxu0 %v3009
        %v4219 = vpop.f32.mrb[0].mxu0
        %v4220 = vadd.f32 %v4059, %v4219
        %v4221 = vpop.f32.mrb[0].mxu0
        %v4222 = vpop.f32.mrb[0].mxu0
        %v4223 = vadd.f32 %v4062, %v4222
        %v4224 = vpop.f32.mrb[0].mxu0
        %4225 = vmatprep.mubr.bf16.mxu0 %v3013
        %4226 = vmatmul.mubr.bf16.gmra.mrb[0].mxu0 %v3012
        %v4227 = vpop.f32.mrb[0].mxu0
        %v4228 = vadd.f32 %v4067, %v4227
        %v4229 = vpop.f32.mrb[0].mxu0
        %v4230 = vpop.f32.mrb[0].mxu0
        %v4231 = vadd.f32 %v4070, %v4230
        %v4232 = vpop.f32.mrb[0].mxu0
        %4233 = vmatprep.mubr.bf16.mxu0 %v3010
        %4234 = vmatmul.mubr.bf16.gmra.mrb[0].mxu0 %v3009
        %v4235 = vpop.f32.mrb[0].mxu0
        %v4236 = vadd.f32 %v4075, %v4235
        %v4237 = vpop.f32.mrb[0].mxu0
        %v4238 = vpop.f32.mrb[0].mxu0
        %v4239 = vadd.f32 %v4078, %v4238
        %v4240 = vpop.f32.mrb[0].mxu0
        %4241 = vdwg.mxu0
        %4242 = vmatprep.subr.bf16.mxu0 0
        %4243 = vmatpush1.bf16.msra.mxu0 %v3518
        %4244 = vmatprep.subr.bf16.mxu0 0
        %4245 = vmatpush1.bf16.msra.mxu0 %v3519
        %4246 = vmatprep.subr.bf16.mxu0 0
        %4247 = vmatpush1.bf16.msra.mxu0 %v3520
        %4248 = vmatprep.subr.bf16.mxu0 0
        %4249 = vmatpush1.bf16.msra.mxu0 %v3521
        %4250 = vmatprep.subr.bf16.mxu0 0
        %4251 = vmatpush1.bf16.msra.mxu0 %v3522
        %4252 = vmatprep.subr.bf16.mxu0 0
        %4253 = vmatpush1.bf16.msra.mxu0 %v3523
        %4254 = vmatprep.subr.bf16.mxu0 0
        %4255 = vmatpush1.bf16.msra.mxu0 %v3524
        %4256 = vmatprep.subr.bf16.mxu0 0
        %4257 = vmatpush1.bf16.msra.mxu0 %v3525
        %4258 = vmatprep.subr.bf16.mxu0 0
        %4259 = vmatpush1.bf16.msra.mxu0 0
        %4260 = vmatprep.subr.bf16.mxu0 0
        %4261 = vmatpush1.bf16.msra.mxu0 0
        %4262 = vmatprep.subr.bf16.mxu0 0
        %4263 = vmatpush1.bf16.msra.mxu0 0
        %4264 = vmatprep.subr.bf16.mxu0 0
        %4265 = vmatpush1.bf16.msra.mxu0 0
        %4266 = vmatprep.subr.bf16.mxu0 0
        %4267 = vmatpush1.bf16.msra.mxu0 0
        %4268 = vmatprep.subr.bf16.mxu0 0
        %4269 = vmatpush1.bf16.msra.mxu0 0
        %4270 = vmatprep.subr.bf16.mxu0 0
        %4271 = vmatpush1.bf16.msra.mxu0 0
        %4272 = vmatprep.subr.bf16.mxu0 0
        %4273 = vmatpush1.bf16.msra.mxu0 0
        %4274 = vmatprep.mubr.bf16.mxu0 0
        %4275 = vmatmul.mubr.bf16.gmra.mrb[0].mxu0 %v2969
        %v4276 = vpop.f32.mrb[0].mxu0
        %v4277 = vadd.f32 %v4116, %v4276
        %v4278 = vpop.f32.mrb[0].mxu0
        %v4279 = vpop.f32.mrb[0].mxu0
        %v4280 = vadd.f32 %v4119, %v4279
        %v4281 = vpop.f32.mrb[0].mxu0
        %4282 = vmatprep.mubr.bf16.mxu0 0
        %4283 = vmatmul.mubr.bf16.gmra.mrb[0].mxu0 %v2975
        %v4284 = vpop.f32.mrb[0].mxu0
        %v4285 = vadd.f32 %v4124, %v4284
        %v4286 = vpop.f32.mrb[0].mxu0
        %v4287 = vpop.f32.mrb[0].mxu0
        %v4288 = vadd.f32 %v4127, %v4287
        %v4289 = vpop.f32.mrb[0].mxu0
        %4290 = vmatprep.mubr.bf16.mxu0 0
        %4291 = vmatmul.mubr.bf16.gmra.mrb[0].mxu0 %v2978
        %v4292 = vpop.f32.mrb[0].mxu0
        %v4293 = vadd.f32 %v4132, %v4292
        %v4294 = vpop.f32.mrb[0].mxu0
        %v4295 = vpop.f32.mrb[0].mxu0
        %v4296 = vadd.f32 %v4135, %v4295
        %v4297 = vpop.f32.mrb[0].mxu0
        %4298 = vmatprep.mubr.bf16.mxu0 0
        %4299 = vmatmul.mubr.bf16.gmra.mrb[0].mxu0 %v2981
        %v4300 = vpop.f32.mrb[0].mxu0
        %v4301 = vadd.f32 %v4140, %v4300
        %v4302 = vpop.f32.mrb[0].mxu0
        %v4303 = vpop.f32.mrb[0].mxu0
        %v4304 = vadd.f32 %v4143, %v4303
        %v4305 = vpop.f32.mrb[0].mxu0
        %4306 = vmatprep.mubr.bf16.mxu0 0
        %4307 = vmatmul.mubr.bf16.gmra.mrb[0].mxu0 %v2984
        %v4308 = vpop.f32.mrb[0].mxu0
        %v4309 = vadd.f32 %v4148, %v4308
        %v4310 = vpop.f32.mrb[0].mxu0
        %v4311 = vpop.f32.mrb[0].mxu0
        %v4312 = vadd.f32 %v4151, %v4311
        %v4313 = vpop.f32.mrb[0].mxu0
        %4314 = vmatprep.mubr.bf16.mxu0 0
        %4315 = vmatmul.mubr.bf16.gmra.mrb[0].mxu0 %v2987
        %v4316 = vpop.f32.mrb[0].mxu0
        %v4317 = vadd.f32 %v4156, %v4316
        %v4318 = vpop.f32.mrb[0].mxu0
        %v4319 = vpop.f32.mrb[0].mxu0
        %v4320 = vadd.f32 %v4159, %v4319
        %v4321 = vpop.f32.mrb[0].mxu0
        %4322 = vmatprep.mubr.bf16.mxu0 0
        %4323 = vmatmul.mubr.bf16.gmra.mrb[0].mxu0 %v2990
        %v4324 = vpop.f32.mrb[0].mxu0
        %v4325 = vadd.f32 %v4164, %v4324
        %v4326 = vpop.f32.mrb[0].mxu0
        %v4327 = vpop.f32.mrb[0].mxu0
        %v4328 = vadd.f32 %v4167, %v4327
        %v4329 = vpop.f32.mrb[0].mxu0
        %4330 = vmatprep.mubr.bf16.mxu0 0
        %4331 = vmatmul.mubr.bf16.gmra.mrb[0].mxu0 %v2993
        %v4332 = vpop.f32.mrb[0].mxu0
        %v4333 = vadd.f32 %v4172, %v4332
        %v4334 = vpop.f32.mrb[0].mxu0
        %v4335 = vpop.f32.mrb[0].mxu0
        %v4336 = vadd.f32 %v4175, %v4335
        %v4337 = vpop.f32.mrb[0].mxu0
        %4338 = vmatprep.mubr.bf16.mxu0 0
        %4339 = vmatmul.mubr.bf16.gmra.mrb[0].mxu0 %v2996
        %v4340 = vpop.f32.mrb[0].mxu0
        %v4341 = vadd.f32 %v4180, %v4340
        %v4342 = vpop.f32.mrb[0].mxu0
        %v4343 = vpop.f32.mrb[0].mxu0
        %v4344 = vadd.f32 %v4183, %v4343
        %v4345 = vpop.f32.mrb[0].mxu0
        %4346 = vmatprep.mubr.bf16.mxu0 0
        %4347 = vmatmul.mubr.bf16.gmra.mrb[0].mxu0 %v2999
        %v4348 = vpop.f32.mrb[0].mxu0
        %v4349 = vadd.f32 %v4188, %v4348
        %v4350 = vpop.f32.mrb[0].mxu0
        %v4351 = vpop.f32.mrb[0].mxu0
        %v4352 = vadd.f32 %v4191, %v4351
        %v4353 = vpop.f32.mrb[0].mxu0
        %4354 = vmatprep.mubr.bf16.mxu0 0
        %4355 = vmatmul.mubr.bf16.gmra.mrb[0].mxu0 %v3002
        %v4356 = vpop.f32.mrb[0].mxu0
        %v4357 = vadd.f32 %v4196, %v4356
        %v4358 = vpop.f32.mrb[0].mxu0
        %v4359 = vpop.f32.mrb[0].mxu0
        %v4360 = vadd.f32 %v4199, %v4359
        %v4361 = vpop.f32.mrb[0].mxu0
        %4362 = vmatprep.mubr.bf16.mxu0 0
        %4363 = vmatmul.mubr.bf16.gmra.mrb[0].mxu0 %v3005
        %v4364 = vpop.f32.mrb[0].mxu0
        %v4365 = vadd.f32 %v4204, %v4364
        %v4366 = vpop.f32.mrb[0].mxu0
        %v4367 = vpop.f32.mrb[0].mxu0
        %v4368 = vadd.f32 %v4207, %v4367
        %v4369 = vpop.f32.mrb[0].mxu0
        %4370 = vmatprep.mubr.bf16.mxu0 0
        %4371 = vmatmul.mubr.bf16.gmra.mrb[0].mxu0 %v3008
        %v4372 = vpop.f32.mrb[0].mxu0
        %v4373 = vadd.f32 %v4212, %v4372
        %v4374 = vpop.f32.mrb[0].mxu0
        %v4375 = vpop.f32.mrb[0].mxu0
        %v4376 = vadd.f32 %v4215, %v4375
        %v4377 = vpop.f32.mrb[0].mxu0
        %4378 = vmatprep.mubr.bf16.mxu0 0
        %4379 = vmatmul.mubr.bf16.gmra.mrb[0].mxu0 %v3011
        %v4380 = vpop.f32.mrb[0].mxu0
        %v4381 = vadd.f32 %v4220, %v4380
        %v4382 = vpop.f32.mrb[0].mxu0
        %v4383 = vpop.f32.mrb[0].mxu0
        %v4384 = vadd.f32 %v4223, %v4383
        %v4385 = vpop.f32.mrb[0].mxu0
        %4386 = vmatprep.mubr.bf16.mxu0 0
        %4387 = vmatmul.mubr.bf16.gmra.mrb[0].mxu0 %v3014
        %v4388 = vpop.f32.mrb[0].mxu0
        %v4389 = vadd.f32 %v4228, %v4388
        %v4390 = vpop.f32.mrb[0].mxu0
        %v4391 = vpop.f32.mrb[0].mxu0
        %v4392 = vadd.f32 %v4231, %v4391
        %v4393 = vpop.f32.mrb[0].mxu0
        %4394 = vmatprep.mubr.bf16.mxu0 0
        %4395 = vmatmul.mubr.bf16.gmra.mrb[0].mxu0 %v3011
        %v4396 = vpop.f32.mrb[0].mxu0
        %v4397 = vadd.f32 %v4236, %v4396
        %v4398 = vpop.f32.mrb[0].mxu0
        %v4399 = vpop.f32.mrb[0].mxu0
        %v4400 = vadd.f32 %v4239, %v4399
        %v4401 = vpop.f32.mrb[0].mxu0
        %4402 = vdwg.mxu0
        %v4403 = vadd.f32 %v4277, %v4280
        %v4404 = vadd.f32 %v4403, %v4285
        %v4405 = vadd.f32 %v4404, %v4288
        %v4406 = vadd.f32 %v4405, %v4293
        %v4407 = vadd.f32 %v4406, %v4296
        %v4408 = vadd.f32 %v4407, %v4301
        %v4409 = vadd.f32 %v4408, %v4304
        %v4410 = vadd.f32 %v4409, %v4309
        %v4411 = vadd.f32 %v4410, %v4312
        %v4412 = vadd.f32 %v4411, %v4317
        %v4413 = vadd.f32 %v4412, %v4320
        %v4414 = vadd.f32 %v4413, %v4325
        %v4415 = vadd.f32 %v4414, %v4328
        %v4416 = vadd.f32 %v4415, %v4333
        %v4417 = vadd.f32 %v4416, %v4336
        %v4418 = vadd.f32 %v4417, %v4341
        %v4419 = vadd.f32 %v4418, %v4344
        %v4420 = vadd.f32 %v4419, %v4349
        %v4421 = vadd.f32 %v4420, %v4352
        %v4422 = vadd.f32 %v4421, %v4357
        %v4423 = vadd.f32 %v4422, %v4360
        %v4424 = vadd.f32 %v4423, %v4365
        %v4425 = vadd.f32 %v4424, %v4368
        %v4426 = vadd.f32 %v4425, %v4373
        %v4427 = vadd.f32 %v4426, %v4376
        %v4428 = vadd.f32 %v4427, %v4381
        %v4429 = vadd.f32 %v4428, %v4384
        %v4430 = vadd.f32 %v4429, %v4389
        %v4431 = vadd.f32 %v4430, %v4392
        %v4432 = vadd.f32 %v4431, %v4397
        %v4433 = vadd.f32 %v4432, %v4400
        %v4434 = vrot.slane %v4433, 4
        %v4435 = vadd.f32 %v4433, %v4434
        %v4436 = vrot.slane %v4435, 2
        %v4437 = vadd.f32 %v4435, %v4436
        %v4438 = vrot.slane %v4437, 1
        %v4439 = vadd.f32 %v4437, %v4438
        %v4440 = vmul.f32 %v4277, %v4277
        %v4441 = vmul.f32 %v4280, %v4280
        %v4442 = vmul.f32 %v4285, %v4285
        %v4443 = vmul.f32 %v4288, %v4288
        %v4444 = vmul.f32 %v4293, %v4293
        %v4445 = vmul.f32 %v4296, %v4296
        %v4446 = vmul.f32 %v4301, %v4301
        %v4447 = vmul.f32 %v4304, %v4304
        %v4448 = vmul.f32 %v4309, %v4309
        %v4449 = vmul.f32 %v4312, %v4312
        %v4450 = vmul.f32 %v4317, %v4317
        %v4451 = vmul.f32 %v4320, %v4320
        %v4452 = vmul.f32 %v4325, %v4325
        %v4453 = vmul.f32 %v4328, %v4328
        %v4454 = vmul.f32 %v4333, %v4333
        %v4455 = vmul.f32 %v4336, %v4336
        %v4456 = vmul.f32 %v4341, %v4341
        %v4457 = vmul.f32 %v4344, %v4344
        %v4458 = vmul.f32 %v4349, %v4349
        %v4459 = vmul.f32 %v4352, %v4352
        %v4460 = vmul.f32 %v4357, %v4357
        %v4461 = vmul.f32 %v4360, %v4360
        %v4462 = vmul.f32 %v4365, %v4365
        %v4463 = vmul.f32 %v4368, %v4368
        %v4464 = vmul.f32 %v4373, %v4373
        %v4465 = vmul.f32 %v4376, %v4376
        %v4466 = vmul.f32 %v4381, %v4381
        %v4467 = vmul.f32 %v4384, %v4384
        %v4468 = vmul.f32 %v4389, %v4389
        %v4469 = vmul.f32 %v4392, %v4392
        %v4470 = vmul.f32 %v4397, %v4397
        %v4471 = vmul.f32 %v4400, %v4400
        %v4472 = vadd.f32 %v4440, %v4441
        %v4473 = vadd.f32 %v4472, %v4442
        %v4474 = vadd.f32 %v4473, %v4443
        %v4475 = vadd.f32 %v4474, %v4444
        %v4476 = vadd.f32 %v4475, %v4445
        %v4477 = vadd.f32 %v4476, %v4446
        %v4478 = vadd.f32 %v4477, %v4447
        %v4479 = vadd.f32 %v4478, %v4448
        %v4480 = vadd.f32 %v4479, %v4449
        %v4481 = vadd.f32 %v4480, %v4450
        %v4482 = vadd.f32 %v4481, %v4451
        %v4483 = vadd.f32 %v4482, %v4452
        %v4484 = vadd.f32 %v4483, %v4453
        %v4485 = vadd.f32 %v4484, %v4454
        %v4486 = vadd.f32 %v4485, %v4455
        %v4487 = vadd.f32 %v4486, %v4456
        %v4488 = vadd.f32 %v4487, %v4457
        %v4489 = vadd.f32 %v4488, %v4458
        %v4490 = vadd.f32 %v4489, %v4459
        %v4491 = vadd.f32 %v4490, %v4460
        %v4492 = vadd.f32 %v4491, %v4461
        %v4493 = vadd.f32 %v4492, %v4462
        %v4494 = vadd.f32 %v4493, %v4463
        %v4495 = vadd.f32 %v4494, %v4464
        %v4496 = vadd.f32 %v4495, %v4465
        %v4497 = vadd.f32 %v4496, %v4466
        %v4498 = vadd.f32 %v4497, %v4467
        %v4499 = vadd.f32 %v4498, %v4468
        %v4500 = vadd.f32 %v4499, %v4469
        %v4501 = vadd.f32 %v4500, %v4470
        %v4502 = vadd.f32 %v4501, %v4471
        %v4503 = vrot.slane %v4502, 4
        %v4504 = vadd.f32 %v4502, %v4503
        %v4505 = vrot.slane %v4504, 2
        %v4506 = vadd.f32 %v4504, %v4505
        %v4507 = vrot.slane %v4506, 1
        %v4508 = vadd.f32 %v4506, %v4507
        %v4509 = vmul.f32 %v4439, 0.00390625
        %v4510 = vmul.f32 %v4508, 0.00390625
        %v4511 = vmul.f32 %v4509, %v4509
        %v4512 = vsub.f32 %v4510, %v4511
        %v4513 = vmax.f32 %v4512, 0.0
        %v4514 = vsub.f32 %v4277, %v4509
        %v4515 = vsub.f32 %v4280, %v4509
        %v4516 = vsub.f32 %v4285, %v4509
        %v4517 = vsub.f32 %v4288, %v4509
        %v4518 = vsub.f32 %v4293, %v4509
        %v4519 = vsub.f32 %v4296, %v4509
        %v4520 = vsub.f32 %v4301, %v4509
        %v4521 = vsub.f32 %v4304, %v4509
        %v4522 = vsub.f32 %v4309, %v4509
        %v4523 = vsub.f32 %v4312, %v4509
        %v4524 = vsub.f32 %v4317, %v4509
        %v4525 = vsub.f32 %v4320, %v4509
        %v4526 = vsub.f32 %v4325, %v4509
        %v4527 = vsub.f32 %v4328, %v4509
        %v4528 = vsub.f32 %v4333, %v4509
        %v4529 = vsub.f32 %v4336, %v4509
        %v4530 = vsub.f32 %v4341, %v4509
        %v4531 = vsub.f32 %v4344, %v4509
        %v4532 = vsub.f32 %v4349, %v4509
        %v4533 = vsub.f32 %v4352, %v4509
        %v4534 = vsub.f32 %v4357, %v4509
        %v4535 = vsub.f32 %v4360, %v4509
        %v4536 = vsub.f32 %v4365, %v4509
        %v4537 = vsub.f32 %v4368, %v4509
        %v4538 = vsub.f32 %v4373, %v4509
        %v4539 = vsub.f32 %v4376, %v4509
        %v4540 = vsub.f32 %v4381, %v4509
        %v4541 = vsub.f32 %v4384, %v4509
        %v4542 = vsub.f32 %v4389, %v4509
        %v4543 = vsub.f32 %v4392, %v4509
        %v4544 = vsub.f32 %v4397, %v4509
        %v4545 = vsub.f32 %v4400, %v4509
        %v4546 = vadd.f32 %v4513, 1e-05
        %v4547 = vrsqrt.pop %v4546
        %v4548 = vmul.f32 %v4514, %v4547
        %v4549 = vmul.f32 %v4515, %v4547
        %v4550 = vmul.f32 %v4516, %v4547
        %v4551 = vmul.f32 %v4517, %v4547
        %v4552 = vmul.f32 %v4518, %v4547
        %v4553 = vmul.f32 %v4519, %v4547
        %v4554 = vmul.f32 %v4520, %v4547
        %v4555 = vmul.f32 %v4521, %v4547
        %v4556 = vmul.f32 %v4522, %v4547
        %v4557 = vmul.f32 %v4523, %v4547
        %v4558 = vmul.f32 %v4524, %v4547
        %v4559 = vmul.f32 %v4525, %v4547
        %v4560 = vmul.f32 %v4526, %v4547
        %v4561 = vmul.f32 %v4527, %v4547
        %v4562 = vmul.f32 %v4528, %v4547
        %v4563 = vmul.f32 %v4529, %v4547
        %v4564 = vmul.f32 %v4530, %v4547
        %v4565 = vmul.f32 %v4531, %v4547
        %v4566 = vmul.f32 %v4532, %v4547
        %v4567 = vmul.f32 %v4533, %v4547
        %v4568 = vmul.f32 %v4534, %v4547
        %v4569 = vmul.f32 %v4535, %v4547
        %v4570 = vmul.f32 %v4536, %v4547
        %v4571 = vmul.f32 %v4537, %v4547
        %v4572 = vmul.f32 %v4538, %v4547
        %v4573 = vmul.f32 %v4539, %v4547
        %v4574 = vmul.f32 %v4540, %v4547
        %v4575 = vmul.f32 %v4541, %v4547
        %v4576 = vmul.f32 %v4542, %v4547
        %v4577 = vmul.f32 %v4543, %v4547
        %v4578 = vmul.f32 %v4544, %v4547
        %v4579 = vmul.f32 %v4545, %v4547
        %v4580 = vadd.f32 %v4548, %v4549
        %v4581 = vadd.f32 %v4580, %v4550
        %v4582 = vadd.f32 %v4581, %v4551
        %v4583 = vadd.f32 %v4582, %v4552
        %v4584 = vadd.f32 %v4583, %v4553
        %v4585 = vadd.f32 %v4584, %v4554
        %v4586 = vadd.f32 %v4585, %v4555
        %v4587 = vadd.f32 %v4586, %v4556
        %v4588 = vadd.f32 %v4587, %v4557
        %v4589 = vadd.f32 %v4588, %v4558
        %v4590 = vadd.f32 %v4589, %v4559
        %v4591 = vadd.f32 %v4590, %v4560
        %v4592 = vadd.f32 %v4591, %v4561
        %v4593 = vadd.f32 %v4592, %v4562
        %v4594 = vadd.f32 %v4593, %v4563
        %v4595 = vadd.f32 %v4594, %v4564
        %v4596 = vadd.f32 %v4595, %v4565
        %v4597 = vadd.f32 %v4596, %v4566
        %v4598 = vadd.f32 %v4597, %v4567
        %v4599 = vadd.f32 %v4598, %v4568
        %v4600 = vadd.f32 %v4599, %v4569
        %v4601 = vadd.f32 %v4600, %v4570
        %v4602 = vadd.f32 %v4601, %v4571
        %v4603 = vadd.f32 %v4602, %v4572
        %v4604 = vadd.f32 %v4603, %v4573
        %v4605 = vadd.f32 %v4604, %v4574
        %v4606 = vadd.f32 %v4605, %v4575
        %v4607 = vadd.f32 %v4606, %v4576
        %v4608 = vadd.f32 %v4607, %v4577
        %v4609 = vadd.f32 %v4608, %v4578
        %v4610 = vadd.f32 %v4609, %v4579
        %v4611 = vrot.slane %v4610, 4
        %v4612 = vadd.f32 %v4610, %v4611
        %v4613 = vrot.slane %v4612, 2
        %v4614 = vadd.f32 %v4612, %v4613
        %v4615 = vrot.slane %v4614, 1
        %v4616 = vadd.f32 %v4614, %v4615
        %v4617 = vrcp.pop 256.0
        %v4618 = vmul.f32 %v4616, %v4617
        %v4619 = vld [vmem:[%s5] sm:$0xff]
        %v4620 = vmul.f32 %v4619, %v4618
        %4621 = vadd.xlane.f32.xlu0 %v4620
        %v4622 = vpop.xlane.xlu0 %4621
        %v4623 = vmax.f32 %v4622, 0.0
        %v4624 = vld [vmem:[%s6] sm:$0xff]
        %v4625 = vmul.f32 %v4624, %v4623
        %v4626 = vrot.slane %v4625, 4
        %v4627 = vadd.f32 %v4625, %v4626
        %v4628 = vrot.slane %v4627, 2
        %v4629 = vadd.f32 %v4627, %v4628
        %v4630 = vrot.slane %v4629, 1
        %v4631 = vadd.f32 %v4629, %v4630
        %v4632 = vxor.u32 %v4631, 2147483648
        %v4633 = vmul.f32 %v4632, 1.442695
        %v4634 = vpow.pop %v4633
        %v4635 = vadd.f32 %v4634, 1.0
        %v4636 = vrcp.pop %v4635
        %v4637 = vmul.f32 1.0, %v4636
        %v4638 = vmul.f32 %v4548, %v4637
        %v4639 = vmul.f32 %v4549, %v4637
        %v4640 = vmul.f32 %v4550, %v4637
        %v4641 = vmul.f32 %v4551, %v4637
        %v4642 = vmul.f32 %v4552, %v4637
        %v4643 = vmul.f32 %v4553, %v4637
        %v4644 = vmul.f32 %v4554, %v4637
        %v4645 = vmul.f32 %v4555, %v4637
        %v4646 = vmul.f32 %v4556, %v4637
        %v4647 = vmul.f32 %v4557, %v4637
        %v4648 = vmul.f32 %v4558, %v4637
        %v4649 = vmul.f32 %v4559, %v4637
        %v4650 = vmul.f32 %v4560, %v4637
        %v4651 = vmul.f32 %v4561, %v4637
        %v4652 = vmul.f32 %v4562, %v4637
        %v4653 = vmul.f32 %v4563, %v4637
        %v4654 = vmul.f32 %v4564, %v4637
        %v4655 = vmul.f32 %v4565, %v4637
        %v4656 = vmul.f32 %v4566, %v4637
        %v4657 = vmul.f32 %v4567, %v4637
        %v4658 = vmul.f32 %v4568, %v4637
        %v4659 = vmul.f32 %v4569, %v4637
        %v4660 = vmul.f32 %v4570, %v4637
        %v4661 = vmul.f32 %v4571, %v4637
        %v4662 = vmul.f32 %v4572, %v4637
        %v4663 = vmul.f32 %v4573, %v4637
        %v4664 = vmul.f32 %v4574, %v4637
        %v4665 = vmul.f32 %v4575, %v4637
        %v4666 = vmul.f32 %v4576, %v4637
        %v4667 = vmul.f32 %v4577, %v4637
        %v4668 = vmul.f32 %v4578, %v4637
        %v4669 = vmul.f32 %v4579, %v4637
        %v4670 = vadd.f32 %v327, %v4638
        %v4671 = vadd.f32 %v328, %v4639
        %v4672 = vadd.f32 %v329, %v4640
        %v4673 = vadd.f32 %v330, %v4641
        %v4674 = vadd.f32 %v331, %v4642
        %v4675 = vadd.f32 %v332, %v4643
        %v4676 = vadd.f32 %v333, %v4644
        %v4677 = vadd.f32 %v334, %v4645
        %v4678 = vadd.f32 %v335, %v4646
        %v4679 = vadd.f32 %v336, %v4647
        %v4680 = vadd.f32 %v337, %v4648
        %v4681 = vadd.f32 %v338, %v4649
        %v4682 = vadd.f32 %v339, %v4650
        %v4683 = vadd.f32 %v340, %v4651
        %v4684 = vadd.f32 %v341, %v4652
        %v4685 = vadd.f32 %v342, %v4653
        %v4686 = vadd.f32 %v343, %v4654
        %v4687 = vadd.f32 %v344, %v4655
        %v4688 = vadd.f32 %v345, %v4656
        %v4689 = vadd.f32 %v346, %v4657
        %v4690 = vadd.f32 %v347, %v4658
        %v4691 = vadd.f32 %v348, %v4659
        %v4692 = vadd.f32 %v349, %v4660
        %v4693 = vadd.f32 %v350, %v4661
        %v4694 = vadd.f32 %v351, %v4662
        %v4695 = vadd.f32 %v352, %v4663
        %v4696 = vadd.f32 %v353, %v4664
        %v4697 = vadd.f32 %v354, %v4665
        %v4698 = vadd.f32 %v355, %v4666
        %v4699 = vadd.f32 %v356, %v4667
        %v4700 = vadd.f32 %v357, %v4668
        %v4701 = vadd.f32 %v358, %v4669
        %4702 = vst [vmem:[%s325] sm:$0xff] %v4670
        %4703 = vst [vmem:[%s325 + $0x8] sm:$0xff] %v4671
        %4704 = vst [vmem:[%s325 + $0x10] sm:$0xff] %v4672
        %4705 = vst [vmem:[%s325 + $0x18] sm:$0xff] %v4673
        %4706 = vst [vmem:[%s325 + $0x20] sm:$0xff] %v4674
        %4707 = vst [vmem:[%s325 + $0x28] sm:$0xff] %v4675
        %4708 = vst [vmem:[%s325 + $0x30] sm:$0xff] %v4676
        %4709 = vst [vmem:[%s325 + $0x38] sm:$0xff] %v4677
        %4710 = vst [vmem:[%s325 + $0x40] sm:$0xff] %v4678
        %4711 = vst [vmem:[%s325 + $0x48] sm:$0xff] %v4679
        %4712 = vst [vmem:[%s325 + $0x50] sm:$0xff] %v4680
        %4713 = vst [vmem:[%s325 + $0x58] sm:$0xff] %v4681
        %4714 = vst [vmem:[%s325 + $0x60] sm:$0xff] %v4682
        %4715 = vst [vmem:[%s325 + $0x68] sm:$0xff] %v4683
        %4716 = vst [vmem:[%s325 + $0x70] sm:$0xff] %v4684
        %4717 = vst [vmem:[%s325 + $0x78] sm:$0xff] %v4685
        %4718 = vst [vmem:[%s325 + $0x80] sm:$0xff] %v4686
        %4719 = vst [vmem:[%s325 + $0x88] sm:$0xff] %v4687
        %4720 = vst [vmem:[%s325 + $0x90] sm:$0xff] %v4688
        %4721 = vst [vmem:[%s325 + $0x98] sm:$0xff] %v4689
        %4722 = vst [vmem:[%s325 + $0xa0] sm:$0xff] %v4690
        %4723 = vst [vmem:[%s325 + $0xa8] sm:$0xff] %v4691
        %4724 = vst [vmem:[%s325 + $0xb0] sm:$0xff] %v4692
        %4725 = vst [vmem:[%s325 + $0xb8] sm:$0xff] %v4693
        %4726 = vst [vmem:[%s325 + $0xc0] sm:$0xff] %v4694
        %4727 = vst [vmem:[%s325 + $0xc8] sm:$0xff] %v4695
        %4728 = vst [vmem:[%s325 + $0xd0] sm:$0xff] %v4696
        %4729 = vst [vmem:[%s325 + $0xd8] sm:$0xff] %v4697
        %4730 = vst [vmem:[%s325 + $0xe0] sm:$0xff] %v4698
        %4731 = vst [vmem:[%s325 + $0xe8] sm:$0xff] %v4699
        %4732 = vst [vmem:[%s325 + $0xf0] sm:$0xff] %v4700
        %4733 = vst [vmem:[%s325 + $0xf8] sm:$0xff] %v4701
        %s4734 = sand.u32 %s185, 1
        %s4735 = scalar_lea.sflag [#allocation4], %s4734
        %s4736 = sand.u32 %s185, 1
        %s4737 = smul.addr %s4736, 256
        %s4738 = scalar_lea.vmem [#allocation8], %s4737
        // Predicated region
        $region61: #{tpu_custom_call.1} parent=47 // pred_check
          %p4739 = pneg %p195
        $region62: #{tpu_custom_call.1} parent=47 // pred_check_branch
          %4741 = sbr.rel (%p4739) target = $region64
        $region63: #{tpu_custom_call.1} parent=47 // pred_region
          %s4743 = ssub.s32 4096, 4096
          %4744 = vsyncadd %s4735, %s4743
          %s4745 = smul.addr %s25, 32
          %s4746 = smul.addr %s4745, 128
          %s4747 = scalar_lea.hbm %s7, %s4746
          %s4748 = sshll.u32 %s4738, 4
          %s4749 = int_to_ptr.vmem [resolvable:$true] %s4748
          %4754 = dma.vmem_to_hbm [thread:$0]  %s4749, 4096, %s4747, %s4735, 128, 128, 8
        $region64: #{tpu_custom_call.1} parent=47 // pred_fallthru
          _
      $region48: #{tpu_custom_call.1} parent=5 // pred_fallthru
        _
      %p4755 = scmp.le.s32.totalorder 2, %s20
      // Predicated region
      $region65: #{tpu_custom_call.1} parent=5 // pred_check
        %p4756 = pneg %p4755
      $region66: #{tpu_custom_call.1} parent=5 // pred_check_branch
        %4758 = sbr.rel (%p4756) target = $region68
      $region67: #{tpu_custom_call.1} parent=5 // pred_region
        %s4759 = ssub.s32 %s20, 2
        // Predicated region
        $region69: #{tpu_custom_call.1} parent=67 // pred_check
          %p4760 = pneg %p201
        $region70: #{tpu_custom_call.1} parent=67 // pred_check_branch
          %4762 = sbr.rel (%p4760) target = $region72
        $region71: #{tpu_custom_call.1} parent=67 // pred_region
          %s4763 = sand.u32 %s186, 1
          %s4764 = scalar_lea.sflag [#allocation4], %s4763
          %s4765 = sand.u32 %s186, 1
          %s4766 = smul.addr %s4765, 256
          %s4767 = scalar_lea.vmem [#allocation8], %s4766
          %4768 = dma.done %s4764, 4096
        $region72: #{tpu_custom_call.1} parent=67 // pred_fallthru
          _
      $region68: #{tpu_custom_call.1} parent=5 // pred_fallthru
        _
    $region6: #{tpu_custom_call.1} parent=1 // loop_footer
      %s24 = sadd.s32 1, %s20
    $region7: #{tpu_custom_call.1} parent=1 // loop_footer_branch
      %19 = sbr.rel target = $region3
    $region8: #{tpu_custom_call.1} parent=1 // loop_exit
      _
    %4769 = vsyncpa [#allocation3], 1
    %s4770 = scalar_lea.sflag [#allocation3], 1
    %4771 = vsyncpa %s4770, 1
    %4772 = vsyncpa [#allocation6], 1
    %4773 = vsyncpa [#allocation4], 1
    %s4774 = scalar_lea.sflag [#allocation4], 1
    %4775 = vsyncpa %s4774, 1

</llo_original>
